<compile_context>
chip_gen: v7x
topology: tpu7x:2x2x1
jax: 0.10.0
libtpu: 0.0.40
codegen_flags: <defaults>
</compile_context>

<pallas_src>
import functools

import jax
import jax.numpy as jnp
from jax.experimental import pallas as pl
from jax.experimental.pallas import tpu as pltpu


# ----------------------------------------------------------------------------
# Fused kernel: qkv conv -> dilated attention (all groups/heads) -> proj.
#
# Layouts inside the kernel (Lp = padded flat pixel axis, multiple of 128):
#   xT_ref    : (1, C, Lp)          input, channels-first, spatially zero-padded
#   wqkvT_ref : (3C, C)             qkv 1x1-conv weight, transposed
#   wprojT_ref: (C, C)              proj weight, transposed
#   bprojT_ref: (C, 1)              proj bias (broadcast over lanes)
#   hsum_ref  : (NH, C)             per-head channel-sum matrix (block of ones)
#   hexp_ref  : (C, NH)             per-head broadcast matrix (hsum^T)
#   oT_ref    : (1, C, Lp)          output, channels-first (lane-dense stores)
# ----------------------------------------------------------------------------
def _mdla_fused_kernel(xT_ref, wqkvT_ref, wprojT_ref, bprojT_ref,
                       hsum_ref, hexp_ref, oT_ref, *,
                       C, d, scale, deltas, lane_size):
    f32 = jnp.float32
    xT = xT_ref[0]                                                  # (C, Lp)

    # 1x1 qkv conv == matmul.  Row order of qkvT: [q | k | v] x [group, chan].
    qkvT = jnp.dot(wqkvT_ref[...], xT, preferred_element_type=f32)  # (3C, Lp)

    nd = len(deltas)
    K2 = len(deltas[0])
    R = hsum_ref[...].astype(f32)          # (NH, C): sum head_dim chans -> head
    E = hexp_ref[...].astype(f32)          # (C, NH): head scalar -> its chans

    q_all = qkvT[:C, :] * scale                                     # (C, Lp)
    # Per dilation group: stack K and V rows so one roll shifts both.
    kv_g = [jnp.concatenate(
                [qkvT[C + g * d: C + (g + 1) * d, :],
                 qkvT[2 * C + g * d: 2 * C + (g + 1) * d, :]], axis=0)
            for g in range(nd)]                                     # (2d, Lp)

    # ---- pass 1: scores for each of the K2 dilated neighbours --------------
    # Zero-padded neighbours have K = 0 -> score 0, and V = 0; they still
    # enter the softmax normalization (exact nn.Unfold semantics).
    scores = []          # K2 x (NH, Lp)
    v_shift = []         # K2 x (C,  Lp)
    for n in range(K2):
        k_parts, v_parts = [], []
        for g in range(nd):
            delta = deltas[g][n]
            kv = kv_g[g]
            if delta != 0:
                kv = pltpu.roll(kv, (-delta) % lane_size, 1)        # lane shift
            k_parts.append(kv[:d, :])
            v_parts.append(kv[d:, :])
        kcat = jnp.concatenate(k_parts, axis=0)                     # (C, Lp)
        v_shift.append(jnp.concatenate(v_parts, axis=0))            # (C, Lp)
        # per-head dot(q, k) over head_dim channels via a tiny MXU matmul
        scores.append(jnp.dot(R, q_all * kcat,
                              preferred_element_type=f32))          # (NH, Lp)

    m = scores[0]
    for s in scores[1:]:
        m = jnp.maximum(m, s)

    # ---- pass 2: softmax weights + weighted sum of the shifted V -----------
    denom = jnp.zeros_like(m)                                       # (NH, Lp)
    acc = jnp.zeros((C, lane_size), f32)                            # (C,  Lp)
    for n in range(K2):
        p = jnp.exp(scores[n] - m)                                  # (NH, Lp)
        denom = denom + p
        acc = acc + jnp.dot(E, p, preferred_element_type=f32) * v_shift[n]

    inv = pl.reciprocal(denom, approx=True)                         # (NH, Lp)
    featT = acc * jnp.dot(E, inv, preferred_element_type=f32)       # (C,  Lp)
    # Rows of featT are already in the module's output channel order:
    # (dilation group, head, head_dim).

    # ---- fused output projection (Linear dim -> dim) ------------------------
    projT = jnp.dot(wprojT_ref[...].astype(f32), featT,
                    preferred_element_type=f32)                     # (C, Lp)
    projT = projT + bprojT_ref[...].astype(f32)
    oT_ref[0] = projT.astype(oT_ref.dtype)


# ----------------------------------------------------------------------------
# Public wrapper: NHWC in, NHWC out.
# ----------------------------------------------------------------------------
def multi_dilate_local_attention(x, params, *, num_heads=8, kernel_size=3,
                                 dilation=(2, 3)):
    B, H, W, C = x.shape
    nd = len(dilation)
    assert C % nd == 0 and num_heads % nd == 0 and C % num_heads == 0
    d = C // nd                       # channels per dilation group
    head_dim = C // num_heads
    scale = head_dim ** (-0.5)

    P = max(dilation) * (kernel_size - 1) // 2      # spatial halo (zero pad)
    Hp, Wp = H + 2 * P, W + 2 * P
    HWp = Hp * Wp
    Lp = ((HWp + 127) // 128) * 128                 # lane-dense pixel axis

    dtype = x.dtype

    # Tiny XLA-side prep on the *input only*: zero-pad spatially, go
    # channels-first, flatten pixels into the lane axis, pad lanes to 128n.
    xp = jnp.pad(x, ((0, 0), (P, P), (P, P), (0, 0)))
    xT = xp.transpose(0, 3, 1, 2).reshape(B, C, HWp)
    xT = jnp.pad(xT, ((0, 0), (0, 0), (0, Lp - HWp)))

    wqkvT = params["w_qkv"].T.astype(dtype)                  # (3C, C)
    wprojT = params["w_proj"].T.astype(dtype)                # (C, C)
    bprojT = params["b_proj"].reshape(C, 1).astype(dtype)    # (C, 1)

    # Constant per-head sum / expand matrices (used on the MXU in-kernel).
    hsum = jnp.repeat(jnp.eye(num_heads, dtype=dtype), head_dim, axis=1)  # (NH, C)
    hexp = hsum.T                                                         # (C, NH)

    # Static lane shifts of the 3x3 dilated neighbourhood, per dilation group.
    ctr = (kernel_size - 1) // 2
    deltas = tuple(
        tuple((ki - ctr) * r * Wp + (kj - ctr) * r
              for ki in range(kernel_size) for kj in range(kernel_size))
        for r in dilation)

    kern = functools.partial(_mdla_fused_kernel, C=C, d=d, scale=scale,
                             deltas=deltas, lane_size=Lp)

    oT = pl.pallas_call(
        kern,
        out_shape=jax.ShapeDtypeStruct((B, C, Lp), dtype),
        grid_spec=pltpu.PrefetchScalarGridSpec(
            num_scalar_prefetch=0,
            grid=(B,),
            in_specs=[
                pl.BlockSpec((1, C, Lp), lambda b: (b, 0, 0)),
                pl.BlockSpec((3 * C, C), lambda b: (0, 0)),
                pl.BlockSpec((C, C), lambda b: (0, 0)),
                pl.BlockSpec((C, 1), lambda b: (0, 0)),
                pl.BlockSpec((num_heads, C), lambda b: (0, 0)),
                pl.BlockSpec((C, num_heads), lambda b: (0, 0)),
            ],
            out_specs=pl.BlockSpec((1, C, Lp), lambda b: (b, 0, 0)),
        ),
        compiler_params=pltpu.CompilerParams(
            dimension_semantics=("parallel",)),
    )(xT, wqkvT, wprojT, bprojT, hsum, hexp)

    # Tiny XLA epilogue: drop lane pad + halo, back to NHWC.
    out = oT[:, :, :HWp].reshape(B, C, Hp, Wp)[:, :, P:P + H, P:P + W]
    return out.transpose(0, 2, 3, 1)


# ----------------------------------------------------------------------------
# Pure-JAX reference (mirrors the PyTorch module) for correctness checking.
# ----------------------------------------------------------------------------
def unfold_nhwc(a, H, W, ks, dil):
    # a: (B, HW, d) -> (K2, B, HW, d); kernel positions row-major (ki, kj),
    # zero padding dil*(ks-1)//2 (nn.Unfold semantics).
    B, HW, dd = a.shape
    a = a.reshape(B, H, W, dd)
    pad = dil * (ks - 1) // 2
    ap = jnp.pad(a, ((0, 0), (pad, pad), (pad, pad), (0, 0)))
    outs = []
    for ki in range(ks):
        for kj in range(ks):
            outs.append(ap[:, ki * dil:ki * dil + H, kj * dil:kj * dil + W, :]
                        .reshape(B, HW, dd))
    return jnp.stack(outs, axis=0)


def reference_forward(x, params, *, num_heads=8, kernel_size=3, dilation=(2, 3)):
    B, H, W, C = x.shape
    nd = len(dilation)
    d = C // nd
    head_dim = C // num_heads
    hp = num_heads // nd
    scale = head_dim ** (-0.5)
    HW = H * W
    K2 = kernel_size * kernel_size

    xf = x.reshape(B * HW, C)
    qkv = (xf @ params["w_qkv"]).reshape(B, HW, 3, nd, d)   # qkv_bias=False

    outs = []
    for i, r in enumerate(dilation):
        q = qkv[:, :, 0, i, :].reshape(B, HW, hp, head_dim)
        k = qkv[:, :, 1, i, :]
        v = qkv[:, :, 2, i, :]
        ku = unfold_nhwc(k, H, W, kernel_size, r).reshape(K2, B, HW, hp, head_dim)
        vu = unfold_nhwc(v, H, W, kernel_size, r).reshape(K2, B, HW, hp, head_dim)
        scores = jnp.einsum("bphd,kbphd->bphk", q, ku) * scale
        attn = jax.nn.softmax(scores, axis=-1)
        outs.append(jnp.einsum("bphk,kbphd->bphd", attn, vu))     # (B,HW,hp,hd)
    out = jnp.stack(outs, axis=2).reshape(B * HW, C)              # (dil, head, hd)
    out = out @ params["w_proj"] + params["b_proj"]
    return out.reshape(B, H, W, C)


if __name__ == "__main__":
    B, H, W, C = 2, 16, 16, 32
    num_heads, kernel_size, dilation = 8, 3, (2, 3)

    key = jax.random.PRNGKey(0)
    kx, kw1, kw2, kb2 = jax.random.split(key, 4)
    x = jax.random.normal(kx, (B, H, W, C), dtype=jnp.float32)

    params = {
        # qkv Conv2d(dim, 3*dim, 1, bias=False) as a (C, 3C) matmul matrix
        "w_qkv": jax.random.normal(kw1, (C, 3 * C), dtype=jnp.float32) * 0.05,
        # proj Linear(dim, dim)
        "w_proj": jax.random.normal(kw2, (C, C), dtype=jnp.float32) * 0.05,
        "b_proj": jax.random.normal(kb2, (C,), dtype=jnp.float32) * 0.05,
    }

    fwd = jax.jit(functools.partial(
        multi_dilate_local_attention, num_heads=num_heads,
        kernel_size=kernel_size, dilation=dilation))
    out = jax.block_until_ready(fwd(x, params))

    ref = jax.block_until_ready(reference_forward(
        x, params, num_heads=num_heads, kernel_size=kernel_size,
        dilation=dilation))

    assert out.shape == (B, H, W, C)
    max_err = float(jnp.max(jnp.abs(out - ref)))
    assert jnp.allclose(out, ref, atol=2e-3, rtol=2e-3), max_err
    print("KERNEL_OK")
</pallas_src>

<mosaic_0001>
module attributes {stable_mosaic.version = 11 : i64} {
  func.func @_mdla_fused_kernel(%arg0: i32, %arg1: memref<1x32x512xf32, #tpu.memory_space<vmem>>, %arg2: memref<96x32xf32, #tpu.memory_space<vmem>>, %arg3: memref<32x32xf32, #tpu.memory_space<vmem>>, %arg4: memref<32x1xf32, #tpu.memory_space<vmem>>, %arg5: memref<8x32xf32, #tpu.memory_space<vmem>>, %arg6: memref<32x8xf32, #tpu.memory_space<vmem>>, %arg7: memref<1x32x512xf32, #tpu.memory_space<vmem>>) attributes {dimension_semantics = [#tpu.dimension_semantics<parallel>], iteration_bounds = array<i64: 2>, scalar_prefetch = 0 : i64, scratch_operands = 0 : i64, tpu.core_type = #tpu.core_type<tc>, window_params = [{transform_indices = @transform_0, window_bounds = array<i64: 1, 32, 512>}, {pipeline_mode = #tpu.pipeline_mode<synchronous>, transform_indices = @transform_1, window_bounds = array<i64: 96, 32>}, {pipeline_mode = #tpu.pipeline_mode<synchronous>, transform_indices = @transform_2, window_bounds = array<i64: 32, 32>}, {pipeline_mode = #tpu.pipeline_mode<synchronous>, transform_indices = @transform_3, window_bounds = array<i64: 32, 1>}, {pipeline_mode = #tpu.pipeline_mode<synchronous>, transform_indices = @transform_4, window_bounds = array<i64: 8, 32>}, {pipeline_mode = #tpu.pipeline_mode<synchronous>, transform_indices = @transform_5, window_bounds = array<i64: 32, 8>}, {transform_indices = @transform_6, window_bounds = array<i64: 1, 32, 512>}]} {
    %c0 = arith.constant 0 : index
    %c0_0 = arith.constant 0 : index
    %c0_1 = arith.constant 0 : index
    %0 = vector.load %arg1[%c0, %c0_0, %c0_1] : memref<1x32x512xf32, #tpu.memory_space<vmem>>, vector<1x32x512xf32>
    %1 = vector.shape_cast %0 : vector<1x32x512xf32> to vector<32x512xf32>
    %c0_2 = arith.constant 0 : index
    %c0_3 = arith.constant 0 : index
    %2 = vector.load %arg2[%c0_2, %c0_3] : memref<96x32xf32, #tpu.memory_space<vmem>>, vector<96x32xf32>
    %cst = arith.constant dense<0.000000e+00> : vector<96x512xf32>
    %3 = tpu.matmul %2, %1, %cst {dimension_numbers = #tpu.dot_dimension_numbers<[1], [0], [0], [1], [0, 0, 1, 1], [], []>} : vector<96x32xf32>, vector<32x512xf32>, vector<96x512xf32> -> vector<96x512xf32>
    %c0_4 = arith.constant 0 : index
    %c0_5 = arith.constant 0 : index
    %4 = vector.load %arg5[%c0_4, %c0_5] : memref<8x32xf32, #tpu.memory_space<vmem>>, vector<8x32xf32>
    %c0_6 = arith.constant 0 : index
    %c0_7 = arith.constant 0 : index
    %5 = vector.load %arg6[%c0_6, %c0_7] : memref<32x8xf32, #tpu.memory_space<vmem>>, vector<32x8xf32>
    %6 = vector.extract_strided_slice %3 {offsets = [0, 0], sizes = [32, 512], strides = [1, 1]} : vector<96x512xf32> to vector<32x512xf32>
    %cst_8 = arith.constant 5.000000e-01 : f32
    %7 = vector.broadcast %cst_8 : f32 to vector<32x512xf32>
    %8 = arith.mulf %6, %7 : vector<32x512xf32>
    %9 = vector.extract_strided_slice %3 {offsets = [32, 0], sizes = [16, 512], strides = [1, 1]} : vector<96x512xf32> to vector<16x512xf32>
    %10 = vector.extract_strided_slice %3 {offsets = [64, 0], sizes = [16, 512], strides = [1, 1]} : vector<96x512xf32> to vector<16x512xf32>
    %11 = tpu.concatenate %9, %10 in 0 : vector<16x512xf32>, vector<16x512xf32> -> vector<32x512xf32>
    %12 = vector.extract_strided_slice %3 {offsets = [48, 0], sizes = [16, 512], strides = [1, 1]} : vector<96x512xf32> to vector<16x512xf32>
    %13 = vector.extract_strided_slice %3 {offsets = [80, 0], sizes = [16, 512], strides = [1, 1]} : vector<96x512xf32> to vector<16x512xf32>
    %14 = tpu.concatenate %12, %13 in 0 : vector<16x512xf32>, vector<16x512xf32> -> vector<32x512xf32>
    %c46_i32 = arith.constant 46 : i32
    %15 = tpu.dynamic_rotate %11 by %c46_i32 dim 1 : vector<32x512xf32>, i32 -> vector<32x512xf32>
    %16 = vector.extract_strided_slice %15 {offsets = [0, 0], sizes = [16, 512], strides = [1, 1]} : vector<32x512xf32> to vector<16x512xf32>
    %17 = vector.extract_strided_slice %15 {offsets = [16, 0], sizes = [16, 512], strides = [1, 1]} : vector<32x512xf32> to vector<16x512xf32>
    %c69_i32 = arith.constant 69 : i32
    %18 = tpu.dynamic_rotate %14 by %c69_i32 dim 1 : vector<32x512xf32>, i32 -> vector<32x512xf32>
    %19 = vector.extract_strided_slice %18 {offsets = [0, 0], sizes = [16, 512], strides = [1, 1]} : vector<32x512xf32> to vector<16x512xf32>
    %20 = vector.extract_strided_slice %18 {offsets = [16, 0], sizes = [16, 512], strides = [1, 1]} : vector<32x512xf32> to vector<16x512xf32>
    %21 = tpu.concatenate %16, %19 in 0 : vector<16x512xf32>, vector<16x512xf32> -> vector<32x512xf32>
    %22 = tpu.concatenate %17, %20 in 0 : vector<16x512xf32>, vector<16x512xf32> -> vector<32x512xf32>
    %23 = arith.mulf %8, %21 : vector<32x512xf32>
    %cst_9 = arith.constant dense<0.000000e+00> : vector<8x512xf32>
    %24 = tpu.matmul %4, %23, %cst_9 {dimension_numbers = #tpu.dot_dimension_numbers<[1], [0], [0], [1], [0, 0, 1, 1], [], []>} : vector<8x32xf32>, vector<32x512xf32>, vector<8x512xf32> -> vector<8x512xf32>
    %c44_i32 = arith.constant 44 : i32
    %25 = tpu.dynamic_rotate %11 by %c44_i32 dim 1 : vector<32x512xf32>, i32 -> vector<32x512xf32>
    %26 = vector.extract_strided_slice %25 {offsets = [0, 0], sizes = [16, 512], strides = [1, 1]} : vector<32x512xf32> to vector<16x512xf32>
    %27 = vector.extract_strided_slice %25 {offsets = [16, 0], sizes = [16, 512], strides = [1, 1]} : vector<32x512xf32> to vector<16x512xf32>
    %c66_i32 = arith.constant 66 : i32
    %28 = tpu.dynamic_rotate %14 by %c66_i32 dim 1 : vector<32x512xf32>, i32 -> vector<32x512xf32>
    %29 = vector.extract_strided_slice %28 {offsets = [0, 0], sizes = [16, 512], strides = [1, 1]} : vector<32x512xf32> to vector<16x512xf32>
    %30 = vector.extract_strided_slice %28 {offsets = [16, 0], sizes = [16, 512], strides = [1, 1]} : vector<32x512xf32> to vector<16x512xf32>
    %31 = tpu.concatenate %26, %29 in 0 : vector<16x512xf32>, vector<16x512xf32> -> vector<32x512xf32>
    %32 = tpu.concatenate %27, %30 in 0 : vector<16x512xf32>, vector<16x512xf32> -> vector<32x512xf32>
    %33 = arith.mulf %8, %31 : vector<32x512xf32>
    %cst_10 = arith.constant dense<0.000000e+00> : vector<8x512xf32>
    %34 = tpu.matmul %4, %33, %cst_10 {dimension_numbers = #tpu.dot_dimension_numbers<[1], [0], [0], [1], [0, 0, 1, 1], [], []>} : vector<8x32xf32>, vector<32x512xf32>, vector<8x512xf32> -> vector<8x512xf32>
    %c42_i32 = arith.constant 42 : i32
    %35 = tpu.dynamic_rotate %11 by %c42_i32 dim 1 : vector<32x512xf32>, i32 -> vector<32x512xf32>
    %36 = vector.extract_strided_slice %35 {offsets = [0, 0], sizes = [16, 512], strides = [1, 1]} : vector<32x512xf32> to vector<16x512xf32>
    %37 = vector.extract_strided_slice %35 {offsets = [16, 0], sizes = [16, 512], strides = [1, 1]} : vector<32x512xf32> to vector<16x512xf32>
    %c63_i32 = arith.constant 63 : i32
    %38 = tpu.dynamic_rotate %14 by %c63_i32 dim 1 : vector<32x512xf32>, i32 -> vector<32x512xf32>
    %39 = vector.extract_strided_slice %38 {offsets = [0, 0], sizes = [16, 512], strides = [1, 1]} : vector<32x512xf32> to vector<16x512xf32>
    %40 = vector.extract_strided_slice %38 {offsets = [16, 0], sizes = [16, 512], strides = [1, 1]} : vector<32x512xf32> to vector<16x512xf32>
    %41 = tpu.concatenate %36, %39 in 0 : vector<16x512xf32>, vector<16x512xf32> -> vector<32x512xf32>
    %42 = tpu.concatenate %37, %40 in 0 : vector<16x512xf32>, vector<16x512xf32> -> vector<32x512xf32>
    %43 = arith.mulf %8, %41 : vector<32x512xf32>
    %cst_11 = arith.constant dense<0.000000e+00> : vector<8x512xf32>
    %44 = tpu.matmul %4, %43, %cst_11 {dimension_numbers = #tpu.dot_dimension_numbers<[1], [0], [0], [1], [0, 0, 1, 1], [], []>} : vector<8x32xf32>, vector<32x512xf32>, vector<8x512xf32> -> vector<8x512xf32>
    %c2_i32 = arith.constant 2 : i32
    %45 = tpu.dynamic_rotate %11 by %c2_i32 dim 1 : vector<32x512xf32>, i32 -> vector<32x512xf32>
    %46 = vector.extract_strided_slice %45 {offsets = [0, 0], sizes = [16, 512], strides = [1, 1]} : vector<32x512xf32> to vector<16x512xf32>
    %47 = vector.extract_strided_slice %45 {offsets = [16, 0], sizes = [16, 512], strides = [1, 1]} : vector<32x512xf32> to vector<16x512xf32>
    %c3_i32 = arith.constant 3 : i32
    %48 = tpu.dynamic_rotate %14 by %c3_i32 dim 1 : vector<32x512xf32>, i32 -> vector<32x512xf32>
    %49 = vector.extract_strided_slice %48 {offsets = [0, 0], sizes = [16, 512], strides = [1, 1]} : vector<32x512xf32> to vector<16x512xf32>
    %50 = vector.extract_strided_slice %48 {offsets = [16, 0], sizes = [16, 512], strides = [1, 1]} : vector<32x512xf32> to vector<16x512xf32>
    %51 = tpu.concatenate %46, %49 in 0 : vector<16x512xf32>, vector<16x512xf32> -> vector<32x512xf32>
    %52 = tpu.concatenate %47, %50 in 0 : vector<16x512xf32>, vector<16x512xf32> -> vector<32x512xf32>
    %53 = arith.mulf %8, %51 : vector<32x512xf32>
    %cst_12 = arith.constant dense<0.000000e+00> : vector<8x512xf32>
    %54 = tpu.matmul %4, %53, %cst_12 {dimension_numbers = #tpu.dot_dimension_numbers<[1], [0], [0], [1], [0, 0, 1, 1], [], []>} : vector<8x32xf32>, vector<32x512xf32>, vector<8x512xf32> -> vector<8x512xf32>
    %55 = vector.extract_strided_slice %11 {offsets = [0, 0], sizes = [16, 512], strides = [1, 1]} : vector<32x512xf32> to vector<16x512xf32>
    %56 = vector.extract_strided_slice %11 {offsets = [16, 0], sizes = [16, 512], strides = [1, 1]} : vector<32x512xf32> to vector<16x512xf32>
    %57 = vector.extract_strided_slice %14 {offsets = [0, 0], sizes = [16, 512], strides = [1, 1]} : vector<32x512xf32> to vector<16x512xf32>
    %58 = vector.extract_strided_slice %14 {offsets = [16, 0], sizes = [16, 512], strides = [1, 1]} : vector<32x512xf32> to vector<16x512xf32>
    %59 = tpu.concatenate %55, %57 in 0 : vector<16x512xf32>, vector<16x512xf32> -> vector<32x512xf32>
    %60 = tpu.concatenate %56, %58 in 0 : vector<16x512xf32>, vector<16x512xf32> -> vector<32x512xf32>
    %61 = arith.mulf %8, %59 : vector<32x512xf32>
    %cst_13 = arith.constant dense<0.000000e+00> : vector<8x512xf32>
    %62 = tpu.matmul %4, %61, %cst_13 {dimension_numbers = #tpu.dot_dimension_numbers<[1], [0], [0], [1], [0, 0, 1, 1], [], []>} : vector<8x32xf32>, vector<32x512xf32>, vector<8x512xf32> -> vector<8x512xf32>
    %c510_i32 = arith.constant 510 : i32
    %63 = tpu.dynamic_rotate %11 by %c510_i32 dim 1 : vector<32x512xf32>, i32 -> vector<32x512xf32>
    %64 = vector.extract_strided_slice %63 {offsets = [0, 0], sizes = [16, 512], strides = [1, 1]} : vector<32x512xf32> to vector<16x512xf32>
    %65 = vector.extract_strided_slice %63 {offsets = [16, 0], sizes = [16, 512], strides = [1, 1]} : vector<32x512xf32> to vector<16x512xf32>
    %c509_i32 = arith.constant 509 : i32
    %66 = tpu.dynamic_rotate %14 by %c509_i32 dim 1 : vector<32x512xf32>, i32 -> vector<32x512xf32>
    %67 = vector.extract_strided_slice %66 {offsets = [0, 0], sizes = [16, 512], strides = [1, 1]} : vector<32x512xf32> to vector<16x512xf32>
    %68 = vector.extract_strided_slice %66 {offsets = [16, 0], sizes = [16, 512], strides = [1, 1]} : vector<32x512xf32> to vector<16x512xf32>
    %69 = tpu.concatenate %64, %67 in 0 : vector<16x512xf32>, vector<16x512xf32> -> vector<32x512xf32>
    %70 = tpu.concatenate %65, %68 in 0 : vector<16x512xf32>, vector<16x512xf32> -> vector<32x512xf32>
    %71 = arith.mulf %8, %69 : vector<32x512xf32>
    %cst_14 = arith.constant dense<0.000000e+00> : vector<8x512xf32>
    %72 = tpu.matmul %4, %71, %cst_14 {dimension_numbers = #tpu.dot_dimension_numbers<[1], [0], [0], [1], [0, 0, 1, 1], [], []>} : vector<8x32xf32>, vector<32x512xf32>, vector<8x512xf32> -> vector<8x512xf32>
    %c470_i32 = arith.constant 470 : i32
    %73 = tpu.dynamic_rotate %11 by %c470_i32 dim 1 : vector<32x512xf32>, i32 -> vector<32x512xf32>
    %74 = vector.extract_strided_slice %73 {offsets = [0, 0], sizes = [16, 512], strides = [1, 1]} : vector<32x512xf32> to vector<16x512xf32>
    %75 = vector.extract_strided_slice %73 {offsets = [16, 0], sizes = [16, 512], strides = [1, 1]} : vector<32x512xf32> to vector<16x512xf32>
    %c449_i32 = arith.constant 449 : i32
    %76 = tpu.dynamic_rotate %14 by %c449_i32 dim 1 : vector<32x512xf32>, i32 -> vector<32x512xf32>
    %77 = vector.extract_strided_slice %76 {offsets = [0, 0], sizes = [16, 512], strides = [1, 1]} : vector<32x512xf32> to vector<16x512xf32>
    %78 = vector.extract_strided_slice %76 {offsets = [16, 0], sizes = [16, 512], strides = [1, 1]} : vector<32x512xf32> to vector<16x512xf32>
    %79 = tpu.concatenate %74, %77 in 0 : vector<16x512xf32>, vector<16x512xf32> -> vector<32x512xf32>
    %80 = tpu.concatenate %75, %78 in 0 : vector<16x512xf32>, vector<16x512xf32> -> vector<32x512xf32>
    %81 = arith.mulf %8, %79 : vector<32x512xf32>
    %cst_15 = arith.constant dense<0.000000e+00> : vector<8x512xf32>
    %82 = tpu.matmul %4, %81, %cst_15 {dimension_numbers = #tpu.dot_dimension_numbers<[1], [0], [0], [1], [0, 0, 1, 1], [], []>} : vector<8x32xf32>, vector<32x512xf32>, vector<8x512xf32> -> vector<8x512xf32>
    %c468_i32 = arith.constant 468 : i32
    %83 = tpu.dynamic_rotate %11 by %c468_i32 dim 1 : vector<32x512xf32>, i32 -> vector<32x512xf32>
    %84 = vector.extract_strided_slice %83 {offsets = [0, 0], sizes = [16, 512], strides = [1, 1]} : vector<32x512xf32> to vector<16x512xf32>
    %85 = vector.extract_strided_slice %83 {offsets = [16, 0], sizes = [16, 512], strides = [1, 1]} : vector<32x512xf32> to vector<16x512xf32>
    %c446_i32 = arith.constant 446 : i32
    %86 = tpu.dynamic_rotate %14 by %c446_i32 dim 1 : vector<32x512xf32>, i32 -> vector<32x512xf32>
    %87 = vector.extract_strided_slice %86 {offsets = [0, 0], sizes = [16, 512], strides = [1, 1]} : vector<32x512xf32> to vector<16x512xf32>
    %88 = vector.extract_strided_slice %86 {offsets = [16, 0], sizes = [16, 512], strides = [1, 1]} : vector<32x512xf32> to vector<16x512xf32>
    %89 = tpu.concatenate %84, %87 in 0 : vector<16x512xf32>, vector<16x512xf32> -> vector<32x512xf32>
    %90 = tpu.concatenate %85, %88 in 0 : vector<16x512xf32>, vector<16x512xf32> -> vector<32x512xf32>
    %91 = arith.mulf %8, %89 : vector<32x512xf32>
    %cst_16 = arith.constant dense<0.000000e+00> : vector<8x512xf32>
    %92 = tpu.matmul %4, %91, %cst_16 {dimension_numbers = #tpu.dot_dimension_numbers<[1], [0], [0], [1], [0, 0, 1, 1], [], []>} : vector<8x32xf32>, vector<32x512xf32>, vector<8x512xf32> -> vector<8x512xf32>
    %c466_i32 = arith.constant 466 : i32
    %93 = tpu.dynamic_rotate %11 by %c466_i32 dim 1 : vector<32x512xf32>, i32 -> vector<32x512xf32>
    %94 = vector.extract_strided_slice %93 {offsets = [0, 0], sizes = [16, 512], strides = [1, 1]} : vector<32x512xf32> to vector<16x512xf32>
    %95 = vector.extract_strided_slice %93 {offsets = [16, 0], sizes = [16, 512], strides = [1, 1]} : vector<32x512xf32> to vector<16x512xf32>
    %c443_i32 = arith.constant 443 : i32
    %96 = tpu.dynamic_rotate %14 by %c443_i32 dim 1 : vector<32x512xf32>, i32 -> vector<32x512xf32>
    %97 = vector.extract_strided_slice %96 {offsets = [0, 0], sizes = [16, 512], strides = [1, 1]} : vector<32x512xf32> to vector<16x512xf32>
    %98 = vector.extract_strided_slice %96 {offsets = [16, 0], sizes = [16, 512], strides = [1, 1]} : vector<32x512xf32> to vector<16x512xf32>
    %99 = tpu.concatenate %94, %97 in 0 : vector<16x512xf32>, vector<16x512xf32> -> vector<32x512xf32>
    %100 = tpu.concatenate %95, %98 in 0 : vector<16x512xf32>, vector<16x512xf32> -> vector<32x512xf32>
    %101 = arith.mulf %8, %99 : vector<32x512xf32>
    %cst_17 = arith.constant dense<0.000000e+00> : vector<8x512xf32>
    %102 = tpu.matmul %4, %101, %cst_17 {dimension_numbers = #tpu.dot_dimension_numbers<[1], [0], [0], [1], [0, 0, 1, 1], [], []>} : vector<8x32xf32>, vector<32x512xf32>, vector<8x512xf32> -> vector<8x512xf32>
    %103 = arith.maximumf %24, %34 : vector<8x512xf32>
    %104 = arith.maximumf %103, %44 : vector<8x512xf32>
    %105 = arith.maximumf %104, %54 : vector<8x512xf32>
    %106 = arith.maximumf %105, %62 : vector<8x512xf32>
    %107 = arith.maximumf %106, %72 : vector<8x512xf32>
    %108 = arith.maximumf %107, %82 : vector<8x512xf32>
    %109 = arith.maximumf %108, %92 : vector<8x512xf32>
    %110 = arith.maximumf %109, %102 : vector<8x512xf32>
    %cst_18 = arith.constant 0.000000e+00 : f32
    %111 = vector.broadcast %cst_18 : f32 to vector<8x512xf32>
    %cst_19 = arith.constant 0.000000e+00 : f32
    %112 = vector.broadcast %cst_19 : f32 to vector<32x512xf32>
    %113 = arith.subf %24, %110 : vector<8x512xf32>
    %114 = math.exp %113 : vector<8x512xf32>
    %115 = arith.addf %111, %114 : vector<8x512xf32>
    %cst_20 = arith.constant dense<0.000000e+00> : vector<32x512xf32>
    %116 = tpu.matmul %5, %114, %cst_20 {dimension_numbers = #tpu.dot_dimension_numbers<[1], [0], [0], [1], [0, 0, 1, 1], [], []>} : vector<32x8xf32>, vector<8x512xf32>, vector<32x512xf32> -> vector<32x512xf32>
    %117 = arith.mulf %116, %22 : vector<32x512xf32>
    %118 = arith.addf %112, %117 : vector<32x512xf32>
    %119 = arith.subf %34, %110 : vector<8x512xf32>
    %120 = math.exp %119 : vector<8x512xf32>
    %121 = arith.addf %115, %120 : vector<8x512xf32>
    %cst_21 = arith.constant dense<0.000000e+00> : vector<32x512xf32>
    %122 = tpu.matmul %5, %120, %cst_21 {dimension_numbers = #tpu.dot_dimension_numbers<[1], [0], [0], [1], [0, 0, 1, 1], [], []>} : vector<32x8xf32>, vector<8x512xf32>, vector<32x512xf32> -> vector<32x512xf32>
    %123 = arith.mulf %122, %32 : vector<32x512xf32>
    %124 = arith.addf %118, %123 : vector<32x512xf32>
    %125 = arith.subf %44, %110 : vector<8x512xf32>
    %126 = math.exp %125 : vector<8x512xf32>
    %127 = arith.addf %121, %126 : vector<8x512xf32>
    %cst_22 = arith.constant dense<0.000000e+00> : vector<32x512xf32>
    %128 = tpu.matmul %5, %126, %cst_22 {dimension_numbers = #tpu.dot_dimension_numbers<[1], [0], [0], [1], [0, 0, 1, 1], [], []>} : vector<32x8xf32>, vector<8x512xf32>, vector<32x512xf32> -> vector<32x512xf32>
    %129 = arith.mulf %128, %42 : vector<32x512xf32>
    %130 = arith.addf %124, %129 : vector<32x512xf32>
    %131 = arith.subf %54, %110 : vector<8x512xf32>
    %132 = math.exp %131 : vector<8x512xf32>
    %133 = arith.addf %127, %132 : vector<8x512xf32>
    %cst_23 = arith.constant dense<0.000000e+00> : vector<32x512xf32>
    %134 = tpu.matmul %5, %132, %cst_23 {dimension_numbers = #tpu.dot_dimension_numbers<[1], [0], [0], [1], [0, 0, 1, 1], [], []>} : vector<32x8xf32>, vector<8x512xf32>, vector<32x512xf32> -> vector<32x512xf32>
    %135 = arith.mulf %134, %52 : vector<32x512xf32>
    %136 = arith.addf %130, %135 : vector<32x512xf32>
    %137 = arith.subf %62, %110 : vector<8x512xf32>
    %138 = math.exp %137 : vector<8x512xf32>
    %139 = arith.addf %133, %138 : vector<8x512xf32>
    %cst_24 = arith.constant dense<0.000000e+00> : vector<32x512xf32>
    %140 = tpu.matmul %5, %138, %cst_24 {dimension_numbers = #tpu.dot_dimension_numbers<[1], [0], [0], [1], [0, 0, 1, 1], [], []>} : vector<32x8xf32>, vector<8x512xf32>, vector<32x512xf32> -> vector<32x512xf32>
    %141 = arith.mulf %140, %60 : vector<32x512xf32>
    %142 = arith.addf %136, %141 : vector<32x512xf32>
    %143 = arith.subf %72, %110 : vector<8x512xf32>
    %144 = math.exp %143 : vector<8x512xf32>
    %145 = arith.addf %139, %144 : vector<8x512xf32>
    %cst_25 = arith.constant dense<0.000000e+00> : vector<32x512xf32>
    %146 = tpu.matmul %5, %144, %cst_25 {dimension_numbers = #tpu.dot_dimension_numbers<[1], [0], [0], [1], [0, 0, 1, 1], [], []>} : vector<32x8xf32>, vector<8x512xf32>, vector<32x512xf32> -> vector<32x512xf32>
    %147 = arith.mulf %146, %70 : vector<32x512xf32>
    %148 = arith.addf %142, %147 : vector<32x512xf32>
    %149 = arith.subf %82, %110 : vector<8x512xf32>
    %150 = math.exp %149 : vector<8x512xf32>
    %151 = arith.addf %145, %150 : vector<8x512xf32>
    %cst_26 = arith.constant dense<0.000000e+00> : vector<32x512xf32>
    %152 = tpu.matmul %5, %150, %cst_26 {dimension_numbers = #tpu.dot_dimension_numbers<[1], [0], [0], [1], [0, 0, 1, 1], [], []>} : vector<32x8xf32>, vector<8x512xf32>, vector<32x512xf32> -> vector<32x512xf32>
    %153 = arith.mulf %152, %80 : vector<32x512xf32>
    %154 = arith.addf %148, %153 : vector<32x512xf32>
    %155 = arith.subf %92, %110 : vector<8x512xf32>
    %156 = math.exp %155 : vector<8x512xf32>
    %157 = arith.addf %151, %156 : vector<8x512xf32>
    %cst_27 = arith.constant dense<0.000000e+00> : vector<32x512xf32>
    %158 = tpu.matmul %5, %156, %cst_27 {dimension_numbers = #tpu.dot_dimension_numbers<[1], [0], [0], [1], [0, 0, 1, 1], [], []>} : vector<32x8xf32>, vector<8x512xf32>, vector<32x512xf32> -> vector<32x512xf32>
    %159 = arith.mulf %158, %90 : vector<32x512xf32>
    %160 = arith.addf %154, %159 : vector<32x512xf32>
    %161 = arith.subf %102, %110 : vector<8x512xf32>
    %162 = math.exp %161 : vector<8x512xf32>
    %163 = arith.addf %157, %162 : vector<8x512xf32>
    %cst_28 = arith.constant dense<0.000000e+00> : vector<32x512xf32>
    %164 = tpu.matmul %5, %162, %cst_28 {dimension_numbers = #tpu.dot_dimension_numbers<[1], [0], [0], [1], [0, 0, 1, 1], [], []>} : vector<32x8xf32>, vector<8x512xf32>, vector<32x512xf32> -> vector<32x512xf32>
    %165 = arith.mulf %164, %100 : vector<32x512xf32>
    %166 = arith.addf %160, %165 : vector<32x512xf32>
    %167 = tpu.reciprocal %163 {approx = true} : vector<8x512xf32> -> vector<8x512xf32>
    %cst_29 = arith.constant dense<0.000000e+00> : vector<32x512xf32>
    %168 = tpu.matmul %5, %167, %cst_29 {dimension_numbers = #tpu.dot_dimension_numbers<[1], [0], [0], [1], [0, 0, 1, 1], [], []>} : vector<32x8xf32>, vector<8x512xf32>, vector<32x512xf32> -> vector<32x512xf32>
    %169 = arith.mulf %166, %168 : vector<32x512xf32>
    %c0_30 = arith.constant 0 : index
    %c0_31 = arith.constant 0 : index
    %170 = vector.load %arg3[%c0_30, %c0_31] : memref<32x32xf32, #tpu.memory_space<vmem>>, vector<32x32xf32>
    %cst_32 = arith.constant dense<0.000000e+00> : vector<32x512xf32>
    %171 = tpu.matmul %170, %169, %cst_32 {dimension_numbers = #tpu.dot_dimension_numbers<[1], [0], [0], [1], [0, 0, 1, 1], [], []>} : vector<32x32xf32>, vector<32x512xf32>, vector<32x512xf32> -> vector<32x512xf32>
    %c0_33 = arith.constant 0 : index
    %c0_34 = arith.constant 0 : index
    %172 = vector.load %arg4[%c0_33, %c0_34] : memref<32x1xf32, #tpu.memory_space<vmem>>, vector<32x1xf32>
    %173 = vector.broadcast %172 : vector<32x1xf32> to vector<32x512xf32>
    %174 = arith.addf %171, %173 : vector<32x512xf32>
    %c0_35 = arith.constant 0 : index
    %c0_36 = arith.constant 0 : index
    %c0_37 = arith.constant 0 : index
    %175 = vector.load %arg7[%c0_35, %c0_36, %c0_37] : memref<1x32x512xf32, #tpu.memory_space<vmem>>, vector<1x32x512xf32>
    %176 = vector.shape_cast %175 : vector<1x32x512xf32> to vector<32x512xf32>
    %177 = vector.shape_cast %174 : vector<32x512xf32> to vector<1x32x512xf32>
    tpu.vector_store %arg7[%c0_35, %c0_36, %c0_37], %177 {strides = array<i32>} : memref<1x32x512xf32, #tpu.memory_space<vmem>>, vector<1x32x512xf32>,
    return
  }
  func.func @transform_0(%arg0: i32) -> (i32, i32, i32) {
    %c0_i32 = arith.constant 0 : i32
    %c0_i32_0 = arith.constant 0 : i32
    %c0_i32_1 = arith.constant 0 : i32
    return %arg0, %c0_i32, %c0_i32_0 : i32, i32, i32
  }
  func.func @transform_1(%arg0: i32) -> (i32, i32) {
    %c0_i32 = arith.constant 0 : i32
    %c0_i32_0 = arith.constant 0 : i32
    %c0_i32_1 = arith.constant 0 : i32
    return %c0_i32, %c0_i32_0 : i32, i32
  }
  func.func @transform_2(%arg0: i32) -> (i32, i32) {
    %c0_i32 = arith.constant 0 : i32
    %c0_i32_0 = arith.constant 0 : i32
    %c0_i32_1 = arith.constant 0 : i32
    return %c0_i32, %c0_i32_0 : i32, i32
  }
  func.func @transform_3(%arg0: i32) -> (i32, i32) {
    %c0_i32 = arith.constant 0 : i32
    %c0_i32_0 = arith.constant 0 : i32
    %c0_i32_1 = arith.constant 0 : i32
    return %c0_i32, %c0_i32_0 : i32, i32
  }
  func.func @transform_4(%arg0: i32) -> (i32, i32) {
    %c0_i32 = arith.constant 0 : i32
    %c0_i32_0 = arith.constant 0 : i32
    %c0_i32_1 = arith.constant 0 : i32
    return %c0_i32, %c0_i32_0 : i32, i32
  }
  func.func @transform_5(%arg0: i32) -> (i32, i32) {
    %c0_i32 = arith.constant 0 : i32
    %c0_i32_0 = arith.constant 0 : i32
    %c0_i32_1 = arith.constant 0 : i32
    return %c0_i32, %c0_i32_0 : i32, i32
  }
  func.func @transform_6(%arg0: i32) -> (i32, i32, i32) {
    %c0_i32 = arith.constant 0 : i32
    %c0_i32_0 = arith.constant 0 : i32
    %c0_i32_1 = arith.constant 0 : i32
    return %arg0, %c0_i32, %c0_i32_0 : i32, i32, i32
  }
}

</mosaic_0001>

<llo_original>
// kernel: multi_dilate_local_attention.1
$region0: #{multi_dilate_local_attention.1}
  #allocation0 [shape = 'u32[]', space=smem, size = 0x4, offset = 0x4, fixed_abs, tag = 'smem constant byte address 0x4 - core index']
  #allocation1 [shape = 'u32[144,128]{1,0:T(1,128)}', space=vmem, size = 0x12000, scoped, tag = 'internal scratch']
  %s0 = inlined_call_operand.vmem [shape: f32[2,32,512], index: 0, kind: input, shape index: {}]
  %s1 = inlined_call_operand.vmem [shape: f32[96,32], index: 1, kind: input, shape index: {}]
  %s2 = inlined_call_operand.vmem [shape: f32[32,32], index: 2, kind: input, shape index: {}]
  %s3 = inlined_call_operand.vmem [shape: f32[32,1], index: 3, kind: input, shape index: {}]
  %s4 = inlined_call_operand.vmem [shape: f32[8,32], index: 4, kind: input, shape index: {}]
  %s5 = inlined_call_operand.vmem [shape: f32[32,8], index: 5, kind: input, shape index: {}]
  %s6 = inlined_call_operand.vmem [shape: f32[2,32,512], index: 6, kind: output, shape index: {}]
  %s7 = sld [smem:[#allocation0]]
  $region57: #{multi_dilate_local_attention.1} parent=0
    _
  %s9 = ssub.s32 1, %s7
  %s10 = scalar_select 0, %s9, %s7
  loop: start=0, step=1, limit=4
  $region2: #{multi_dilate_local_attention.1} parent=0 // loop_pre_header
    _
  $region3: #{multi_dilate_local_attention.1} parent=0 // loop_header
    %s12 = sphi 0, %s16
    %p13 = scmp.ge.s32.totalorder %s12, 4
    %s22 = sphi 0, %s24
    %s25 = sphi 0, %s22
    %s26 = sphi 0, %s25
    %s42 = sphi 0, %s26
    %s46 = sphi 0, %s46
    %s48 = sphi 0, %s46
    %s49 = sphi 0, %s48
    %s63 = sphi 0, %s49
    %s67 = sphi 0, %s67
    %s69 = sphi 0, %s67
    %s70 = sphi 0, %s69
    %s84 = sphi 0, %s70
    %s88 = sphi 0, %s88
    %s90 = sphi 0, %s88
    %s91 = sphi 0, %s90
    %s105 = sphi 0, %s91
    %s109 = sphi 0, %s109
    %s111 = sphi 0, %s109
    %s112 = sphi 0, %s111
    %s126 = sphi 0, %s112
    %s130 = sphi 0, %s130
    %s132 = sphi 0, %s130
    %s133 = sphi 0, %s132
    %s147 = sphi 0, %s133
    %s153 = sphi 0, %s155
    %s156 = sphi 0, %s153
    %s157 = sphi 0, %s156
    %s173 = sphi 0, %s157
  $region4: #{multi_dilate_local_attention.1} parent=0 // loop_header_branch
    %15 = sbr.rel (%p13) target = $region8
  $region5: #{multi_dilate_local_attention.1} parent=0 // loop_body
    %s17 = ssub.s32 %s12, 1
    %s18 = ssub.s32 %s12, 2
    %s19 = sadd.s32 %s12, 1
    %s20 = ssub.s32 %s12, %s19
    %p21 = scmp.eq.s32.totalorder %s20, 0
    %s23 = sadd.s32 %s22, 1
    %s24 = scalar_select %p21, %s22, %s23
    %p27 = pneg %p21
    %p28 = scmp.eq.s32.totalorder %s12, 1
    %p29 = por %p27, %p28
    %p30 = scmp.ne.s32.totalorder %s22, %s25
    %p31 = scmp.eq.s32.totalorder %s12, 0
    %p32 = por %p30, %p31
    %p33 = scmp.ne.s32.totalorder %s22, %s25
    %p34 = scmp.eq.s32.totalorder %s17, 1
    %p35 = por %p33, %p34
    %p36 = scmp.ne.s32.totalorder %s25, %s26
    %p37 = scmp.eq.s32.totalorder %s17, 0
    %p38 = por %p36, %p37
    %p39 = scmp.ne.s32.totalorder %s25, %s26
    %p40 = scmp.eq.s32.totalorder %s18, 1
    %p41 = por %p39, %p40
    %p43 = scmp.ne.s32.totalorder %s26, %s42
    %p44 = scmp.eq.s32.totalorder %s18, 0
    %p45 = por %p43, %p44
    %s47 = sadd.s32 %s46, 1
    %p50 = scmp.eq.s32.totalorder %s12, 1
    %p51 = scmp.ne.s32.totalorder %s46, %s48
    %p52 = scmp.eq.s32.totalorder %s12, 0
    %p53 = por %p51, %p52
    %p54 = scmp.ne.s32.totalorder %s46, %s48
    %p55 = scmp.eq.s32.totalorder %s17, 1
    %p56 = por %p54, %p55
    %p57 = scmp.ne.s32.totalorder %s48, %s49
    %p58 = scmp.eq.s32.totalorder %s17, 0
    %p59 = por %p57, %p58
    %p60 = scmp.ne.s32.totalorder %s48, %s49
    %p61 = scmp.eq.s32.totalorder %s18, 1
    %p62 = por %p60, %p61
    %p64 = scmp.ne.s32.totalorder %s49, %s63
    %p65 = scmp.eq.s32.totalorder %s18, 0
    %p66 = por %p64, %p65
    %s68 = sadd.s32 %s67, 1
    %p71 = scmp.eq.s32.totalorder %s12, 1
    %p72 = scmp.ne.s32.totalorder %s67, %s69
    %p73 = scmp.eq.s32.totalorder %s12, 0
    %p74 = por %p72, %p73
    %p75 = scmp.ne.s32.totalorder %s67, %s69
    %p76 = scmp.eq.s32.totalorder %s17, 1
    %p77 = por %p75, %p76
    %p78 = scmp.ne.s32.totalorder %s69, %s70
    %p79 = scmp.eq.s32.totalorder %s17, 0
    %p80 = por %p78, %p79
    %p81 = scmp.ne.s32.totalorder %s69, %s70
    %p82 = scmp.eq.s32.totalorder %s18, 1
    %p83 = por %p81, %p82
    %p85 = scmp.ne.s32.totalorder %s70, %s84
    %p86 = scmp.eq.s32.totalorder %s18, 0
    %p87 = por %p85, %p86
    %s89 = sadd.s32 %s88, 1
    %p92 = scmp.eq.s32.totalorder %s12, 1
    %p93 = scmp.ne.s32.totalorder %s88, %s90
    %p94 = scmp.eq.s32.totalorder %s12, 0
    %p95 = por %p93, %p94
    %p96 = scmp.ne.s32.totalorder %s88, %s90
    %p97 = scmp.eq.s32.totalorder %s17, 1
    %p98 = por %p96, %p97
    %p99 = scmp.ne.s32.totalorder %s90, %s91
    %p100 = scmp.eq.s32.totalorder %s17, 0
    %p101 = por %p99, %p100
    %p102 = scmp.ne.s32.totalorder %s90, %s91
    %p103 = scmp.eq.s32.totalorder %s18, 1
    %p104 = por %p102, %p103
    %p106 = scmp.ne.s32.totalorder %s91, %s105
    %p107 = scmp.eq.s32.totalorder %s18, 0
    %p108 = por %p106, %p107
    %s110 = sadd.s32 %s109, 1
    %p113 = scmp.eq.s32.totalorder %s12, 1
    %p114 = scmp.ne.s32.totalorder %s109, %s111
    %p115 = scmp.eq.s32.totalorder %s12, 0
    %p116 = por %p114, %p115
    %p117 = scmp.ne.s32.totalorder %s109, %s111
    %p118 = scmp.eq.s32.totalorder %s17, 1
    %p119 = por %p117, %p118
    %p120 = scmp.ne.s32.totalorder %s111, %s112
    %p121 = scmp.eq.s32.totalorder %s17, 0
    %p122 = por %p120, %p121
    %p123 = scmp.ne.s32.totalorder %s111, %s112
    %p124 = scmp.eq.s32.totalorder %s18, 1
    %p125 = por %p123, %p124
    %p127 = scmp.ne.s32.totalorder %s112, %s126
    %p128 = scmp.eq.s32.totalorder %s18, 0
    %p129 = por %p127, %p128
    %s131 = sadd.s32 %s130, 1
    %p134 = scmp.eq.s32.totalorder %s12, 1
    %p135 = scmp.ne.s32.totalorder %s130, %s132
    %p136 = scmp.eq.s32.totalorder %s12, 0
    %p137 = por %p135, %p136
    %p138 = scmp.ne.s32.totalorder %s130, %s132
    %p139 = scmp.eq.s32.totalorder %s17, 1
    %p140 = por %p138, %p139
    %p141 = scmp.ne.s32.totalorder %s132, %s133
    %p142 = scmp.eq.s32.totalorder %s17, 0
    %p143 = por %p141, %p142
    %p144 = scmp.ne.s32.totalorder %s132, %s133
    %p145 = scmp.eq.s32.totalorder %s18, 1
    %p146 = por %p144, %p145
    %p148 = scmp.ne.s32.totalorder %s133, %s147
    %p149 = scmp.eq.s32.totalorder %s18, 0
    %p150 = por %p148, %p149
    %s151 = ssub.s32 %s12, %s19
    %p152 = scmp.eq.s32.totalorder %s151, 0
    %s154 = sadd.s32 %s153, 1
    %s155 = scalar_select %p152, %s153, %s154
    %p158 = pneg %p152
    %p159 = scmp.eq.s32.totalorder %s12, 1
    %p160 = por %p158, %p159
    %p161 = scmp.ne.s32.totalorder %s153, %s156
    %p162 = scmp.eq.s32.totalorder %s12, 0
    %p163 = por %p161, %p162
    %p164 = scmp.ne.s32.totalorder %s153, %s156
    %p165 = scmp.eq.s32.totalorder %s17, 1
    %p166 = por %p164, %p165
    %p167 = scmp.ne.s32.totalorder %s156, %s157
    %p168 = scmp.eq.s32.totalorder %s17, 0
    %p169 = por %p167, %p168
    %p170 = scmp.ne.s32.totalorder %s156, %s157
    %p171 = scmp.eq.s32.totalorder %s18, 1
    %p172 = por %p170, %p171
    %p174 = scmp.ne.s32.totalorder %s157, %s173
    %p175 = scmp.eq.s32.totalorder %s18, 0
    %p176 = por %p174, %p175
    %p177 = scmp.le.s32.totalorder 1, %s12
    %p178 = scmp.lt.s32.totalorder %s12, 3
    %p179 = pnand %p177, %p178
    %p180 = pneg %p179
    // Predicated region
    $region9: #{multi_dilate_local_attention.1} parent=5 // pred_check
      _
    $region10: #{multi_dilate_local_attention.1} parent=5 // pred_check_branch
      %182 = sbr.rel (%p179) target = $region12
    $region11: #{multi_dilate_local_attention.1} parent=5 // pred_region
      %s183 = ssub.s32 %s12, 1
      // Predicated region
      $region13: #{multi_dilate_local_attention.1} parent=11 // pred_check
        %p184 = pneg %p59
      $region14: #{multi_dilate_local_attention.1} parent=11 // pred_check_branch
        %186 = sbr.rel (%p184) target = $region16
      $region15: #{multi_dilate_local_attention.1} parent=11 // pred_region
        _
      $region16: #{multi_dilate_local_attention.1} parent=11 // pred_fallthru
        _
      // Predicated region
      $region17: #{multi_dilate_local_attention.1} parent=11 // pred_check
        %p187 = pneg %p80
      $region18: #{multi_dilate_local_attention.1} parent=11 // pred_check_branch
        %189 = sbr.rel (%p187) target = $region20
      $region19: #{multi_dilate_local_attention.1} parent=11 // pred_region
        _
      $region20: #{multi_dilate_local_attention.1} parent=11 // pred_fallthru
        _
      // Predicated region
      $region21: #{multi_dilate_local_attention.1} parent=11 // pred_check
        %p190 = pneg %p101
      $region22: #{multi_dilate_local_attention.1} parent=11 // pred_check_branch
        %192 = sbr.rel (%p190) target = $region24
      $region23: #{multi_dilate_local_attention.1} parent=11 // pred_region
        _
      $region24: #{multi_dilate_local_attention.1} parent=11 // pred_fallthru
        _
      // Predicated region
      $region25: #{multi_dilate_local_attention.1} parent=11 // pred_check
        %p193 = pneg %p122
      $region26: #{multi_dilate_local_attention.1} parent=11 // pred_check_branch
        %195 = sbr.rel (%p193) target = $region28
      $region27: #{multi_dilate_local_attention.1} parent=11 // pred_region
        _
      $region28: #{multi_dilate_local_attention.1} parent=11 // pred_fallthru
        _
      // Predicated region
      $region29: #{multi_dilate_local_attention.1} parent=11 // pred_check
        %p196 = pneg %p143
      $region30: #{multi_dilate_local_attention.1} parent=11 // pred_check_branch
        %198 = sbr.rel (%p196) target = $region32
      $region31: #{multi_dilate_local_attention.1} parent=11 // pred_region
        _
      $region32: #{multi_dilate_local_attention.1} parent=11 // pred_fallthru
        _
    $region12: #{multi_dilate_local_attention.1} parent=5 // pred_fallthru
      _
    %p199 = scmp.lt.s32.totalorder %s12, 2
    // Predicated region
    $region33: #{multi_dilate_local_attention.1} parent=5 // pred_check
      %p200 = pneg %p199
    $region34: #{multi_dilate_local_attention.1} parent=5 // pred_check_branch
      %202 = sbr.rel (%p200) target = $region36
    $region35: #{multi_dilate_local_attention.1} parent=5 // pred_region
      // Predicated region
      $region37: #{multi_dilate_local_attention.1} parent=35 // pred_check
        %p203 = pneg %p32
      $region38: #{multi_dilate_local_attention.1} parent=35 // pred_check_branch
        %205 = sbr.rel (%p203) target = $region40
      $region39: #{multi_dilate_local_attention.1} parent=35 // pred_region
        %p206 = scmp.lt.s32.totalorder %s12, 1
        %s207 = scalar_select %p206, %s12, 1
        %s208 = smul.addr %s207, 16
        %s209 = smul.addr %s208, 8
        %s210 = scalar_lea.vmem %s0, %s209
      $region40: #{multi_dilate_local_attention.1} parent=35 // pred_fallthru
        _
    $region36: #{multi_dilate_local_attention.1} parent=5 // pred_fallthru
      _
    %p211 = scmp.le.s32.totalorder 1, %s12
    %p212 = scmp.lt.s32.totalorder %s12, 3
    %p213 = pnand %p211, %p212
    %p214 = pneg %p213
    // Predicated region
    $region41: #{multi_dilate_local_attention.1} parent=5 // pred_check
      _
    $region42: #{multi_dilate_local_attention.1} parent=5 // pred_check_branch
      %216 = sbr.rel (%p213) target = $region44
    $region43: #{multi_dilate_local_attention.1} parent=5 // pred_region
      %s217 = ssub.s32 %s12, 1
      %p218 = scmp.lt.s32.totalorder %s17, 1
      %s219 = scalar_select %p218, %s17, 1
      %s220 = smul.addr %s219, 16
      %s221 = smul.addr %s220, 8
      %s222 = scalar_lea.vmem %s0, %s221
      %p223 = pneg %p38
      %p224 = pneg %p35
      %p225 = pneg %p59
      %p226 = pneg %p56
      %p227 = pneg %p80
      %p228 = pneg %p77
      %p229 = pneg %p101
      %p230 = pneg %p98
      %p231 = pneg %p122
      %p232 = pneg %p119
      %p233 = pneg %p143
      %p234 = pneg %p140
      %p235 = pneg %p169
      %p236 = pneg %p166
      %p237 = scmp.lt.s32.totalorder %s17, 1
      %s238 = scalar_select %p237, %s17, 1
      %s239 = smul.addr %s238, 16
      %s240 = smul.addr %s239, 8
      %s241 = scalar_lea.vmem %s6, %s240
      %p242 = scmp.lt.s32.totalorder %s17, 1
      %s243 = scalar_select %p242, %s17, 1
      %s244 = smul.addr %s243, 16
      %s245 = smul.addr %s244, 8
      %s246 = scalar_lea.vmem %s0, %s245
      %p247 = scmp.lt.s32.totalorder %s17, 1
      %s248 = scalar_select %p247, %s17, 1
      %s249 = smul.addr %s248, 16
      %s250 = smul.addr %s249, 8
      %s251 = scalar_lea.vmem %s6, %s250
      %v252 = vld [vmem:[%s246] sm:$0xff]
      %v253 = vld [vmem:[%s246 + $0x8] sm:$0xff]
      %v254 = vld [vmem:[%s246 + $0x10] sm:$0xff]
      %v255 = vld [vmem:[%s246 + $0x18] sm:$0xff]
      %v256 = vld [vmem:[%s246 + $0x20] sm:$0xff]
      %v257 = vld [vmem:[%s246 + $0x28] sm:$0xff]
      %v258 = vld [vmem:[%s246 + $0x30] sm:$0xff]
      %v259 = vld [vmem:[%s246 + $0x38] sm:$0xff]
      %v260 = vld [vmem:[%s246 + $0x40] sm:$0xff]
      %v261 = vld [vmem:[%s246 + $0x48] sm:$0xff]
      %v262 = vld [vmem:[%s246 + $0x50] sm:$0xff]
      %v263 = vld [vmem:[%s246 + $0x58] sm:$0xff]
      %v264 = vld [vmem:[%s246 + $0x60] sm:$0xff]
      %v265 = vld [vmem:[%s246 + $0x68] sm:$0xff]
      %v266 = vld [vmem:[%s246 + $0x70] sm:$0xff]
      %v267 = vld [vmem:[%s246 + $0x78] sm:$0xff]
      %v268 = vld [vmem:[%s1] sm:$0xff]
      %v269 = vld [vmem:[%s1 + $0x8] sm:$0xff]
      %v270 = vld [vmem:[%s1 + $0x10] sm:$0xff]
      %v271 = vld [vmem:[%s1 + $0x18] sm:$0xff]
      %v272 = vld [vmem:[%s1 + $0x20] sm:$0xff]
      %v273 = vld [vmem:[%s1 + $0x28] sm:$0xff]
      %v274 = vld [vmem:[%s1 + $0x30] sm:$0xff]
      %v275 = vld [vmem:[%s1 + $0x38] sm:$0xff]
      %v276 = vld [vmem:[%s1 + $0x40] sm:$0xff]
      %v277 = vld [vmem:[%s1 + $0x48] sm:$0xff]
      %v278 = vld [vmem:[%s1 + $0x50] sm:$0xff]
      %v279 = vld [vmem:[%s1 + $0x58] sm:$0xff]
      %vm280 = vcmask 261120
      %v282 = vsel %vm280, %v268, 0
      %v285 = vsel %vm280, %v269, 0
      %v288 = vsel %vm280, %v270, 0
      %v291 = vsel %vm280, %v271, 0
      %v294 = vsel %vm280, %v272, 0
      %v297 = vsel %vm280, %v273, 0
      %v300 = vsel %vm280, %v274, 0
      %v303 = vsel %vm280, %v275, 0
      %v306 = vsel %vm280, %v276, 0
      %v309 = vsel %vm280, %v277, 0
      %v312 = vsel %vm280, %v278, 0
      %v315 = vsel %vm280, %v279, 0
      %317 = vmatprep.subr.mxu0 %v253
      %318 = vmatpush1.msra.mxu0 %v252
      %319 = vmatprep.subr.mxu0 %v257
      %320 = vmatpush1.msra.mxu0 %v256
      %321 = vmatprep.subr.mxu0 %v261
      %322 = vmatpush1.msra.mxu0 %v260
      %323 = vmatprep.subr.mxu0 %v265
      %324 = vmatpush1.msra.mxu0 %v264
      %325 = vmatprep.subr.mxu0 0.0
      %326 = vmatpush1.msra.mxu0 0.0
      %327 = vmatprep.subr.mxu0 0.0
      %328 = vmatpush1.msra.mxu0 0.0
      %329 = vmatprep.subr.mxu0 0.0
      %330 = vmatpush1.msra.mxu0 0.0
      %331 = vmatprep.subr.mxu0 0.0
      %332 = vmatpush1.msra.mxu0 0.0
      %333 = vmatprep.subr.mxu0 0.0
      %334 = vmatpush1.msra.mxu0 0.0
      %335 = vmatprep.subr.mxu0 0.0
      %336 = vmatpush1.msra.mxu0 0.0
      %337 = vmatprep.subr.mxu0 0.0
      %338 = vmatpush1.msra.mxu0 0.0
      %339 = vmatprep.subr.mxu0 0.0
      %340 = vmatpush1.msra.mxu0 0.0
      %341 = vmatprep.subr.mxu0 0.0
      %342 = vmatpush1.msra.mxu0 0.0
      %343 = vmatprep.subr.mxu0 0.0
      %344 = vmatpush1.msra.mxu0 0.0
      %345 = vmatprep.subr.mxu0 0.0
      %346 = vmatpush1.msra.mxu0 0.0
      %347 = vmatprep.subr.mxu0 0.0
      %348 = vmatpush1.msra.mxu0 0.0
      %349 = vmatprep.subr.mxu0 0.0
      %350 = vmatpush1.msra.mxu0 0.0
      %351 = vmatprep.subr.mxu0 0.0
      %352 = vmatpush1.msra.mxu0 0.0
      %353 = vmatprep.subr.mxu0 0.0
      %354 = vmatpush1.msra.mxu0 0.0
      %355 = vmatprep.subr.mxu0 0.0
      %356 = vmatpush1.msra.mxu0 0.0
      %357 = vmatprep.subr.mxu0 0.0
      %358 = vmatpush1.msra.mxu0 0.0
      %359 = vmatprep.subr.mxu0 0.0
      %360 = vmatpush1.msra.mxu0 0.0
      %361 = vmatprep.subr.mxu0 0.0
      %362 = vmatpush1.msra.mxu0 0.0
      %363 = vmatprep.subr.mxu0 0.0
      %364 = vmatpush1.msra.mxu0 0.0
      %365 = vmatprep.subr.mxu0 0.0
      %366 = vmatpush1.msra.mxu0 0.0
      %367 = vmatprep.subr.mxu0 0.0
      %368 = vmatpush1.msra.mxu0 0.0
      %369 = vmatprep.subr.mxu0 0.0
      %370 = vmatpush1.msra.mxu0 0.0
      %371 = vmatprep.subr.mxu0 0.0
      %372 = vmatpush1.msra.mxu0 0.0
      %373 = vmatprep.subr.mxu0 0.0
      %374 = vmatpush1.msra.mxu0 0.0
      %375 = vmatprep.subr.mxu0 0.0
      %376 = vmatpush1.msra.mxu0 0.0
      %377 = vmatprep.subr.mxu0 0.0
      %378 = vmatpush1.msra.mxu0 0.0
      %379 = vmatprep.subr.mxu0 0.0
      %380 = vmatpush1.msra.mxu0 0.0
      %381 = vmatprep.mubr.f32.mxu0 0.0
      %382 = vmatmul.mubr.f32.gmra.mrb[0].mxu0 %v282
      %v383 = vpop.f32.mrb[0].mxu0
      %v384 = vadd.f32 0.0, %v383
      %v385 = vpop.f32.mrb[0].mxu0
      %v386 = vadd.f32 0.0, %v385
      %387 = vmatprep.mubr.f32.mxu0 0.0
      %388 = vmatmul.mubr.f32.gmra.mrb[0].mxu0 %v285
      %v389 = vpop.f32.mrb[0].mxu0
      %v390 = vadd.f32 0.0, %v389
      %v391 = vpop.f32.mrb[0].mxu0
      %v392 = vadd.f32 0.0, %v391
      %393 = vmatprep.mubr.f32.mxu0 0.0
      %394 = vmatmul.mubr.f32.gmra.mrb[0].mxu0 %v288
      %v395 = vpop.f32.mrb[0].mxu0
      %v396 = vadd.f32 0.0, %v395
      %v397 = vpop.f32.mrb[0].mxu0
      %v398 = vadd.f32 0.0, %v397
      %399 = vmatprep.mubr.f32.mxu0 0.0
      %400 = vmatmul.mubr.f32.gmra.mrb[0].mxu0 %v291
      %v401 = vpop.f32.mrb[0].mxu0
      %v402 = vadd.f32 0.0, %v401
      %v403 = vpop.f32.mrb[0].mxu0
      %v404 = vadd.f32 0.0, %v403
      %405 = vmatprep.mubr.f32.mxu0 0.0
      %406 = vmatmul.mubr.f32.gmra.mrb[0].mxu0 %v294
      %v407 = vpop.f32.mrb[0].mxu0
      %v408 = vadd.f32 0.0, %v407
      %v409 = vpop.f32.mrb[0].mxu0
      %v410 = vadd.f32 0.0, %v409
      %411 = vmatprep.mubr.f32.mxu0 0.0
      %412 = vmatmul.mubr.f32.gmra.mrb[0].mxu0 %v297
      %v413 = vpop.f32.mrb[0].mxu0
      %v414 = vadd.f32 0.0, %v413
      %v415 = vpop.f32.mrb[0].mxu0
      %v416 = vadd.f32 0.0, %v415
      %417 = vmatprep.mubr.f32.mxu0 0.0
      %418 = vmatmul.mubr.f32.gmra.mrb[0].mxu0 %v300
      %v419 = vpop.f32.mrb[0].mxu0
      %v420 = vadd.f32 0.0, %v419
      %v421 = vpop.f32.mrb[0].mxu0
      %v422 = vadd.f32 0.0, %v421
      %423 = vmatprep.mubr.f32.mxu0 0.0
      %424 = vmatmul.mubr.f32.gmra.mrb[0].mxu0 %v303
      %v425 = vpop.f32.mrb[0].mxu0
      %v426 = vadd.f32 0.0, %v425
      %v427 = vpop.f32.mrb[0].mxu0
      %v428 = vadd.f32 0.0, %v427
      %429 = vmatprep.mubr.f32.mxu0 0.0
      %430 = vmatmul.mubr.f32.gmra.mrb[0].mxu0 %v306
      %v431 = vpop.f32.mrb[0].mxu0
      %v432 = vadd.f32 0.0, %v431
      %v433 = vpop.f32.mrb[0].mxu0
      %v434 = vadd.f32 0.0, %v433
      %435 = vmatprep.mubr.f32.mxu0 0.0
      %436 = vmatmul.mubr.f32.gmra.mrb[0].mxu0 %v309
      %v437 = vpop.f32.mrb[0].mxu0
      %v438 = vadd.f32 0.0, %v437
      %v439 = vpop.f32.mrb[0].mxu0
      %v440 = vadd.f32 0.0, %v439
      %441 = vmatprep.mubr.f32.mxu0 0.0
      %442 = vmatmul.mubr.f32.gmra.mrb[0].mxu0 %v312
      %v443 = vpop.f32.mrb[0].mxu0
      %v444 = vadd.f32 0.0, %v443
      %v445 = vpop.f32.mrb[0].mxu0
      %v446 = vadd.f32 0.0, %v445
      %447 = vmatprep.mubr.f32.mxu0 0.0
      %448 = vmatmul.mubr.f32.gmra.mrb[0].mxu0 %v315
      %v449 = vpop.f32.mrb[0].mxu0
      %v450 = vadd.f32 0.0, %v449
      %v451 = vpop.f32.mrb[0].mxu0
      %v452 = vadd.f32 0.0, %v451
      %453 = vdwg.mxu0
      %454 = vmatprep.subr.mxu0 %v255
      %455 = vmatpush1.msra.mxu0 %v254
      %456 = vmatprep.subr.mxu0 %v259
      %457 = vmatpush1.msra.mxu0 %v258
      %458 = vmatprep.subr.mxu0 %v263
      %459 = vmatpush1.msra.mxu0 %v262
      %460 = vmatprep.subr.mxu0 %v267
      %461 = vmatpush1.msra.mxu0 %v266
      %462 = vmatprep.subr.mxu0 0.0
      %463 = vmatpush1.msra.mxu0 0.0
      %464 = vmatprep.subr.mxu0 0.0
      %465 = vmatpush1.msra.mxu0 0.0
      %466 = vmatprep.subr.mxu0 0.0
      %467 = vmatpush1.msra.mxu0 0.0
      %468 = vmatprep.subr.mxu0 0.0
      %469 = vmatpush1.msra.mxu0 0.0
      %470 = vmatprep.subr.mxu0 0.0
      %471 = vmatpush1.msra.mxu0 0.0
      %472 = vmatprep.subr.mxu0 0.0
      %473 = vmatpush1.msra.mxu0 0.0
      %474 = vmatprep.subr.mxu0 0.0
      %475 = vmatpush1.msra.mxu0 0.0
      %476 = vmatprep.subr.mxu0 0.0
      %477 = vmatpush1.msra.mxu0 0.0
      %478 = vmatprep.subr.mxu0 0.0
      %479 = vmatpush1.msra.mxu0 0.0
      %480 = vmatprep.subr.mxu0 0.0
      %481 = vmatpush1.msra.mxu0 0.0
      %482 = vmatprep.subr.mxu0 0.0
      %483 = vmatpush1.msra.mxu0 0.0
      %484 = vmatprep.subr.mxu0 0.0
      %485 = vmatpush1.msra.mxu0 0.0
      %486 = vmatprep.subr.mxu0 0.0
      %487 = vmatpush1.msra.mxu0 0.0
      %488 = vmatprep.subr.mxu0 0.0
      %489 = vmatpush1.msra.mxu0 0.0
      %490 = vmatprep.subr.mxu0 0.0
      %491 = vmatpush1.msra.mxu0 0.0
      %492 = vmatprep.subr.mxu0 0.0
      %493 = vmatpush1.msra.mxu0 0.0
      %494 = vmatprep.subr.mxu0 0.0
      %495 = vmatpush1.msra.mxu0 0.0
      %496 = vmatprep.subr.mxu0 0.0
      %497 = vmatpush1.msra.mxu0 0.0
      %498 = vmatprep.subr.mxu0 0.0
      %499 = vmatpush1.msra.mxu0 0.0
      %500 = vmatprep.subr.mxu0 0.0
      %501 = vmatpush1.msra.mxu0 0.0
      %502 = vmatprep.subr.mxu0 0.0
      %503 = vmatpush1.msra.mxu0 0.0
      %504 = vmatprep.subr.mxu0 0.0
      %505 = vmatpush1.msra.mxu0 0.0
      %506 = vmatprep.subr.mxu0 0.0
      %507 = vmatpush1.msra.mxu0 0.0
      %508 = vmatprep.subr.mxu0 0.0
      %509 = vmatpush1.msra.mxu0 0.0
      %510 = vmatprep.subr.mxu0 0.0
      %511 = vmatpush1.msra.mxu0 0.0
      %512 = vmatprep.subr.mxu0 0.0
      %513 = vmatpush1.msra.mxu0 0.0
      %514 = vmatprep.subr.mxu0 0.0
      %515 = vmatpush1.msra.mxu0 0.0
      %516 = vmatprep.subr.mxu0 0.0
      %517 = vmatpush1.msra.mxu0 0.0
      %518 = vmatprep.mubr.f32.mxu0 0.0
      %519 = vmatmul.mubr.f32.gmra.mrb[0].mxu0 %v282
      %v520 = vpop.f32.mrb[0].mxu0
      %v521 = vadd.f32 0.0, %v520
      %v522 = vpop.f32.mrb[0].mxu0
      %v523 = vadd.f32 0.0, %v522
      %524 = vmatprep.mubr.f32.mxu0 0.0
      %525 = vmatmul.mubr.f32.gmra.mrb[0].mxu0 %v285
      %v526 = vpop.f32.mrb[0].mxu0
      %v527 = vadd.f32 0.0, %v526
      %v528 = vpop.f32.mrb[0].mxu0
      %v529 = vadd.f32 0.0, %v528
      %530 = vmatprep.mubr.f32.mxu0 0.0
      %531 = vmatmul.mubr.f32.gmra.mrb[0].mxu0 %v288
      %v532 = vpop.f32.mrb[0].mxu0
      %v533 = vadd.f32 0.0, %v532
      %v534 = vpop.f32.mrb[0].mxu0
      %v535 = vadd.f32 0.0, %v534
      %536 = vmatprep.mubr.f32.mxu0 0.0
      %537 = vmatmul.mubr.f32.gmra.mrb[0].mxu0 %v291
      %v538 = vpop.f32.mrb[0].mxu0
      %v539 = vadd.f32 0.0, %v538
      %v540 = vpop.f32.mrb[0].mxu0
      %v541 = vadd.f32 0.0, %v540
      %542 = vmatprep.mubr.f32.mxu0 0.0
      %543 = vmatmul.mubr.f32.gmra.mrb[0].mxu0 %v294
      %v544 = vpop.f32.mrb[0].mxu0
      %v545 = vadd.f32 0.0, %v544
      %v546 = vpop.f32.mrb[0].mxu0
      %v547 = vadd.f32 0.0, %v546
      %548 = vmatprep.mubr.f32.mxu0 0.0
      %549 = vmatmul.mubr.f32.gmra.mrb[0].mxu0 %v297
      %v550 = vpop.f32.mrb[0].mxu0
      %v551 = vadd.f32 0.0, %v550
      %v552 = vpop.f32.mrb[0].mxu0
      %v553 = vadd.f32 0.0, %v552
      %554 = vmatprep.mubr.f32.mxu0 0.0
      %555 = vmatmul.mubr.f32.gmra.mrb[0].mxu0 %v300
      %v556 = vpop.f32.mrb[0].mxu0
      %v557 = vadd.f32 0.0, %v556
      %v558 = vpop.f32.mrb[0].mxu0
      %v559 = vadd.f32 0.0, %v558
      %560 = vmatprep.mubr.f32.mxu0 0.0
      %561 = vmatmul.mubr.f32.gmra.mrb[0].mxu0 %v303
      %v562 = vpop.f32.mrb[0].mxu0
      %v563 = vadd.f32 0.0, %v562
      %v564 = vpop.f32.mrb[0].mxu0
      %v565 = vadd.f32 0.0, %v564
      %566 = vmatprep.mubr.f32.mxu0 0.0
      %567 = vmatmul.mubr.f32.gmra.mrb[0].mxu0 %v306
      %v568 = vpop.f32.mrb[0].mxu0
      %v569 = vadd.f32 0.0, %v568
      %v570 = vpop.f32.mrb[0].mxu0
      %v571 = vadd.f32 0.0, %v570
      %572 = vmatprep.mubr.f32.mxu0 0.0
      %573 = vmatmul.mubr.f32.gmra.mrb[0].mxu0 %v309
      %v574 = vpop.f32.mrb[0].mxu0
      %v575 = vadd.f32 0.0, %v574
      %v576 = vpop.f32.mrb[0].mxu0
      %v577 = vadd.f32 0.0, %v576
      %578 = vmatprep.mubr.f32.mxu0 0.0
      %579 = vmatmul.mubr.f32.gmra.mrb[0].mxu0 %v312
      %v580 = vpop.f32.mrb[0].mxu0
      %v581 = vadd.f32 0.0, %v580
      %v582 = vpop.f32.mrb[0].mxu0
      %v583 = vadd.f32 0.0, %v582
      %584 = vmatprep.mubr.f32.mxu0 0.0
      %585 = vmatmul.mubr.f32.gmra.mrb[0].mxu0 %v315
      %v586 = vpop.f32.mrb[0].mxu0
      %v587 = vadd.f32 0.0, %v586
      %v588 = vpop.f32.mrb[0].mxu0
      %v589 = vadd.f32 0.0, %v588
      %590 = vdwg.mxu0
      %v591 = vld [vmem:[%s4] sm:$0xff]
      %v592 = vld [vmem:[%s5] sm:$0xff]
      %v593 = vld [vmem:[%s5 + $0x8] sm:$0xff]
      %v594 = vld [vmem:[%s5 + $0x10] sm:$0xff]
      %v595 = vld [vmem:[%s5 + $0x18] sm:$0xff]
      %v596 = vmul.f32 %v384, 0.5
      %v597 = vmul.f32 %v386, 0.5
      %v598 = vmul.f32 %v521, 0.5
      %v599 = vmul.f32 %v523, 0.5
      %v600 = vmul.f32 %v390, 0.5
      %v601 = vmul.f32 %v392, 0.5
      %v602 = vmul.f32 %v527, 0.5
      %v603 = vmul.f32 %v529, 0.5
      %v604 = vmul.f32 %v396, 0.5
      %v605 = vmul.f32 %v398, 0.5
      %v606 = vmul.f32 %v533, 0.5
      %v607 = vmul.f32 %v535, 0.5
      %v608 = vmul.f32 %v402, 0.5
      %v609 = vmul.f32 %v404, 0.5
      %v610 = vmul.f32 %v539, 0.5
      %v611 = vmul.f32 %v541, 0.5
      %612 = vrot.lane.b32.xlu0 %v408, 46
      %v613 = vpop.permute.xlu0 %612
      %614 = vrot.lane.b32.xlu0 %v414, 46
      %v615 = vpop.permute.xlu0 %614
      %616 = vrot.lane.b32.xlu0 %v432, 46
      %v617 = vpop.permute.xlu0 %616
      %618 = vrot.lane.b32.xlu0 %v438, 46
      %v619 = vpop.permute.xlu0 %618
      %620 = vrot.lane.b32.xlu0 %v410, 46
      %v621 = vpop.permute.xlu0 %620
      %622 = vrot.lane.b32.xlu0 %v416, 46
      %v623 = vpop.permute.xlu0 %622
      %624 = vrot.lane.b32.xlu0 %v434, 46
      %v625 = vpop.permute.xlu0 %624
      %626 = vrot.lane.b32.xlu0 %v440, 46
      %v627 = vpop.permute.xlu0 %626
      %628 = vrot.lane.b32.xlu0 %v545, 46
      %v629 = vpop.permute.xlu0 %628
      %630 = vrot.lane.b32.xlu0 %v551, 46
      %v631 = vpop.permute.xlu0 %630
      %632 = vrot.lane.b32.xlu0 %v569, 46
      %v633 = vpop.permute.xlu0 %632
      %634 = vrot.lane.b32.xlu0 %v575, 46
      %v635 = vpop.permute.xlu0 %634
      %636 = vrot.lane.b32.xlu0 %v547, 46
      %v637 = vpop.permute.xlu0 %636
      %638 = vrot.lane.b32.xlu0 %v553, 46
      %v639 = vpop.permute.xlu0 %638
      %640 = vrot.lane.b32.xlu0 %v571, 46
      %v641 = vpop.permute.xlu0 %640
      %642 = vrot.lane.b32.xlu0 %v577, 46
      %v643 = vpop.permute.xlu0 %642
      %v644 = vlaneseq
      %v645 = vand.u32 %v644, 127
      %vm646 = vcmp.lt.s32.totalorder %v645, 46
      %v647 = vsel %vm646, %v629, %v637
      %v648 = vsel %vm646, %v631, %v639
      %v649 = vsel %vm646, %v633, %v641
      %v650 = vsel %vm646, %v635, %v643
      %v651 = vsel %vm646, %v621, %v629
      %v652 = vsel %vm646, %v623, %v631
      %v653 = vsel %vm646, %v625, %v633
      %v654 = vsel %vm646, %v627, %v635
      %v655 = vsel %vm646, %v613, %v621
      %v656 = vsel %vm646, %v615, %v623
      %v657 = vsel %vm646, %v617, %v625
      %v658 = vsel %vm646, %v619, %v627
      %v659 = vsel %vm646, %v637, %v613
      %v660 = vsel %vm646, %v639, %v615
      %v661 = vsel %vm646, %v641, %v617
      %v662 = vsel %vm646, %v643, %v619
      %663 = vrot.lane.b32.xlu0 %v420, 69
      %v664 = vpop.permute.xlu0 %663
      %665 = vrot.lane.b32.xlu0 %v426, 69
      %v666 = vpop.permute.xlu0 %665
      %667 = vrot.lane.b32.xlu0 %v444, 69
      %v668 = vpop.permute.xlu0 %667
      %669 = vrot.lane.b32.xlu0 %v450, 69
      %v670 = vpop.permute.xlu0 %669
      %671 = vrot.lane.b32.xlu0 %v422, 69
      %v672 = vpop.permute.xlu0 %671
      %673 = vrot.lane.b32.xlu0 %v428, 69
      %v674 = vpop.permute.xlu0 %673
      %675 = vrot.lane.b32.xlu0 %v446, 69
      %v676 = vpop.permute.xlu0 %675
      %677 = vrot.lane.b32.xlu0 %v452, 69
      %v678 = vpop.permute.xlu0 %677
      %679 = vrot.lane.b32.xlu0 %v557, 69
      %v680 = vpop.permute.xlu0 %679
      %681 = vrot.lane.b32.xlu0 %v563, 69
      %v682 = vpop.permute.xlu0 %681
      %683 = vrot.lane.b32.xlu0 %v581, 69
      %v684 = vpop.permute.xlu0 %683
      %685 = vrot.lane.b32.xlu0 %v587, 69
      %v686 = vpop.permute.xlu0 %685
      %687 = vrot.lane.b32.xlu0 %v559, 69
      %v688 = vpop.permute.xlu0 %687
      %689 = vrot.lane.b32.xlu0 %v565, 69
      %v690 = vpop.permute.xlu0 %689
      %691 = vrot.lane.b32.xlu0 %v583, 69
      %v692 = vpop.permute.xlu0 %691
      %693 = vrot.lane.b32.xlu0 %v589, 69
      %v694 = vpop.permute.xlu0 %693
      %vm695 = vcmp.lt.s32.totalorder %v645, 69
      %v696 = vsel %vm695, %v680, %v688
      %v697 = vsel %vm695, %v682, %v690
      %v698 = vsel %vm695, %v684, %v692
      %v699 = vsel %vm695, %v686, %v694
      %v700 = vsel %vm695, %v672, %v680
      %v701 = vsel %vm695, %v674, %v682
      %v702 = vsel %vm695, %v676, %v684
      %v703 = vsel %vm695, %v678, %v686
      %v704 = vsel %vm695, %v664, %v672
      %v705 = vsel %vm695, %v666, %v674
      %v706 = vsel %vm695, %v668, %v676
      %v707 = vsel %vm695, %v670, %v678
      %v708 = vsel %vm695, %v688, %v664
      %v709 = vsel %vm695, %v690, %v666
      %v710 = vsel %vm695, %v692, %v668
      %v711 = vsel %vm695, %v694, %v670
      %v712 = vmul.f32 %v596, %v659
      %v713 = vmul.f32 %v597, %v655
      %v714 = vmul.f32 %v598, %v651
      %v715 = vmul.f32 %v599, %v647
      %v716 = vmul.f32 %v600, %v660
      %v717 = vmul.f32 %v601, %v656
      %v718 = vmul.f32 %v602, %v652
      %v719 = vmul.f32 %v603, %v648
      %v720 = vmul.f32 %v604, %v708
      %v721 = vmul.f32 %v605, %v704
      %v722 = vmul.f32 %v606, %v700
      %v723 = vmul.f32 %v607, %v696
      %v724 = vmul.f32 %v608, %v709
      %v725 = vmul.f32 %v609, %v705
      %v726 = vmul.f32 %v610, %v701
      %v727 = vmul.f32 %v611, %v697
      %v729 = vsel %vm280, %v591, 0
      %731 = vmatprep.subr.mxu0 %v713
      %732 = vmatpush1.msra.mxu0 %v712
      %733 = vmatprep.subr.mxu0 %v717
      %734 = vmatpush1.msra.mxu0 %v716
      %735 = vmatprep.subr.mxu0 %v721
      %736 = vmatpush1.msra.mxu0 %v720
      %737 = vmatprep.subr.mxu0 %v725
      %738 = vmatpush1.msra.mxu0 %v724
      %739 = vmatprep.subr.mxu0 0.0
      %740 = vmatpush1.msra.mxu0 0.0
      %741 = vmatprep.subr.mxu0 0.0
      %742 = vmatpush1.msra.mxu0 0.0
      %743 = vmatprep.subr.mxu0 0.0
      %744 = vmatpush1.msra.mxu0 0.0
      %745 = vmatprep.subr.mxu0 0.0
      %746 = vmatpush1.msra.mxu0 0.0
      %747 = vmatprep.subr.mxu0 0.0
      %748 = vmatpush1.msra.mxu0 0.0
      %749 = vmatprep.subr.mxu0 0.0
      %750 = vmatpush1.msra.mxu0 0.0
      %751 = vmatprep.subr.mxu0 0.0
      %752 = vmatpush1.msra.mxu0 0.0
      %753 = vmatprep.subr.mxu0 0.0
      %754 = vmatpush1.msra.mxu0 0.0
      %755 = vmatprep.subr.mxu0 0.0
      %756 = vmatpush1.msra.mxu0 0.0
      %757 = vmatprep.subr.mxu0 0.0
      %758 = vmatpush1.msra.mxu0 0.0
      %759 = vmatprep.subr.mxu0 0.0
      %760 = vmatpush1.msra.mxu0 0.0
      %761 = vmatprep.subr.mxu0 0.0
      %762 = vmatpush1.msra.mxu0 0.0
      %763 = vmatprep.subr.mxu0 0.0
      %764 = vmatpush1.msra.mxu0 0.0
      %765 = vmatprep.subr.mxu0 0.0
      %766 = vmatpush1.msra.mxu0 0.0
      %767 = vmatprep.subr.mxu0 0.0
      %768 = vmatpush1.msra.mxu0 0.0
      %769 = vmatprep.subr.mxu0 0.0
      %770 = vmatpush1.msra.mxu0 0.0
      %771 = vmatprep.subr.mxu0 0.0
      %772 = vmatpush1.msra.mxu0 0.0
      %773 = vmatprep.subr.mxu0 0.0
      %774 = vmatpush1.msra.mxu0 0.0
      %775 = vmatprep.subr.mxu0 0.0
      %776 = vmatpush1.msra.mxu0 0.0
      %777 = vmatprep.subr.mxu0 0.0
      %778 = vmatpush1.msra.mxu0 0.0
      %779 = vmatprep.subr.mxu0 0.0
      %780 = vmatpush1.msra.mxu0 0.0
      %781 = vmatprep.subr.mxu0 0.0
      %782 = vmatpush1.msra.mxu0 0.0
      %783 = vmatprep.subr.mxu0 0.0
      %784 = vmatpush1.msra.mxu0 0.0
      %785 = vmatprep.subr.mxu0 0.0
      %786 = vmatpush1.msra.mxu0 0.0
      %787 = vmatprep.subr.mxu0 0.0
      %788 = vmatpush1.msra.mxu0 0.0
      %789 = vmatprep.subr.mxu0 0.0
      %790 = vmatpush1.msra.mxu0 0.0
      %791 = vmatprep.subr.mxu0 0.0
      %792 = vmatpush1.msra.mxu0 0.0
      %793 = vmatprep.subr.mxu0 0.0
      %794 = vmatpush1.msra.mxu0 0.0
      %795 = vmatprep.mubr.f32.mxu0 0.0
      %796 = vmatmul.mubr.f32.gmra.mrb[0].mxu0 %v729
      %v797 = vpop.f32.mrb[0].mxu0
      %v798 = vadd.f32 0.0, %v797
      %v799 = vpop.f32.mrb[0].mxu0
      %v800 = vadd.f32 0.0, %v799
      %801 = vdwg.mxu0
      %802 = vmatprep.subr.mxu0 %v715
      %803 = vmatpush1.msra.mxu0 %v714
      %804 = vmatprep.subr.mxu0 %v719
      %805 = vmatpush1.msra.mxu0 %v718
      %806 = vmatprep.subr.mxu0 %v723
      %807 = vmatpush1.msra.mxu0 %v722
      %808 = vmatprep.subr.mxu0 %v727
      %809 = vmatpush1.msra.mxu0 %v726
      %810 = vmatprep.subr.mxu0 0.0
      %811 = vmatpush1.msra.mxu0 0.0
      %812 = vmatprep.subr.mxu0 0.0
      %813 = vmatpush1.msra.mxu0 0.0
      %814 = vmatprep.subr.mxu0 0.0
      %815 = vmatpush1.msra.mxu0 0.0
      %816 = vmatprep.subr.mxu0 0.0
      %817 = vmatpush1.msra.mxu0 0.0
      %818 = vmatprep.subr.mxu0 0.0
      %819 = vmatpush1.msra.mxu0 0.0
      %820 = vmatprep.subr.mxu0 0.0
      %821 = vmatpush1.msra.mxu0 0.0
      %822 = vmatprep.subr.mxu0 0.0
      %823 = vmatpush1.msra.mxu0 0.0
      %824 = vmatprep.subr.mxu0 0.0
      %825 = vmatpush1.msra.mxu0 0.0
      %826 = vmatprep.subr.mxu0 0.0
      %827 = vmatpush1.msra.mxu0 0.0
      %828 = vmatprep.subr.mxu0 0.0
      %829 = vmatpush1.msra.mxu0 0.0
      %830 = vmatprep.subr.mxu0 0.0
      %831 = vmatpush1.msra.mxu0 0.0
      %832 = vmatprep.subr.mxu0 0.0
      %833 = vmatpush1.msra.mxu0 0.0
      %834 = vmatprep.subr.mxu0 0.0
      %835 = vmatpush1.msra.mxu0 0.0
      %836 = vmatprep.subr.mxu0 0.0
      %837 = vmatpush1.msra.mxu0 0.0
      %838 = vmatprep.subr.mxu0 0.0
      %839 = vmatpush1.msra.mxu0 0.0
      %840 = vmatprep.subr.mxu0 0.0
      %841 = vmatpush1.msra.mxu0 0.0
      %842 = vmatprep.subr.mxu0 0.0
      %843 = vmatpush1.msra.mxu0 0.0
      %844 = vmatprep.subr.mxu0 0.0
      %845 = vmatpush1.msra.mxu0 0.0
      %846 = vmatprep.subr.mxu0 0.0
      %847 = vmatpush1.msra.mxu0 0.0
      %848 = vmatprep.subr.mxu0 0.0
      %849 = vmatpush1.msra.mxu0 0.0
      %850 = vmatprep.subr.mxu0 0.0
      %851 = vmatpush1.msra.mxu0 0.0
      %852 = vmatprep.subr.mxu0 0.0
      %853 = vmatpush1.msra.mxu0 0.0
      %854 = vmatprep.subr.mxu0 0.0
      %855 = vmatpush1.msra.mxu0 0.0
      %856 = vmatprep.subr.mxu0 0.0
      %857 = vmatpush1.msra.mxu0 0.0
      %858 = vmatprep.subr.mxu0 0.0
      %859 = vmatpush1.msra.mxu0 0.0
      %860 = vmatprep.subr.mxu0 0.0
      %861 = vmatpush1.msra.mxu0 0.0
      %862 = vmatprep.subr.mxu0 0.0
      %863 = vmatpush1.msra.mxu0 0.0
      %864 = vmatprep.subr.mxu0 0.0
      %865 = vmatpush1.msra.mxu0 0.0
      %866 = vmatprep.mubr.f32.mxu0 0.0
      %867 = vmatmul.mubr.f32.gmra.mrb[0].mxu0 %v729
      %v868 = vpop.f32.mrb[0].mxu0
      %v869 = vadd.f32 0.0, %v868
      %v870 = vpop.f32.mrb[0].mxu0
      %v871 = vadd.f32 0.0, %v870
      %872 = vdwg.mxu0
      %873 = vrot.lane.b32.xlu0 %v408, 44
      %v874 = vpop.permute.xlu0 %873
      %875 = vrot.lane.b32.xlu0 %v414, 44
      %v876 = vpop.permute.xlu0 %875
      %877 = vrot.lane.b32.xlu0 %v432, 44
      %v878 = vpop.permute.xlu0 %877
      %879 = vrot.lane.b32.xlu0 %v438, 44
      %v880 = vpop.permute.xlu0 %879
      %881 = vrot.lane.b32.xlu0 %v410, 44
      %v882 = vpop.permute.xlu0 %881
      %883 = vrot.lane.b32.xlu0 %v416, 44
      %v884 = vpop.permute.xlu0 %883
      %885 = vrot.lane.b32.xlu0 %v434, 44
      %v886 = vpop.permute.xlu0 %885
      %887 = vrot.lane.b32.xlu0 %v440, 44
      %v888 = vpop.permute.xlu0 %887
      %889 = vrot.lane.b32.xlu0 %v545, 44
      %v890 = vpop.permute.xlu0 %889
      %891 = vrot.lane.b32.xlu0 %v551, 44
      %v892 = vpop.permute.xlu0 %891
      %893 = vrot.lane.b32.xlu0 %v569, 44
      %v894 = vpop.permute.xlu0 %893
      %895 = vrot.lane.b32.xlu0 %v575, 44
      %v896 = vpop.permute.xlu0 %895
      %897 = vrot.lane.b32.xlu0 %v547, 44
      %v898 = vpop.permute.xlu0 %897
      %899 = vrot.lane.b32.xlu0 %v553, 44
      %v900 = vpop.permute.xlu0 %899
      %901 = vrot.lane.b32.xlu0 %v571, 44
      %v902 = vpop.permute.xlu0 %901
      %903 = vrot.lane.b32.xlu0 %v577, 44
      %v904 = vpop.permute.xlu0 %903
      %vm905 = vcmp.lt.s32.totalorder %v645, 44
      %v906 = vsel %vm905, %v890, %v898
      %v907 = vsel %vm905, %v892, %v900
      %v908 = vsel %vm905, %v894, %v902
      %v909 = vsel %vm905, %v896, %v904
      %v910 = vsel %vm905, %v882, %v890
      %v911 = vsel %vm905, %v884, %v892
      %v912 = vsel %vm905, %v886, %v894
      %v913 = vsel %vm905, %v888, %v896
      %v914 = vsel %vm905, %v874, %v882
      %v915 = vsel %vm905, %v876, %v884
      %v916 = vsel %vm905, %v878, %v886
      %v917 = vsel %vm905, %v880, %v888
      %v918 = vsel %vm905, %v898, %v874
      %v919 = vsel %vm905, %v900, %v876
      %v920 = vsel %vm905, %v902, %v878
      %v921 = vsel %vm905, %v904, %v880
      %922 = vrot.lane.b32.xlu0 %v420, 66
      %v923 = vpop.permute.xlu0 %922
      %924 = vrot.lane.b32.xlu0 %v426, 66
      %v925 = vpop.permute.xlu0 %924
      %926 = vrot.lane.b32.xlu0 %v444, 66
      %v927 = vpop.permute.xlu0 %926
      %928 = vrot.lane.b32.xlu0 %v450, 66
      %v929 = vpop.permute.xlu0 %928
      %930 = vrot.lane.b32.xlu0 %v422, 66
      %v931 = vpop.permute.xlu0 %930
      %932 = vrot.lane.b32.xlu0 %v428, 66
      %v933 = vpop.permute.xlu0 %932
      %934 = vrot.lane.b32.xlu0 %v446, 66
      %v935 = vpop.permute.xlu0 %934
      %936 = vrot.lane.b32.xlu0 %v452, 66
      %v937 = vpop.permute.xlu0 %936
      %938 = vrot.lane.b32.xlu0 %v557, 66
      %v939 = vpop.permute.xlu0 %938
      %940 = vrot.lane.b32.xlu0 %v563, 66
      %v941 = vpop.permute.xlu0 %940
      %942 = vrot.lane.b32.xlu0 %v581, 66
      %v943 = vpop.permute.xlu0 %942
      %944 = vrot.lane.b32.xlu0 %v587, 66
      %v945 = vpop.permute.xlu0 %944
      %946 = vrot.lane.b32.xlu0 %v559, 66
      %v947 = vpop.permute.xlu0 %946
      %948 = vrot.lane.b32.xlu0 %v565, 66
      %v949 = vpop.permute.xlu0 %948
      %950 = vrot.lane.b32.xlu0 %v583, 66
      %v951 = vpop.permute.xlu0 %950
      %952 = vrot.lane.b32.xlu0 %v589, 66
      %v953 = vpop.permute.xlu0 %952
      %vm954 = vcmp.lt.s32.totalorder %v645, 66
      %v955 = vsel %vm954, %v939, %v947
      %v956 = vsel %vm954, %v941, %v949
      %v957 = vsel %vm954, %v943, %v951
      %v958 = vsel %vm954, %v945, %v953
      %v959 = vsel %vm954, %v931, %v939
      %v960 = vsel %vm954, %v933, %v941
      %v961 = vsel %vm954, %v935, %v943
      %v962 = vsel %vm954, %v937, %v945
      %v963 = vsel %vm954, %v923, %v931
      %v964 = vsel %vm954, %v925, %v933
      %v965 = vsel %vm954, %v927, %v935
      %v966 = vsel %vm954, %v929, %v937
      %v967 = vsel %vm954, %v947, %v923
      %v968 = vsel %vm954, %v949, %v925
      %v969 = vsel %vm954, %v951, %v927
      %v970 = vsel %vm954, %v953, %v929
      %v971 = vmul.f32 %v596, %v918
      %v972 = vmul.f32 %v597, %v914
      %v973 = vmul.f32 %v598, %v910
      %v974 = vmul.f32 %v599, %v906
      %v975 = vmul.f32 %v600, %v919
      %v976 = vmul.f32 %v601, %v915
      %v977 = vmul.f32 %v602, %v911
      %v978 = vmul.f32 %v603, %v907
      %v979 = vmul.f32 %v604, %v967
      %v980 = vmul.f32 %v605, %v963
      %v981 = vmul.f32 %v606, %v959
      %v982 = vmul.f32 %v607, %v955
      %v983 = vmul.f32 %v608, %v968
      %v984 = vmul.f32 %v609, %v964
      %v985 = vmul.f32 %v610, %v960
      %v986 = vmul.f32 %v611, %v956
      %987 = vmatprep.subr.mxu0 %v972
      %988 = vmatpush1.msra.mxu0 %v971
      %989 = vmatprep.subr.mxu0 %v976
      %990 = vmatpush1.msra.mxu0 %v975
      %991 = vmatprep.subr.mxu0 %v980
      %992 = vmatpush1.msra.mxu0 %v979
      %993 = vmatprep.subr.mxu0 %v984
      %994 = vmatpush1.msra.mxu0 %v983
      %995 = vmatprep.subr.mxu0 0.0
      %996 = vmatpush1.msra.mxu0 0.0
      %997 = vmatprep.subr.mxu0 0.0
      %998 = vmatpush1.msra.mxu0 0.0
      %999 = vmatprep.subr.mxu0 0.0
      %1000 = vmatpush1.msra.mxu0 0.0
      %1001 = vmatprep.subr.mxu0 0.0
      %1002 = vmatpush1.msra.mxu0 0.0
      %1003 = vmatprep.subr.mxu0 0.0
      %1004 = vmatpush1.msra.mxu0 0.0
      %1005 = vmatprep.subr.mxu0 0.0
      %1006 = vmatpush1.msra.mxu0 0.0
      %1007 = vmatprep.subr.mxu0 0.0
      %1008 = vmatpush1.msra.mxu0 0.0
      %1009 = vmatprep.subr.mxu0 0.0
      %1010 = vmatpush1.msra.mxu0 0.0
      %1011 = vmatprep.subr.mxu0 0.0
      %1012 = vmatpush1.msra.mxu0 0.0
      %1013 = vmatprep.subr.mxu0 0.0
      %1014 = vmatpush1.msra.mxu0 0.0
      %1015 = vmatprep.subr.mxu0 0.0
      %1016 = vmatpush1.msra.mxu0 0.0
      %1017 = vmatprep.subr.mxu0 0.0
      %1018 = vmatpush1.msra.mxu0 0.0
      %1019 = vmatprep.subr.mxu0 0.0
      %1020 = vmatpush1.msra.mxu0 0.0
      %1021 = vmatprep.subr.mxu0 0.0
      %1022 = vmatpush1.msra.mxu0 0.0
      %1023 = vmatprep.subr.mxu0 0.0
      %1024 = vmatpush1.msra.mxu0 0.0
      %1025 = vmatprep.subr.mxu0 0.0
      %1026 = vmatpush1.msra.mxu0 0.0
      %1027 = vmatprep.subr.mxu0 0.0
      %1028 = vmatpush1.msra.mxu0 0.0
      %1029 = vmatprep.subr.mxu0 0.0
      %1030 = vmatpush1.msra.mxu0 0.0
      %1031 = vmatprep.subr.mxu0 0.0
      %1032 = vmatpush1.msra.mxu0 0.0
      %1033 = vmatprep.subr.mxu0 0.0
      %1034 = vmatpush1.msra.mxu0 0.0
      %1035 = vmatprep.subr.mxu0 0.0
      %1036 = vmatpush1.msra.mxu0 0.0
      %1037 = vmatprep.subr.mxu0 0.0
      %1038 = vmatpush1.msra.mxu0 0.0
      %1039 = vmatprep.subr.mxu0 0.0
      %1040 = vmatpush1.msra.mxu0 0.0
      %1041 = vmatprep.subr.mxu0 0.0
      %1042 = vmatpush1.msra.mxu0 0.0
      %1043 = vmatprep.subr.mxu0 0.0
      %1044 = vmatpush1.msra.mxu0 0.0
      %1045 = vmatprep.subr.mxu0 0.0
      %1046 = vmatpush1.msra.mxu0 0.0
      %1047 = vmatprep.subr.mxu0 0.0
      %1048 = vmatpush1.msra.mxu0 0.0
      %1049 = vmatprep.subr.mxu0 0.0
      %1050 = vmatpush1.msra.mxu0 0.0
      %1051 = vmatprep.mubr.f32.mxu0 0.0
      %1052 = vmatmul.mubr.f32.gmra.mrb[0].mxu0 %v729
      %v1053 = vpop.f32.mrb[0].mxu0
      %v1054 = vadd.f32 0.0, %v1053
      %v1055 = vpop.f32.mrb[0].mxu0
      %v1056 = vadd.f32 0.0, %v1055
      %1057 = vdwg.mxu0
      %1058 = vmatprep.subr.mxu0 %v974
      %1059 = vmatpush1.msra.mxu0 %v973
      %1060 = vmatprep.subr.mxu0 %v978
      %1061 = vmatpush1.msra.mxu0 %v977
      %1062 = vmatprep.subr.mxu0 %v982
      %1063 = vmatpush1.msra.mxu0 %v981
      %1064 = vmatprep.subr.mxu0 %v986
      %1065 = vmatpush1.msra.mxu0 %v985
      %1066 = vmatprep.subr.mxu0 0.0
      %1067 = vmatpush1.msra.mxu0 0.0
      %1068 = vmatprep.subr.mxu0 0.0
      %1069 = vmatpush1.msra.mxu0 0.0
      %1070 = vmatprep.subr.mxu0 0.0
      %1071 = vmatpush1.msra.mxu0 0.0
      %1072 = vmatprep.subr.mxu0 0.0
      %1073 = vmatpush1.msra.mxu0 0.0
      %1074 = vmatprep.subr.mxu0 0.0
      %1075 = vmatpush1.msra.mxu0 0.0
      %1076 = vmatprep.subr.mxu0 0.0
      %1077 = vmatpush1.msra.mxu0 0.0
      %1078 = vmatprep.subr.mxu0 0.0
      %1079 = vmatpush1.msra.mxu0 0.0
      %1080 = vmatprep.subr.mxu0 0.0
      %1081 = vmatpush1.msra.mxu0 0.0
      %1082 = vmatprep.subr.mxu0 0.0
      %1083 = vmatpush1.msra.mxu0 0.0
      %1084 = vmatprep.subr.mxu0 0.0
      %1085 = vmatpush1.msra.mxu0 0.0
      %1086 = vmatprep.subr.mxu0 0.0
      %1087 = vmatpush1.msra.mxu0 0.0
      %1088 = vmatprep.subr.mxu0 0.0
      %1089 = vmatpush1.msra.mxu0 0.0
      %1090 = vmatprep.subr.mxu0 0.0
      %1091 = vmatpush1.msra.mxu0 0.0
      %1092 = vmatprep.subr.mxu0 0.0
      %1093 = vmatpush1.msra.mxu0 0.0
      %1094 = vmatprep.subr.mxu0 0.0
      %1095 = vmatpush1.msra.mxu0 0.0
      %1096 = vmatprep.subr.mxu0 0.0
      %1097 = vmatpush1.msra.mxu0 0.0
      %1098 = vmatprep.subr.mxu0 0.0
      %1099 = vmatpush1.msra.mxu0 0.0
      %1100 = vmatprep.subr.mxu0 0.0
      %1101 = vmatpush1.msra.mxu0 0.0
      %1102 = vmatprep.subr.mxu0 0.0
      %1103 = vmatpush1.msra.mxu0 0.0
      %1104 = vmatprep.subr.mxu0 0.0
      %1105 = vmatpush1.msra.mxu0 0.0
      %1106 = vmatprep.subr.mxu0 0.0
      %1107 = vmatpush1.msra.mxu0 0.0
      %1108 = vmatprep.subr.mxu0 0.0
      %1109 = vmatpush1.msra.mxu0 0.0
      %1110 = vmatprep.subr.mxu0 0.0
      %1111 = vmatpush1.msra.mxu0 0.0
      %1112 = vmatprep.subr.mxu0 0.0
      %1113 = vmatpush1.msra.mxu0 0.0
      %1114 = vmatprep.subr.mxu0 0.0
      %1115 = vmatpush1.msra.mxu0 0.0
      %1116 = vmatprep.subr.mxu0 0.0
      %1117 = vmatpush1.msra.mxu0 0.0
      %1118 = vmatprep.subr.mxu0 0.0
      %1119 = vmatpush1.msra.mxu0 0.0
      %1120 = vmatprep.subr.mxu0 0.0
      %1121 = vmatpush1.msra.mxu0 0.0
      %1122 = vmatprep.mubr.f32.mxu0 0.0
      %1123 = vmatmul.mubr.f32.gmra.mrb[0].mxu0 %v729
      %v1124 = vpop.f32.mrb[0].mxu0
      %v1125 = vadd.f32 0.0, %v1124
      %v1126 = vpop.f32.mrb[0].mxu0
      %v1127 = vadd.f32 0.0, %v1126
      %1128 = vdwg.mxu0
      %1129 = vrot.lane.b32.xlu0 %v408, 42
      %v1130 = vpop.permute.xlu0 %1129
      %1131 = vrot.lane.b32.xlu0 %v414, 42
      %v1132 = vpop.permute.xlu0 %1131
      %1133 = vrot.lane.b32.xlu0 %v432, 42
      %v1134 = vpop.permute.xlu0 %1133
      %1135 = vrot.lane.b32.xlu0 %v438, 42
      %v1136 = vpop.permute.xlu0 %1135
      %1137 = vrot.lane.b32.xlu0 %v410, 42
      %v1138 = vpop.permute.xlu0 %1137
      %1139 = vrot.lane.b32.xlu0 %v416, 42
      %v1140 = vpop.permute.xlu0 %1139
      %1141 = vrot.lane.b32.xlu0 %v434, 42
      %v1142 = vpop.permute.xlu0 %1141
      %1143 = vrot.lane.b32.xlu0 %v440, 42
      %v1144 = vpop.permute.xlu0 %1143
      %1145 = vrot.lane.b32.xlu0 %v545, 42
      %v1146 = vpop.permute.xlu0 %1145
      %1147 = vrot.lane.b32.xlu0 %v551, 42
      %v1148 = vpop.permute.xlu0 %1147
      %1149 = vrot.lane.b32.xlu0 %v569, 42
      %v1150 = vpop.permute.xlu0 %1149
      %1151 = vrot.lane.b32.xlu0 %v575, 42
      %v1152 = vpop.permute.xlu0 %1151
      %1153 = vrot.lane.b32.xlu0 %v547, 42
      %v1154 = vpop.permute.xlu0 %1153
      %1155 = vrot.lane.b32.xlu0 %v553, 42
      %v1156 = vpop.permute.xlu0 %1155
      %1157 = vrot.lane.b32.xlu0 %v571, 42
      %v1158 = vpop.permute.xlu0 %1157
      %1159 = vrot.lane.b32.xlu0 %v577, 42
      %v1160 = vpop.permute.xlu0 %1159
      %vm1161 = vcmp.lt.s32.totalorder %v645, 42
      %v1162 = vsel %vm1161, %v1146, %v1154
      %v1163 = vsel %vm1161, %v1148, %v1156
      %v1164 = vsel %vm1161, %v1150, %v1158
      %v1165 = vsel %vm1161, %v1152, %v1160
      %v1166 = vsel %vm1161, %v1138, %v1146
      %v1167 = vsel %vm1161, %v1140, %v1148
      %v1168 = vsel %vm1161, %v1142, %v1150
      %v1169 = vsel %vm1161, %v1144, %v1152
      %v1170 = vsel %vm1161, %v1130, %v1138
      %v1171 = vsel %vm1161, %v1132, %v1140
      %v1172 = vsel %vm1161, %v1134, %v1142
      %v1173 = vsel %vm1161, %v1136, %v1144
      %v1174 = vsel %vm1161, %v1154, %v1130
      %v1175 = vsel %vm1161, %v1156, %v1132
      %v1176 = vsel %vm1161, %v1158, %v1134
      %v1177 = vsel %vm1161, %v1160, %v1136
      %1178 = vrot.lane.b32.xlu0 %v420, 63
      %v1179 = vpop.permute.xlu0 %1178
      %1180 = vrot.lane.b32.xlu0 %v426, 63
      %v1181 = vpop.permute.xlu0 %1180
      %1182 = vrot.lane.b32.xlu0 %v444, 63
      %v1183 = vpop.permute.xlu0 %1182
      %1184 = vrot.lane.b32.xlu0 %v450, 63
      %v1185 = vpop.permute.xlu0 %1184
      %1186 = vrot.lane.b32.xlu0 %v422, 63
      %v1187 = vpop.permute.xlu0 %1186
      %1188 = vrot.lane.b32.xlu0 %v428, 63
      %v1189 = vpop.permute.xlu0 %1188
      %1190 = vrot.lane.b32.xlu0 %v446, 63
      %v1191 = vpop.permute.xlu0 %1190
      %1192 = vrot.lane.b32.xlu0 %v452, 63
      %v1193 = vpop.permute.xlu0 %1192
      %1194 = vrot.lane.b32.xlu0 %v557, 63
      %v1195 = vpop.permute.xlu0 %1194
      %1196 = vrot.lane.b32.xlu0 %v563, 63
      %v1197 = vpop.permute.xlu0 %1196
      %1198 = vrot.lane.b32.xlu0 %v581, 63
      %v1199 = vpop.permute.xlu0 %1198
      %1200 = vrot.lane.b32.xlu0 %v587, 63
      %v1201 = vpop.permute.xlu0 %1200
      %1202 = vrot.lane.b32.xlu0 %v559, 63
      %v1203 = vpop.permute.xlu0 %1202
      %1204 = vrot.lane.b32.xlu0 %v565, 63
      %v1205 = vpop.permute.xlu0 %1204
      %1206 = vrot.lane.b32.xlu0 %v583, 63
      %v1207 = vpop.permute.xlu0 %1206
      %1208 = vrot.lane.b32.xlu0 %v589, 63
      %v1209 = vpop.permute.xlu0 %1208
      %vm1210 = vcmp.lt.s32.totalorder %v645, 63
      %v1211 = vsel %vm1210, %v1195, %v1203
      %v1212 = vsel %vm1210, %v1197, %v1205
      %v1213 = vsel %vm1210, %v1199, %v1207
      %v1214 = vsel %vm1210, %v1201, %v1209
      %v1215 = vsel %vm1210, %v1187, %v1195
      %v1216 = vsel %vm1210, %v1189, %v1197
      %v1217 = vsel %vm1210, %v1191, %v1199
      %v1218 = vsel %vm1210, %v1193, %v1201
      %v1219 = vsel %vm1210, %v1179, %v1187
      %v1220 = vsel %vm1210, %v1181, %v1189
      %v1221 = vsel %vm1210, %v1183, %v1191
      %v1222 = vsel %vm1210, %v1185, %v1193
      %v1223 = vsel %vm1210, %v1203, %v1179
      %v1224 = vsel %vm1210, %v1205, %v1181
      %v1225 = vsel %vm1210, %v1207, %v1183
      %v1226 = vsel %vm1210, %v1209, %v1185
      %v1227 = vmul.f32 %v596, %v1174
      %v1228 = vmul.f32 %v597, %v1170
      %v1229 = vmul.f32 %v598, %v1166
      %v1230 = vmul.f32 %v599, %v1162
      %v1231 = vmul.f32 %v600, %v1175
      %v1232 = vmul.f32 %v601, %v1171
      %v1233 = vmul.f32 %v602, %v1167
      %v1234 = vmul.f32 %v603, %v1163
      %v1235 = vmul.f32 %v604, %v1223
      %v1236 = vmul.f32 %v605, %v1219
      %v1237 = vmul.f32 %v606, %v1215
      %v1238 = vmul.f32 %v607, %v1211
      %v1239 = vmul.f32 %v608, %v1224
      %v1240 = vmul.f32 %v609, %v1220
      %v1241 = vmul.f32 %v610, %v1216
      %v1242 = vmul.f32 %v611, %v1212
      %1243 = vmatprep.subr.mxu0 %v1228
      %1244 = vmatpush1.msra.mxu0 %v1227
      %1245 = vmatprep.subr.mxu0 %v1232
      %1246 = vmatpush1.msra.mxu0 %v1231
      %1247 = vmatprep.subr.mxu0 %v1236
      %1248 = vmatpush1.msra.mxu0 %v1235
      %1249 = vmatprep.subr.mxu0 %v1240
      %1250 = vmatpush1.msra.mxu0 %v1239
      %1251 = vmatprep.subr.mxu0 0.0
      %1252 = vmatpush1.msra.mxu0 0.0
      %1253 = vmatprep.subr.mxu0 0.0
      %1254 = vmatpush1.msra.mxu0 0.0
      %1255 = vmatprep.subr.mxu0 0.0
      %1256 = vmatpush1.msra.mxu0 0.0
      %1257 = vmatprep.subr.mxu0 0.0
      %1258 = vmatpush1.msra.mxu0 0.0
      %1259 = vmatprep.subr.mxu0 0.0
      %1260 = vmatpush1.msra.mxu0 0.0
      %1261 = vmatprep.subr.mxu0 0.0
      %1262 = vmatpush1.msra.mxu0 0.0
      %1263 = vmatprep.subr.mxu0 0.0
      %1264 = vmatpush1.msra.mxu0 0.0
      %1265 = vmatprep.subr.mxu0 0.0
      %1266 = vmatpush1.msra.mxu0 0.0
      %1267 = vmatprep.subr.mxu0 0.0
      %1268 = vmatpush1.msra.mxu0 0.0
      %1269 = vmatprep.subr.mxu0 0.0
      %1270 = vmatpush1.msra.mxu0 0.0
      %1271 = vmatprep.subr.mxu0 0.0
      %1272 = vmatpush1.msra.mxu0 0.0
      %1273 = vmatprep.subr.mxu0 0.0
      %1274 = vmatpush1.msra.mxu0 0.0
      %1275 = vmatprep.subr.mxu0 0.0
      %1276 = vmatpush1.msra.mxu0 0.0
      %1277 = vmatprep.subr.mxu0 0.0
      %1278 = vmatpush1.msra.mxu0 0.0
      %1279 = vmatprep.subr.mxu0 0.0
      %1280 = vmatpush1.msra.mxu0 0.0
      %1281 = vmatprep.subr.mxu0 0.0
      %1282 = vmatpush1.msra.mxu0 0.0
      %1283 = vmatprep.subr.mxu0 0.0
      %1284 = vmatpush1.msra.mxu0 0.0
      %1285 = vmatprep.subr.mxu0 0.0
      %1286 = vmatpush1.msra.mxu0 0.0
      %1287 = vmatprep.subr.mxu0 0.0
      %1288 = vmatpush1.msra.mxu0 0.0
      %1289 = vmatprep.subr.mxu0 0.0
      %1290 = vmatpush1.msra.mxu0 0.0
      %1291 = vmatprep.subr.mxu0 0.0
      %1292 = vmatpush1.msra.mxu0 0.0
      %1293 = vmatprep.subr.mxu0 0.0
      %1294 = vmatpush1.msra.mxu0 0.0
      %1295 = vmatprep.subr.mxu0 0.0
      %1296 = vmatpush1.msra.mxu0 0.0
      %1297 = vmatprep.subr.mxu0 0.0
      %1298 = vmatpush1.msra.mxu0 0.0
      %1299 = vmatprep.subr.mxu0 0.0
      %1300 = vmatpush1.msra.mxu0 0.0
      %1301 = vmatprep.subr.mxu0 0.0
      %1302 = vmatpush1.msra.mxu0 0.0
      %1303 = vmatprep.subr.mxu0 0.0
      %1304 = vmatpush1.msra.mxu0 0.0
      %1305 = vmatprep.subr.mxu0 0.0
      %1306 = vmatpush1.msra.mxu0 0.0
      %1307 = vmatprep.mubr.f32.mxu0 0.0
      %1308 = vmatmul.mubr.f32.gmra.mrb[0].mxu0 %v729
      %v1309 = vpop.f32.mrb[0].mxu0
      %v1310 = vadd.f32 0.0, %v1309
      %v1311 = vpop.f32.mrb[0].mxu0
      %v1312 = vadd.f32 0.0, %v1311
      %1313 = vdwg.mxu0
      %1314 = vmatprep.subr.mxu0 %v1230
      %1315 = vmatpush1.msra.mxu0 %v1229
      %1316 = vmatprep.subr.mxu0 %v1234
      %1317 = vmatpush1.msra.mxu0 %v1233
      %1318 = vmatprep.subr.mxu0 %v1238
      %1319 = vmatpush1.msra.mxu0 %v1237
      %1320 = vmatprep.subr.mxu0 %v1242
      %1321 = vmatpush1.msra.mxu0 %v1241
      %1322 = vmatprep.subr.mxu0 0.0
      %1323 = vmatpush1.msra.mxu0 0.0
      %1324 = vmatprep.subr.mxu0 0.0
      %1325 = vmatpush1.msra.mxu0 0.0
      %1326 = vmatprep.subr.mxu0 0.0
      %1327 = vmatpush1.msra.mxu0 0.0
      %1328 = vmatprep.subr.mxu0 0.0
      %1329 = vmatpush1.msra.mxu0 0.0
      %1330 = vmatprep.subr.mxu0 0.0
      %1331 = vmatpush1.msra.mxu0 0.0
      %1332 = vmatprep.subr.mxu0 0.0
      %1333 = vmatpush1.msra.mxu0 0.0
      %1334 = vmatprep.subr.mxu0 0.0
      %1335 = vmatpush1.msra.mxu0 0.0
      %1336 = vmatprep.subr.mxu0 0.0
      %1337 = vmatpush1.msra.mxu0 0.0
      %1338 = vmatprep.subr.mxu0 0.0
      %1339 = vmatpush1.msra.mxu0 0.0
      %1340 = vmatprep.subr.mxu0 0.0
      %1341 = vmatpush1.msra.mxu0 0.0
      %1342 = vmatprep.subr.mxu0 0.0
      %1343 = vmatpush1.msra.mxu0 0.0
      %1344 = vmatprep.subr.mxu0 0.0
      %1345 = vmatpush1.msra.mxu0 0.0
      %1346 = vmatprep.subr.mxu0 0.0
      %1347 = vmatpush1.msra.mxu0 0.0
      %1348 = vmatprep.subr.mxu0 0.0
      %1349 = vmatpush1.msra.mxu0 0.0
      %1350 = vmatprep.subr.mxu0 0.0
      %1351 = vmatpush1.msra.mxu0 0.0
      %1352 = vmatprep.subr.mxu0 0.0
      %1353 = vmatpush1.msra.mxu0 0.0
      %1354 = vmatprep.subr.mxu0 0.0
      %1355 = vmatpush1.msra.mxu0 0.0
      %1356 = vmatprep.subr.mxu0 0.0
      %1357 = vmatpush1.msra.mxu0 0.0
      %1358 = vmatprep.subr.mxu0 0.0
      %1359 = vmatpush1.msra.mxu0 0.0
      %1360 = vmatprep.subr.mxu0 0.0
      %1361 = vmatpush1.msra.mxu0 0.0
      %1362 = vmatprep.subr.mxu0 0.0
      %1363 = vmatpush1.msra.mxu0 0.0
      %1364 = vmatprep.subr.mxu0 0.0
      %1365 = vmatpush1.msra.mxu0 0.0
      %1366 = vmatprep.subr.mxu0 0.0
      %1367 = vmatpush1.msra.mxu0 0.0
      %1368 = vmatprep.subr.mxu0 0.0
      %1369 = vmatpush1.msra.mxu0 0.0
      %1370 = vmatprep.subr.mxu0 0.0
      %1371 = vmatpush1.msra.mxu0 0.0
      %1372 = vmatprep.subr.mxu0 0.0
      %1373 = vmatpush1.msra.mxu0 0.0
      %1374 = vmatprep.subr.mxu0 0.0
      %1375 = vmatpush1.msra.mxu0 0.0
      %1376 = vmatprep.subr.mxu0 0.0
      %1377 = vmatpush1.msra.mxu0 0.0
      %1378 = vmatprep.mubr.f32.mxu0 0.0
      %1379 = vmatmul.mubr.f32.gmra.mrb[0].mxu0 %v729
      %v1380 = vpop.f32.mrb[0].mxu0
      %v1381 = vadd.f32 0.0, %v1380
      %v1382 = vpop.f32.mrb[0].mxu0
      %v1383 = vadd.f32 0.0, %v1382
      %1384 = vdwg.mxu0
      %1385 = vrot.lane.b32.xlu0 %v408, 2
      %v1386 = vpop.permute.xlu0 %1385
      %1387 = vrot.lane.b32.xlu0 %v414, 2
      %v1388 = vpop.permute.xlu0 %1387
      %1389 = vrot.lane.b32.xlu0 %v432, 2
      %v1390 = vpop.permute.xlu0 %1389
      %1391 = vrot.lane.b32.xlu0 %v438, 2
      %v1392 = vpop.permute.xlu0 %1391
      %1393 = vrot.lane.b32.xlu0 %v410, 2
      %v1394 = vpop.permute.xlu0 %1393
      %1395 = vrot.lane.b32.xlu0 %v416, 2
      %v1396 = vpop.permute.xlu0 %1395
      %1397 = vrot.lane.b32.xlu0 %v434, 2
      %v1398 = vpop.permute.xlu0 %1397
      %1399 = vrot.lane.b32.xlu0 %v440, 2
      %v1400 = vpop.permute.xlu0 %1399
      %1401 = vrot.lane.b32.xlu0 %v545, 2
      %v1402 = vpop.permute.xlu0 %1401
      %1403 = vrot.lane.b32.xlu0 %v551, 2
      %v1404 = vpop.permute.xlu0 %1403
      %1405 = vrot.lane.b32.xlu0 %v569, 2
      %v1406 = vpop.permute.xlu0 %1405
      %1407 = vrot.lane.b32.xlu0 %v575, 2
      %v1408 = vpop.permute.xlu0 %1407
      %1409 = vrot.lane.b32.xlu0 %v547, 2
      %v1410 = vpop.permute.xlu0 %1409
      %1411 = vrot.lane.b32.xlu0 %v553, 2
      %v1412 = vpop.permute.xlu0 %1411
      %1413 = vrot.lane.b32.xlu0 %v571, 2
      %v1414 = vpop.permute.xlu0 %1413
      %1415 = vrot.lane.b32.xlu0 %v577, 2
      %v1416 = vpop.permute.xlu0 %1415
      %vm1417 = vcmp.lt.s32.totalorder %v645, 2
      %v1418 = vsel %vm1417, %v1402, %v1410
      %v1419 = vsel %vm1417, %v1404, %v1412
      %v1420 = vsel %vm1417, %v1406, %v1414
      %v1421 = vsel %vm1417, %v1408, %v1416
      %v1422 = vsel %vm1417, %v1394, %v1402
      %v1423 = vsel %vm1417, %v1396, %v1404
      %v1424 = vsel %vm1417, %v1398, %v1406
      %v1425 = vsel %vm1417, %v1400, %v1408
      %v1426 = vsel %vm1417, %v1386, %v1394
      %v1427 = vsel %vm1417, %v1388, %v1396
      %v1428 = vsel %vm1417, %v1390, %v1398
      %v1429 = vsel %vm1417, %v1392, %v1400
      %v1430 = vsel %vm1417, %v1410, %v1386
      %v1431 = vsel %vm1417, %v1412, %v1388
      %v1432 = vsel %vm1417, %v1414, %v1390
      %v1433 = vsel %vm1417, %v1416, %v1392
      %1434 = vrot.lane.b32.xlu0 %v420, 3
      %v1435 = vpop.permute.xlu0 %1434
      %1436 = vrot.lane.b32.xlu0 %v426, 3
      %v1437 = vpop.permute.xlu0 %1436
      %1438 = vrot.lane.b32.xlu0 %v444, 3
      %v1439 = vpop.permute.xlu0 %1438
      %1440 = vrot.lane.b32.xlu0 %v450, 3
      %v1441 = vpop.permute.xlu0 %1440
      %1442 = vrot.lane.b32.xlu0 %v422, 3
      %v1443 = vpop.permute.xlu0 %1442
      %1444 = vrot.lane.b32.xlu0 %v428, 3
      %v1445 = vpop.permute.xlu0 %1444
      %1446 = vrot.lane.b32.xlu0 %v446, 3
      %v1447 = vpop.permute.xlu0 %1446
      %1448 = vrot.lane.b32.xlu0 %v452, 3
      %v1449 = vpop.permute.xlu0 %1448
      %1450 = vrot.lane.b32.xlu0 %v557, 3
      %v1451 = vpop.permute.xlu0 %1450
      %1452 = vrot.lane.b32.xlu0 %v563, 3
      %v1453 = vpop.permute.xlu0 %1452
      %1454 = vrot.lane.b32.xlu0 %v581, 3
      %v1455 = vpop.permute.xlu0 %1454
      %1456 = vrot.lane.b32.xlu0 %v587, 3
      %v1457 = vpop.permute.xlu0 %1456
      %1458 = vrot.lane.b32.xlu0 %v559, 3
      %v1459 = vpop.permute.xlu0 %1458
      %1460 = vrot.lane.b32.xlu0 %v565, 3
      %v1461 = vpop.permute.xlu0 %1460
      %1462 = vrot.lane.b32.xlu0 %v583, 3
      %v1463 = vpop.permute.xlu0 %1462
      %1464 = vrot.lane.b32.xlu0 %v589, 3
      %v1465 = vpop.permute.xlu0 %1464
      %vm1466 = vcmp.lt.s32.totalorder %v645, 3
      %v1467 = vsel %vm1466, %v1451, %v1459
      %v1468 = vsel %vm1466, %v1453, %v1461
      %v1469 = vsel %vm1466, %v1455, %v1463
      %v1470 = vsel %vm1466, %v1457, %v1465
      %v1471 = vsel %vm1466, %v1443, %v1451
      %v1472 = vsel %vm1466, %v1445, %v1453
      %v1473 = vsel %vm1466, %v1447, %v1455
      %v1474 = vsel %vm1466, %v1449, %v1457
      %v1475 = vsel %vm1466, %v1435, %v1443
      %v1476 = vsel %vm1466, %v1437, %v1445
      %v1477 = vsel %vm1466, %v1439, %v1447
      %v1478 = vsel %vm1466, %v1441, %v1449
      %v1479 = vsel %vm1466, %v1459, %v1435
      %v1480 = vsel %vm1466, %v1461, %v1437
      %v1481 = vsel %vm1466, %v1463, %v1439
      %v1482 = vsel %vm1466, %v1465, %v1441
      %v1483 = vmul.f32 %v596, %v1430
      %v1484 = vmul.f32 %v597, %v1426
      %v1485 = vmul.f32 %v598, %v1422
      %v1486 = vmul.f32 %v599, %v1418
      %v1487 = vmul.f32 %v600, %v1431
      %v1488 = vmul.f32 %v601, %v1427
      %v1489 = vmul.f32 %v602, %v1423
      %v1490 = vmul.f32 %v603, %v1419
      %v1491 = vmul.f32 %v604, %v1479
      %v1492 = vmul.f32 %v605, %v1475
      %v1493 = vmul.f32 %v606, %v1471
      %v1494 = vmul.f32 %v607, %v1467
      %v1495 = vmul.f32 %v608, %v1480
      %v1496 = vmul.f32 %v609, %v1476
      %v1497 = vmul.f32 %v610, %v1472
      %v1498 = vmul.f32 %v611, %v1468
      %1499 = vmatprep.subr.mxu0 %v1484
      %1500 = vmatpush1.msra.mxu0 %v1483
      %1501 = vmatprep.subr.mxu0 %v1488
      %1502 = vmatpush1.msra.mxu0 %v1487
      %1503 = vmatprep.subr.mxu0 %v1492
      %1504 = vmatpush1.msra.mxu0 %v1491
      %1505 = vmatprep.subr.mxu0 %v1496
      %1506 = vmatpush1.msra.mxu0 %v1495
      %1507 = vmatprep.subr.mxu0 0.0
      %1508 = vmatpush1.msra.mxu0 0.0
      %1509 = vmatprep.subr.mxu0 0.0
      %1510 = vmatpush1.msra.mxu0 0.0
      %1511 = vmatprep.subr.mxu0 0.0
      %1512 = vmatpush1.msra.mxu0 0.0
      %1513 = vmatprep.subr.mxu0 0.0
      %1514 = vmatpush1.msra.mxu0 0.0
      %1515 = vmatprep.subr.mxu0 0.0
      %1516 = vmatpush1.msra.mxu0 0.0
      %1517 = vmatprep.subr.mxu0 0.0
      %1518 = vmatpush1.msra.mxu0 0.0
      %1519 = vmatprep.subr.mxu0 0.0
      %1520 = vmatpush1.msra.mxu0 0.0
      %1521 = vmatprep.subr.mxu0 0.0
      %1522 = vmatpush1.msra.mxu0 0.0
      %1523 = vmatprep.subr.mxu0 0.0
      %1524 = vmatpush1.msra.mxu0 0.0
      %1525 = vmatprep.subr.mxu0 0.0
      %1526 = vmatpush1.msra.mxu0 0.0
      %1527 = vmatprep.subr.mxu0 0.0
      %1528 = vmatpush1.msra.mxu0 0.0
      %1529 = vmatprep.subr.mxu0 0.0
      %1530 = vmatpush1.msra.mxu0 0.0
      %1531 = vmatprep.subr.mxu0 0.0
      %1532 = vmatpush1.msra.mxu0 0.0
      %1533 = vmatprep.subr.mxu0 0.0
      %1534 = vmatpush1.msra.mxu0 0.0
      %1535 = vmatprep.subr.mxu0 0.0
      %1536 = vmatpush1.msra.mxu0 0.0
      %1537 = vmatprep.subr.mxu0 0.0
      %1538 = vmatpush1.msra.mxu0 0.0
      %1539 = vmatprep.subr.mxu0 0.0
      %1540 = vmatpush1.msra.mxu0 0.0
      %1541 = vmatprep.subr.mxu0 0.0
      %1542 = vmatpush1.msra.mxu0 0.0
      %1543 = vmatprep.subr.mxu0 0.0
      %1544 = vmatpush1.msra.mxu0 0.0
      %1545 = vmatprep.subr.mxu0 0.0
      %1546 = vmatpush1.msra.mxu0 0.0
      %1547 = vmatprep.subr.mxu0 0.0
      %1548 = vmatpush1.msra.mxu0 0.0
      %1549 = vmatprep.subr.mxu0 0.0
      %1550 = vmatpush1.msra.mxu0 0.0
      %1551 = vmatprep.subr.mxu0 0.0
      %1552 = vmatpush1.msra.mxu0 0.0
      %1553 = vmatprep.subr.mxu0 0.0
      %1554 = vmatpush1.msra.mxu0 0.0
      %1555 = vmatprep.subr.mxu0 0.0
      %1556 = vmatpush1.msra.mxu0 0.0
      %1557 = vmatprep.subr.mxu0 0.0
      %1558 = vmatpush1.msra.mxu0 0.0
      %1559 = vmatprep.subr.mxu0 0.0
      %1560 = vmatpush1.msra.mxu0 0.0
      %1561 = vmatprep.subr.mxu0 0.0
      %1562 = vmatpush1.msra.mxu0 0.0
      %1563 = vmatprep.mubr.f32.mxu0 0.0
      %1564 = vmatmul.mubr.f32.gmra.mrb[0].mxu0 %v729
      %v1565 = vpop.f32.mrb[0].mxu0
      %v1566 = vadd.f32 0.0, %v1565
      %v1567 = vpop.f32.mrb[0].mxu0
      %v1568 = vadd.f32 0.0, %v1567
      %1569 = vdwg.mxu0
      %1570 = vmatprep.subr.mxu0 %v1486
      %1571 = vmatpush1.msra.mxu0 %v1485
      %1572 = vmatprep.subr.mxu0 %v1490
      %1573 = vmatpush1.msra.mxu0 %v1489
      %1574 = vmatprep.subr.mxu0 %v1494
      %1575 = vmatpush1.msra.mxu0 %v1493
      %1576 = vmatprep.subr.mxu0 %v1498
      %1577 = vmatpush1.msra.mxu0 %v1497
      %1578 = vmatprep.subr.mxu0 0.0
      %1579 = vmatpush1.msra.mxu0 0.0
      %1580 = vmatprep.subr.mxu0 0.0
      %1581 = vmatpush1.msra.mxu0 0.0
      %1582 = vmatprep.subr.mxu0 0.0
      %1583 = vmatpush1.msra.mxu0 0.0
      %1584 = vmatprep.subr.mxu0 0.0
      %1585 = vmatpush1.msra.mxu0 0.0
      %1586 = vmatprep.subr.mxu0 0.0
      %1587 = vmatpush1.msra.mxu0 0.0
      %1588 = vmatprep.subr.mxu0 0.0
      %1589 = vmatpush1.msra.mxu0 0.0
      %1590 = vmatprep.subr.mxu0 0.0
      %1591 = vmatpush1.msra.mxu0 0.0
      %1592 = vmatprep.subr.mxu0 0.0
      %1593 = vmatpush1.msra.mxu0 0.0
      %1594 = vmatprep.subr.mxu0 0.0
      %1595 = vmatpush1.msra.mxu0 0.0
      %1596 = vmatprep.subr.mxu0 0.0
      %1597 = vmatpush1.msra.mxu0 0.0
      %1598 = vmatprep.subr.mxu0 0.0
      %1599 = vmatpush1.msra.mxu0 0.0
      %1600 = vmatprep.subr.mxu0 0.0
      %1601 = vmatpush1.msra.mxu0 0.0
      %1602 = vmatprep.subr.mxu0 0.0
      %1603 = vmatpush1.msra.mxu0 0.0
      %1604 = vmatprep.subr.mxu0 0.0
      %1605 = vmatpush1.msra.mxu0 0.0
      %1606 = vmatprep.subr.mxu0 0.0
      %1607 = vmatpush1.msra.mxu0 0.0
      %1608 = vmatprep.subr.mxu0 0.0
      %1609 = vmatpush1.msra.mxu0 0.0
      %1610 = vmatprep.subr.mxu0 0.0
      %1611 = vmatpush1.msra.mxu0 0.0
      %1612 = vmatprep.subr.mxu0 0.0
      %1613 = vmatpush1.msra.mxu0 0.0
      %1614 = vmatprep.subr.mxu0 0.0
      %1615 = vmatpush1.msra.mxu0 0.0
      %1616 = vmatprep.subr.mxu0 0.0
      %1617 = vmatpush1.msra.mxu0 0.0
      %1618 = vmatprep.subr.mxu0 0.0
      %1619 = vmatpush1.msra.mxu0 0.0
      %1620 = vmatprep.subr.mxu0 0.0
      %1621 = vmatpush1.msra.mxu0 0.0
      %1622 = vmatprep.subr.mxu0 0.0
      %1623 = vmatpush1.msra.mxu0 0.0
      %1624 = vmatprep.subr.mxu0 0.0
      %1625 = vmatpush1.msra.mxu0 0.0
      %1626 = vmatprep.subr.mxu0 0.0
      %1627 = vmatpush1.msra.mxu0 0.0
      %1628 = vmatprep.subr.mxu0 0.0
      %1629 = vmatpush1.msra.mxu0 0.0
      %1630 = vmatprep.subr.mxu0 0.0
      %1631 = vmatpush1.msra.mxu0 0.0
      %1632 = vmatprep.subr.mxu0 0.0
      %1633 = vmatpush1.msra.mxu0 0.0
      %1634 = vmatprep.mubr.f32.mxu0 0.0
      %1635 = vmatmul.mubr.f32.gmra.mrb[0].mxu0 %v729
      %v1636 = vpop.f32.mrb[0].mxu0
      %v1637 = vadd.f32 0.0, %v1636
      %v1638 = vpop.f32.mrb[0].mxu0
      %v1639 = vadd.f32 0.0, %v1638
      %1640 = vdwg.mxu0
      %v1641 = vmul.f32 %v596, %v408
      %v1642 = vmul.f32 %v597, %v410
      %v1643 = vmul.f32 %v598, %v545
      %v1644 = vmul.f32 %v599, %v547
      %v1645 = vmul.f32 %v600, %v414
      %v1646 = vmul.f32 %v601, %v416
      %v1647 = vmul.f32 %v602, %v551
      %v1648 = vmul.f32 %v603, %v553
      %v1649 = vmul.f32 %v604, %v420
      %v1650 = vmul.f32 %v605, %v422
      %v1651 = vmul.f32 %v606, %v557
      %v1652 = vmul.f32 %v607, %v559
      %v1653 = vmul.f32 %v608, %v426
      %v1654 = vmul.f32 %v609, %v428
      %v1655 = vmul.f32 %v610, %v563
      %v1656 = vmul.f32 %v611, %v565
      %1657 = vmatprep.subr.mxu0 %v1642
      %1658 = vmatpush1.msra.mxu0 %v1641
      %1659 = vmatprep.subr.mxu0 %v1646
      %1660 = vmatpush1.msra.mxu0 %v1645
      %1661 = vmatprep.subr.mxu0 %v1650
      %1662 = vmatpush1.msra.mxu0 %v1649
      %1663 = vmatprep.subr.mxu0 %v1654
      %1664 = vmatpush1.msra.mxu0 %v1653
      %1665 = vmatprep.subr.mxu0 0.0
      %1666 = vmatpush1.msra.mxu0 0.0
      %1667 = vmatprep.subr.mxu0 0.0
      %1668 = vmatpush1.msra.mxu0 0.0
      %1669 = vmatprep.subr.mxu0 0.0
      %1670 = vmatpush1.msra.mxu0 0.0
      %1671 = vmatprep.subr.mxu0 0.0
      %1672 = vmatpush1.msra.mxu0 0.0
      %1673 = vmatprep.subr.mxu0 0.0
      %1674 = vmatpush1.msra.mxu0 0.0
      %1675 = vmatprep.subr.mxu0 0.0
      %1676 = vmatpush1.msra.mxu0 0.0
      %1677 = vmatprep.subr.mxu0 0.0
      %1678 = vmatpush1.msra.mxu0 0.0
      %1679 = vmatprep.subr.mxu0 0.0
      %1680 = vmatpush1.msra.mxu0 0.0
      %1681 = vmatprep.subr.mxu0 0.0
      %1682 = vmatpush1.msra.mxu0 0.0
      %1683 = vmatprep.subr.mxu0 0.0
      %1684 = vmatpush1.msra.mxu0 0.0
      %1685 = vmatprep.subr.mxu0 0.0
      %1686 = vmatpush1.msra.mxu0 0.0
      %1687 = vmatprep.subr.mxu0 0.0
      %1688 = vmatpush1.msra.mxu0 0.0
      %1689 = vmatprep.subr.mxu0 0.0
      %1690 = vmatpush1.msra.mxu0 0.0
      %1691 = vmatprep.subr.mxu0 0.0
      %1692 = vmatpush1.msra.mxu0 0.0
      %1693 = vmatprep.subr.mxu0 0.0
      %1694 = vmatpush1.msra.mxu0 0.0
      %1695 = vmatprep.subr.mxu0 0.0
      %1696 = vmatpush1.msra.mxu0 0.0
      %1697 = vmatprep.subr.mxu0 0.0
      %1698 = vmatpush1.msra.mxu0 0.0
      %1699 = vmatprep.subr.mxu0 0.0
      %1700 = vmatpush1.msra.mxu0 0.0
      %1701 = vmatprep.subr.mxu0 0.0
      %1702 = vmatpush1.msra.mxu0 0.0
      %1703 = vmatprep.subr.mxu0 0.0
      %1704 = vmatpush1.msra.mxu0 0.0
      %1705 = vmatprep.subr.mxu0 0.0
      %1706 = vmatpush1.msra.mxu0 0.0
      %1707 = vmatprep.subr.mxu0 0.0
      %1708 = vmatpush1.msra.mxu0 0.0
      %1709 = vmatprep.subr.mxu0 0.0
      %1710 = vmatpush1.msra.mxu0 0.0
      %1711 = vmatprep.subr.mxu0 0.0
      %1712 = vmatpush1.msra.mxu0 0.0
      %1713 = vmatprep.subr.mxu0 0.0
      %1714 = vmatpush1.msra.mxu0 0.0
      %1715 = vmatprep.subr.mxu0 0.0
      %1716 = vmatpush1.msra.mxu0 0.0
      %1717 = vmatprep.subr.mxu0 0.0
      %1718 = vmatpush1.msra.mxu0 0.0
      %1719 = vmatprep.subr.mxu0 0.0
      %1720 = vmatpush1.msra.mxu0 0.0
      %1721 = vmatprep.mubr.f32.mxu0 0.0
      %1722 = vmatmul.mubr.f32.gmra.mrb[0].mxu0 %v729
      %v1723 = vpop.f32.mrb[0].mxu0
      %v1724 = vadd.f32 0.0, %v1723
      %v1725 = vpop.f32.mrb[0].mxu0
      %v1726 = vadd.f32 0.0, %v1725
      %1727 = vdwg.mxu0
      %1728 = vmatprep.subr.mxu0 %v1644
      %1729 = vmatpush1.msra.mxu0 %v1643
      %1730 = vmatprep.subr.mxu0 %v1648
      %1731 = vmatpush1.msra.mxu0 %v1647
      %1732 = vmatprep.subr.mxu0 %v1652
      %1733 = vmatpush1.msra.mxu0 %v1651
      %1734 = vmatprep.subr.mxu0 %v1656
      %1735 = vmatpush1.msra.mxu0 %v1655
      %1736 = vmatprep.subr.mxu0 0.0
      %1737 = vmatpush1.msra.mxu0 0.0
      %1738 = vmatprep.subr.mxu0 0.0
      %1739 = vmatpush1.msra.mxu0 0.0
      %1740 = vmatprep.subr.mxu0 0.0
      %1741 = vmatpush1.msra.mxu0 0.0
      %1742 = vmatprep.subr.mxu0 0.0
      %1743 = vmatpush1.msra.mxu0 0.0
      %1744 = vmatprep.subr.mxu0 0.0
      %1745 = vmatpush1.msra.mxu0 0.0
      %1746 = vmatprep.subr.mxu0 0.0
      %1747 = vmatpush1.msra.mxu0 0.0
      %1748 = vmatprep.subr.mxu0 0.0
      %1749 = vmatpush1.msra.mxu0 0.0
      %1750 = vmatprep.subr.mxu0 0.0
      %1751 = vmatpush1.msra.mxu0 0.0
      %1752 = vmatprep.subr.mxu0 0.0
      %1753 = vmatpush1.msra.mxu0 0.0
      %1754 = vmatprep.subr.mxu0 0.0
      %1755 = vmatpush1.msra.mxu0 0.0
      %1756 = vmatprep.subr.mxu0 0.0
      %1757 = vmatpush1.msra.mxu0 0.0
      %1758 = vmatprep.subr.mxu0 0.0
      %1759 = vmatpush1.msra.mxu0 0.0
      %1760 = vmatprep.subr.mxu0 0.0
      %1761 = vmatpush1.msra.mxu0 0.0
      %1762 = vmatprep.subr.mxu0 0.0
      %1763 = vmatpush1.msra.mxu0 0.0
      %1764 = vmatprep.subr.mxu0 0.0
      %1765 = vmatpush1.msra.mxu0 0.0
      %1766 = vmatprep.subr.mxu0 0.0
      %1767 = vmatpush1.msra.mxu0 0.0
      %1768 = vmatprep.subr.mxu0 0.0
      %1769 = vmatpush1.msra.mxu0 0.0
      %1770 = vmatprep.subr.mxu0 0.0
      %1771 = vmatpush1.msra.mxu0 0.0
      %1772 = vmatprep.subr.mxu0 0.0
      %1773 = vmatpush1.msra.mxu0 0.0
      %1774 = vmatprep.subr.mxu0 0.0
      %1775 = vmatpush1.msra.mxu0 0.0
      %1776 = vmatprep.subr.mxu0 0.0
      %1777 = vmatpush1.msra.mxu0 0.0
      %1778 = vmatprep.subr.mxu0 0.0
      %1779 = vmatpush1.msra.mxu0 0.0
      %1780 = vmatprep.subr.mxu0 0.0
      %1781 = vmatpush1.msra.mxu0 0.0
      %1782 = vmatprep.subr.mxu0 0.0
      %1783 = vmatpush1.msra.mxu0 0.0
      %1784 = vmatprep.subr.mxu0 0.0
      %1785 = vmatpush1.msra.mxu0 0.0
      %1786 = vmatprep.subr.mxu0 0.0
      %1787 = vmatpush1.msra.mxu0 0.0
      %1788 = vmatprep.subr.mxu0 0.0
      %1789 = vmatpush1.msra.mxu0 0.0
      %1790 = vmatprep.subr.mxu0 0.0
      %1791 = vmatpush1.msra.mxu0 0.0
      %1792 = vmatprep.mubr.f32.mxu0 0.0
      %1793 = vmatmul.mubr.f32.gmra.mrb[0].mxu0 %v729
      %v1794 = vpop.f32.mrb[0].mxu0
      %v1795 = vadd.f32 0.0, %v1794
      %v1796 = vpop.f32.mrb[0].mxu0
      %v1797 = vadd.f32 0.0, %v1796
      %1798 = vdwg.mxu0
      %1799 = vrot.lane.b32.xlu0 %v408, 126
      %v1800 = vpop.permute.xlu0 %1799
      %1801 = vrot.lane.b32.xlu0 %v414, 126
      %v1802 = vpop.permute.xlu0 %1801
      %1803 = vrot.lane.b32.xlu0 %v432, 126
      %v1804 = vpop.permute.xlu0 %1803
      %1805 = vrot.lane.b32.xlu0 %v438, 126
      %v1806 = vpop.permute.xlu0 %1805
      %1807 = vrot.lane.b32.xlu0 %v410, 126
      %v1808 = vpop.permute.xlu0 %1807
      %1809 = vrot.lane.b32.xlu0 %v416, 126
      %v1810 = vpop.permute.xlu0 %1809
      %1811 = vrot.lane.b32.xlu0 %v434, 126
      %v1812 = vpop.permute.xlu0 %1811
      %1813 = vrot.lane.b32.xlu0 %v440, 126
      %v1814 = vpop.permute.xlu0 %1813
      %1815 = vrot.lane.b32.xlu0 %v545, 126
      %v1816 = vpop.permute.xlu0 %1815
      %1817 = vrot.lane.b32.xlu0 %v551, 126
      %v1818 = vpop.permute.xlu0 %1817
      %1819 = vrot.lane.b32.xlu0 %v569, 126
      %v1820 = vpop.permute.xlu0 %1819
      %1821 = vrot.lane.b32.xlu0 %v575, 126
      %v1822 = vpop.permute.xlu0 %1821
      %1823 = vrot.lane.b32.xlu0 %v547, 126
      %v1824 = vpop.permute.xlu0 %1823
      %1825 = vrot.lane.b32.xlu0 %v553, 126
      %v1826 = vpop.permute.xlu0 %1825
      %1827 = vrot.lane.b32.xlu0 %v571, 126
      %v1828 = vpop.permute.xlu0 %1827
      %1829 = vrot.lane.b32.xlu0 %v577, 126
      %v1830 = vpop.permute.xlu0 %1829
      %vm1831 = vcmp.lt.s32.totalorder %v645, 126
      %v1832 = vsel %vm1831, %v1816, %v1824
      %v1833 = vsel %vm1831, %v1818, %v1826
      %v1834 = vsel %vm1831, %v1820, %v1828
      %v1835 = vsel %vm1831, %v1822, %v1830
      %v1836 = vsel %vm1831, %v1808, %v1816
      %v1837 = vsel %vm1831, %v1810, %v1818
      %v1838 = vsel %vm1831, %v1812, %v1820
      %v1839 = vsel %vm1831, %v1814, %v1822
      %v1840 = vsel %vm1831, %v1800, %v1808
      %v1841 = vsel %vm1831, %v1802, %v1810
      %v1842 = vsel %vm1831, %v1804, %v1812
      %v1843 = vsel %vm1831, %v1806, %v1814
      %v1844 = vsel %vm1831, %v1824, %v1800
      %v1845 = vsel %vm1831, %v1826, %v1802
      %v1846 = vsel %vm1831, %v1828, %v1804
      %v1847 = vsel %vm1831, %v1830, %v1806
      %1848 = vrot.lane.b32.xlu0 %v420, 125
      %v1849 = vpop.permute.xlu0 %1848
      %1850 = vrot.lane.b32.xlu0 %v426, 125
      %v1851 = vpop.permute.xlu0 %1850
      %1852 = vrot.lane.b32.xlu0 %v444, 125
      %v1853 = vpop.permute.xlu0 %1852
      %1854 = vrot.lane.b32.xlu0 %v450, 125
      %v1855 = vpop.permute.xlu0 %1854
      %1856 = vrot.lane.b32.xlu0 %v422, 125
      %v1857 = vpop.permute.xlu0 %1856
      %1858 = vrot.lane.b32.xlu0 %v428, 125
      %v1859 = vpop.permute.xlu0 %1858
      %1860 = vrot.lane.b32.xlu0 %v446, 125
      %v1861 = vpop.permute.xlu0 %1860
      %1862 = vrot.lane.b32.xlu0 %v452, 125
      %v1863 = vpop.permute.xlu0 %1862
      %1864 = vrot.lane.b32.xlu0 %v557, 125
      %v1865 = vpop.permute.xlu0 %1864
      %1866 = vrot.lane.b32.xlu0 %v563, 125
      %v1867 = vpop.permute.xlu0 %1866
      %1868 = vrot.lane.b32.xlu0 %v581, 125
      %v1869 = vpop.permute.xlu0 %1868
      %1870 = vrot.lane.b32.xlu0 %v587, 125
      %v1871 = vpop.permute.xlu0 %1870
      %1872 = vrot.lane.b32.xlu0 %v559, 125
      %v1873 = vpop.permute.xlu0 %1872
      %1874 = vrot.lane.b32.xlu0 %v565, 125
      %v1875 = vpop.permute.xlu0 %1874
      %1876 = vrot.lane.b32.xlu0 %v583, 125
      %v1877 = vpop.permute.xlu0 %1876
      %1878 = vrot.lane.b32.xlu0 %v589, 125
      %v1879 = vpop.permute.xlu0 %1878
      %vm1880 = vcmp.lt.s32.totalorder %v645, 125
      %v1881 = vsel %vm1880, %v1865, %v1873
      %v1882 = vsel %vm1880, %v1867, %v1875
      %v1883 = vsel %vm1880, %v1869, %v1877
      %v1884 = vsel %vm1880, %v1871, %v1879
      %v1885 = vsel %vm1880, %v1857, %v1865
      %v1886 = vsel %vm1880, %v1859, %v1867
      %v1887 = vsel %vm1880, %v1861, %v1869
      %v1888 = vsel %vm1880, %v1863, %v1871
      %v1889 = vsel %vm1880, %v1849, %v1857
      %v1890 = vsel %vm1880, %v1851, %v1859
      %v1891 = vsel %vm1880, %v1853, %v1861
      %v1892 = vsel %vm1880, %v1855, %v1863
      %v1893 = vsel %vm1880, %v1873, %v1849
      %v1894 = vsel %vm1880, %v1875, %v1851
      %v1895 = vsel %vm1880, %v1877, %v1853
      %v1896 = vsel %vm1880, %v1879, %v1855
      %v1897 = vmul.f32 %v596, %v1840
      %v1898 = vmul.f32 %v597, %v1836
      %v1899 = vmul.f32 %v598, %v1832
      %v1900 = vmul.f32 %v599, %v1844
      %v1901 = vmul.f32 %v600, %v1841
      %v1902 = vmul.f32 %v601, %v1837
      %v1903 = vmul.f32 %v602, %v1833
      %v1904 = vmul.f32 %v603, %v1845
      %v1905 = vmul.f32 %v604, %v1889
      %v1906 = vmul.f32 %v605, %v1885
      %v1907 = vmul.f32 %v606, %v1881
      %v1908 = vmul.f32 %v607, %v1893
      %v1909 = vmul.f32 %v608, %v1890
      %v1910 = vmul.f32 %v609, %v1886
      %v1911 = vmul.f32 %v610, %v1882
      %v1912 = vmul.f32 %v611, %v1894
      %1913 = vmatprep.subr.mxu0 %v1898
      %1914 = vmatpush1.msra.mxu0 %v1897
      %1915 = vmatprep.subr.mxu0 %v1902
      %1916 = vmatpush1.msra.mxu0 %v1901
      %1917 = vmatprep.subr.mxu0 %v1906
      %1918 = vmatpush1.msra.mxu0 %v1905
      %1919 = vmatprep.subr.mxu0 %v1910
      %1920 = vmatpush1.msra.mxu0 %v1909
      %1921 = vmatprep.subr.mxu0 0.0
      %1922 = vmatpush1.msra.mxu0 0.0
      %1923 = vmatprep.subr.mxu0 0.0
      %1924 = vmatpush1.msra.mxu0 0.0
      %1925 = vmatprep.subr.mxu0 0.0
      %1926 = vmatpush1.msra.mxu0 0.0
      %1927 = vmatprep.subr.mxu0 0.0
      %1928 = vmatpush1.msra.mxu0 0.0
      %1929 = vmatprep.subr.mxu0 0.0
      %1930 = vmatpush1.msra.mxu0 0.0
      %1931 = vmatprep.subr.mxu0 0.0
      %1932 = vmatpush1.msra.mxu0 0.0
      %1933 = vmatprep.subr.mxu0 0.0
      %1934 = vmatpush1.msra.mxu0 0.0
      %1935 = vmatprep.subr.mxu0 0.0
      %1936 = vmatpush1.msra.mxu0 0.0
      %1937 = vmatprep.subr.mxu0 0.0
      %1938 = vmatpush1.msra.mxu0 0.0
      %1939 = vmatprep.subr.mxu0 0.0
      %1940 = vmatpush1.msra.mxu0 0.0
      %1941 = vmatprep.subr.mxu0 0.0
      %1942 = vmatpush1.msra.mxu0 0.0
      %1943 = vmatprep.subr.mxu0 0.0
      %1944 = vmatpush1.msra.mxu0 0.0
      %1945 = vmatprep.subr.mxu0 0.0
      %1946 = vmatpush1.msra.mxu0 0.0
      %1947 = vmatprep.subr.mxu0 0.0
      %1948 = vmatpush1.msra.mxu0 0.0
      %1949 = vmatprep.subr.mxu0 0.0
      %1950 = vmatpush1.msra.mxu0 0.0
      %1951 = vmatprep.subr.mxu0 0.0
      %1952 = vmatpush1.msra.mxu0 0.0
      %1953 = vmatprep.subr.mxu0 0.0
      %1954 = vmatpush1.msra.mxu0 0.0
      %1955 = vmatprep.subr.mxu0 0.0
      %1956 = vmatpush1.msra.mxu0 0.0
      %1957 = vmatprep.subr.mxu0 0.0
      %1958 = vmatpush1.msra.mxu0 0.0
      %1959 = vmatprep.subr.mxu0 0.0
      %1960 = vmatpush1.msra.mxu0 0.0
      %1961 = vmatprep.subr.mxu0 0.0
      %1962 = vmatpush1.msra.mxu0 0.0
      %1963 = vmatprep.subr.mxu0 0.0
      %1964 = vmatpush1.msra.mxu0 0.0
      %1965 = vmatprep.subr.mxu0 0.0
      %1966 = vmatpush1.msra.mxu0 0.0
      %1967 = vmatprep.subr.mxu0 0.0
      %1968 = vmatpush1.msra.mxu0 0.0
      %1969 = vmatprep.subr.mxu0 0.0
      %1970 = vmatpush1.msra.mxu0 0.0
      %1971 = vmatprep.subr.mxu0 0.0
      %1972 = vmatpush1.msra.mxu0 0.0
      %1973 = vmatprep.subr.mxu0 0.0
      %1974 = vmatpush1.msra.mxu0 0.0
      %1975 = vmatprep.subr.mxu0 0.0
      %1976 = vmatpush1.msra.mxu0 0.0
      %1977 = vmatprep.mubr.f32.mxu0 0.0
      %1978 = vmatmul.mubr.f32.gmra.mrb[0].mxu0 %v729
      %v1979 = vpop.f32.mrb[0].mxu0
      %v1980 = vadd.f32 0.0, %v1979
      %v1981 = vpop.f32.mrb[0].mxu0
      %v1982 = vadd.f32 0.0, %v1981
      %1983 = vdwg.mxu0
      %1984 = vmatprep.subr.mxu0 %v1900
      %1985 = vmatpush1.msra.mxu0 %v1899
      %1986 = vmatprep.subr.mxu0 %v1904
      %1987 = vmatpush1.msra.mxu0 %v1903
      %1988 = vmatprep.subr.mxu0 %v1908
      %1989 = vmatpush1.msra.mxu0 %v1907
      %1990 = vmatprep.subr.mxu0 %v1912
      %1991 = vmatpush1.msra.mxu0 %v1911
      %1992 = vmatprep.subr.mxu0 0.0
      %1993 = vmatpush1.msra.mxu0 0.0
      %1994 = vmatprep.subr.mxu0 0.0
      %1995 = vmatpush1.msra.mxu0 0.0
      %1996 = vmatprep.subr.mxu0 0.0
      %1997 = vmatpush1.msra.mxu0 0.0
      %1998 = vmatprep.subr.mxu0 0.0
      %1999 = vmatpush1.msra.mxu0 0.0
      %2000 = vmatprep.subr.mxu0 0.0
      %2001 = vmatpush1.msra.mxu0 0.0
      %2002 = vmatprep.subr.mxu0 0.0
      %2003 = vmatpush1.msra.mxu0 0.0
      %2004 = vmatprep.subr.mxu0 0.0
      %2005 = vmatpush1.msra.mxu0 0.0
      %2006 = vmatprep.subr.mxu0 0.0
      %2007 = vmatpush1.msra.mxu0 0.0
      %2008 = vmatprep.subr.mxu0 0.0
      %2009 = vmatpush1.msra.mxu0 0.0
      %2010 = vmatprep.subr.mxu0 0.0
      %2011 = vmatpush1.msra.mxu0 0.0
      %2012 = vmatprep.subr.mxu0 0.0
      %2013 = vmatpush1.msra.mxu0 0.0
      %2014 = vmatprep.subr.mxu0 0.0
      %2015 = vmatpush1.msra.mxu0 0.0
      %2016 = vmatprep.subr.mxu0 0.0
      %2017 = vmatpush1.msra.mxu0 0.0
      %2018 = vmatprep.subr.mxu0 0.0
      %2019 = vmatpush1.msra.mxu0 0.0
      %2020 = vmatprep.subr.mxu0 0.0
      %2021 = vmatpush1.msra.mxu0 0.0
      %2022 = vmatprep.subr.mxu0 0.0
      %2023 = vmatpush1.msra.mxu0 0.0
      %2024 = vmatprep.subr.mxu0 0.0
      %2025 = vmatpush1.msra.mxu0 0.0
      %2026 = vmatprep.subr.mxu0 0.0
      %2027 = vmatpush1.msra.mxu0 0.0
      %2028 = vmatprep.subr.mxu0 0.0
      %2029 = vmatpush1.msra.mxu0 0.0
      %2030 = vmatprep.subr.mxu0 0.0
      %2031 = vmatpush1.msra.mxu0 0.0
      %2032 = vmatprep.subr.mxu0 0.0
      %2033 = vmatpush1.msra.mxu0 0.0
      %2034 = vmatprep.subr.mxu0 0.0
      %2035 = vmatpush1.msra.mxu0 0.0
      %2036 = vmatprep.subr.mxu0 0.0
      %2037 = vmatpush1.msra.mxu0 0.0
      %2038 = vmatprep.subr.mxu0 0.0
      %2039 = vmatpush1.msra.mxu0 0.0
      %2040 = vmatprep.subr.mxu0 0.0
      %2041 = vmatpush1.msra.mxu0 0.0
      %2042 = vmatprep.subr.mxu0 0.0
      %2043 = vmatpush1.msra.mxu0 0.0
      %2044 = vmatprep.subr.mxu0 0.0
      %2045 = vmatpush1.msra.mxu0 0.0
      %2046 = vmatprep.subr.mxu0 0.0
      %2047 = vmatpush1.msra.mxu0 0.0
      %2048 = vmatprep.mubr.f32.mxu0 0.0
      %2049 = vmatmul.mubr.f32.gmra.mrb[0].mxu0 %v729
      %v2050 = vpop.f32.mrb[0].mxu0
      %v2051 = vadd.f32 0.0, %v2050
      %v2052 = vpop.f32.mrb[0].mxu0
      %v2053 = vadd.f32 0.0, %v2052
      %2054 = vdwg.mxu0
      %2055 = vrot.lane.b32.xlu0 %v408, 86
      %v2056 = vpop.permute.xlu0 %2055
      %2057 = vrot.lane.b32.xlu0 %v414, 86
      %v2058 = vpop.permute.xlu0 %2057
      %2059 = vrot.lane.b32.xlu0 %v432, 86
      %v2060 = vpop.permute.xlu0 %2059
      %2061 = vrot.lane.b32.xlu0 %v438, 86
      %v2062 = vpop.permute.xlu0 %2061
      %2063 = vrot.lane.b32.xlu0 %v410, 86
      %v2064 = vpop.permute.xlu0 %2063
      %2065 = vrot.lane.b32.xlu0 %v416, 86
      %v2066 = vpop.permute.xlu0 %2065
      %2067 = vrot.lane.b32.xlu0 %v434, 86
      %v2068 = vpop.permute.xlu0 %2067
      %2069 = vrot.lane.b32.xlu0 %v440, 86
      %v2070 = vpop.permute.xlu0 %2069
      %2071 = vrot.lane.b32.xlu0 %v545, 86
      %v2072 = vpop.permute.xlu0 %2071
      %2073 = vrot.lane.b32.xlu0 %v551, 86
      %v2074 = vpop.permute.xlu0 %2073
      %2075 = vrot.lane.b32.xlu0 %v569, 86
      %v2076 = vpop.permute.xlu0 %2075
      %2077 = vrot.lane.b32.xlu0 %v575, 86
      %v2078 = vpop.permute.xlu0 %2077
      %2079 = vrot.lane.b32.xlu0 %v547, 86
      %v2080 = vpop.permute.xlu0 %2079
      %2081 = vrot.lane.b32.xlu0 %v553, 86
      %v2082 = vpop.permute.xlu0 %2081
      %2083 = vrot.lane.b32.xlu0 %v571, 86
      %v2084 = vpop.permute.xlu0 %2083
      %2085 = vrot.lane.b32.xlu0 %v577, 86
      %v2086 = vpop.permute.xlu0 %2085
      %vm2087 = vcmp.lt.s32.totalorder %v645, 86
      %v2088 = vsel %vm2087, %v2072, %v2080
      %v2089 = vsel %vm2087, %v2074, %v2082
      %v2090 = vsel %vm2087, %v2076, %v2084
      %v2091 = vsel %vm2087, %v2078, %v2086
      %v2092 = vsel %vm2087, %v2064, %v2072
      %v2093 = vsel %vm2087, %v2066, %v2074
      %v2094 = vsel %vm2087, %v2068, %v2076
      %v2095 = vsel %vm2087, %v2070, %v2078
      %v2096 = vsel %vm2087, %v2056, %v2064
      %v2097 = vsel %vm2087, %v2058, %v2066
      %v2098 = vsel %vm2087, %v2060, %v2068
      %v2099 = vsel %vm2087, %v2062, %v2070
      %v2100 = vsel %vm2087, %v2080, %v2056
      %v2101 = vsel %vm2087, %v2082, %v2058
      %v2102 = vsel %vm2087, %v2084, %v2060
      %v2103 = vsel %vm2087, %v2086, %v2062
      %2104 = vrot.lane.b32.xlu0 %v420, 65
      %v2105 = vpop.permute.xlu0 %2104
      %2106 = vrot.lane.b32.xlu0 %v426, 65
      %v2107 = vpop.permute.xlu0 %2106
      %2108 = vrot.lane.b32.xlu0 %v444, 65
      %v2109 = vpop.permute.xlu0 %2108
      %2110 = vrot.lane.b32.xlu0 %v450, 65
      %v2111 = vpop.permute.xlu0 %2110
      %2112 = vrot.lane.b32.xlu0 %v422, 65
      %v2113 = vpop.permute.xlu0 %2112
      %2114 = vrot.lane.b32.xlu0 %v428, 65
      %v2115 = vpop.permute.xlu0 %2114
      %2116 = vrot.lane.b32.xlu0 %v446, 65
      %v2117 = vpop.permute.xlu0 %2116
      %2118 = vrot.lane.b32.xlu0 %v452, 65
      %v2119 = vpop.permute.xlu0 %2118
      %2120 = vrot.lane.b32.xlu0 %v557, 65
      %v2121 = vpop.permute.xlu0 %2120
      %2122 = vrot.lane.b32.xlu0 %v563, 65
      %v2123 = vpop.permute.xlu0 %2122
      %2124 = vrot.lane.b32.xlu0 %v581, 65
      %v2125 = vpop.permute.xlu0 %2124
      %2126 = vrot.lane.b32.xlu0 %v587, 65
      %v2127 = vpop.permute.xlu0 %2126
      %2128 = vrot.lane.b32.xlu0 %v559, 65
      %v2129 = vpop.permute.xlu0 %2128
      %2130 = vrot.lane.b32.xlu0 %v565, 65
      %v2131 = vpop.permute.xlu0 %2130
      %2132 = vrot.lane.b32.xlu0 %v583, 65
      %v2133 = vpop.permute.xlu0 %2132
      %2134 = vrot.lane.b32.xlu0 %v589, 65
      %v2135 = vpop.permute.xlu0 %2134
      %vm2136 = vcmp.lt.s32.totalorder %v645, 65
      %v2137 = vsel %vm2136, %v2121, %v2129
      %v2138 = vsel %vm2136, %v2123, %v2131
      %v2139 = vsel %vm2136, %v2125, %v2133
      %v2140 = vsel %vm2136, %v2127, %v2135
      %v2141 = vsel %vm2136, %v2113, %v2121
      %v2142 = vsel %vm2136, %v2115, %v2123
      %v2143 = vsel %vm2136, %v2117, %v2125
      %v2144 = vsel %vm2136, %v2119, %v2127
      %v2145 = vsel %vm2136, %v2105, %v2113
      %v2146 = vsel %vm2136, %v2107, %v2115
      %v2147 = vsel %vm2136, %v2109, %v2117
      %v2148 = vsel %vm2136, %v2111, %v2119
      %v2149 = vsel %vm2136, %v2129, %v2105
      %v2150 = vsel %vm2136, %v2131, %v2107
      %v2151 = vsel %vm2136, %v2133, %v2109
      %v2152 = vsel %vm2136, %v2135, %v2111
      %v2153 = vmul.f32 %v596, %v2096
      %v2154 = vmul.f32 %v597, %v2092
      %v2155 = vmul.f32 %v598, %v2088
      %v2156 = vmul.f32 %v599, %v2100
      %v2157 = vmul.f32 %v600, %v2097
      %v2158 = vmul.f32 %v601, %v2093
      %v2159 = vmul.f32 %v602, %v2089
      %v2160 = vmul.f32 %v603, %v2101
      %v2161 = vmul.f32 %v604, %v2145
      %v2162 = vmul.f32 %v605, %v2141
      %v2163 = vmul.f32 %v606, %v2137
      %v2164 = vmul.f32 %v607, %v2149
      %v2165 = vmul.f32 %v608, %v2146
      %v2166 = vmul.f32 %v609, %v2142
      %v2167 = vmul.f32 %v610, %v2138
      %v2168 = vmul.f32 %v611, %v2150
      %2169 = vmatprep.subr.mxu0 %v2154
      %2170 = vmatpush1.msra.mxu0 %v2153
      %2171 = vmatprep.subr.mxu0 %v2158
      %2172 = vmatpush1.msra.mxu0 %v2157
      %2173 = vmatprep.subr.mxu0 %v2162
      %2174 = vmatpush1.msra.mxu0 %v2161
      %2175 = vmatprep.subr.mxu0 %v2166
      %2176 = vmatpush1.msra.mxu0 %v2165
      %2177 = vmatprep.subr.mxu0 0.0
      %2178 = vmatpush1.msra.mxu0 0.0
      %2179 = vmatprep.subr.mxu0 0.0
      %2180 = vmatpush1.msra.mxu0 0.0
      %2181 = vmatprep.subr.mxu0 0.0
      %2182 = vmatpush1.msra.mxu0 0.0
      %2183 = vmatprep.subr.mxu0 0.0
      %2184 = vmatpush1.msra.mxu0 0.0
      %2185 = vmatprep.subr.mxu0 0.0
      %2186 = vmatpush1.msra.mxu0 0.0
      %2187 = vmatprep.subr.mxu0 0.0
      %2188 = vmatpush1.msra.mxu0 0.0
      %2189 = vmatprep.subr.mxu0 0.0
      %2190 = vmatpush1.msra.mxu0 0.0
      %2191 = vmatprep.subr.mxu0 0.0
      %2192 = vmatpush1.msra.mxu0 0.0
      %2193 = vmatprep.subr.mxu0 0.0
      %2194 = vmatpush1.msra.mxu0 0.0
      %2195 = vmatprep.subr.mxu0 0.0
      %2196 = vmatpush1.msra.mxu0 0.0
      %2197 = vmatprep.subr.mxu0 0.0
      %2198 = vmatpush1.msra.mxu0 0.0
      %2199 = vmatprep.subr.mxu0 0.0
      %2200 = vmatpush1.msra.mxu0 0.0
      %2201 = vmatprep.subr.mxu0 0.0
      %2202 = vmatpush1.msra.mxu0 0.0
      %2203 = vmatprep.subr.mxu0 0.0
      %2204 = vmatpush1.msra.mxu0 0.0
      %2205 = vmatprep.subr.mxu0 0.0
      %2206 = vmatpush1.msra.mxu0 0.0
      %2207 = vmatprep.subr.mxu0 0.0
      %2208 = vmatpush1.msra.mxu0 0.0
      %2209 = vmatprep.subr.mxu0 0.0
      %2210 = vmatpush1.msra.mxu0 0.0
      %2211 = vmatprep.subr.mxu0 0.0
      %2212 = vmatpush1.msra.mxu0 0.0
      %2213 = vmatprep.subr.mxu0 0.0
      %2214 = vmatpush1.msra.mxu0 0.0
      %2215 = vmatprep.subr.mxu0 0.0
      %2216 = vmatpush1.msra.mxu0 0.0
      %2217 = vmatprep.subr.mxu0 0.0
      %2218 = vmatpush1.msra.mxu0 0.0
      %2219 = vmatprep.subr.mxu0 0.0
      %2220 = vmatpush1.msra.mxu0 0.0
      %2221 = vmatprep.subr.mxu0 0.0
      %2222 = vmatpush1.msra.mxu0 0.0
      %2223 = vmatprep.subr.mxu0 0.0
      %2224 = vmatpush1.msra.mxu0 0.0
      %2225 = vmatprep.subr.mxu0 0.0
      %2226 = vmatpush1.msra.mxu0 0.0
      %2227 = vmatprep.subr.mxu0 0.0
      %2228 = vmatpush1.msra.mxu0 0.0
      %2229 = vmatprep.subr.mxu0 0.0
      %2230 = vmatpush1.msra.mxu0 0.0
      %2231 = vmatprep.subr.mxu0 0.0
      %2232 = vmatpush1.msra.mxu0 0.0
      %2233 = vmatprep.mubr.f32.mxu0 0.0
      %2234 = vmatmul.mubr.f32.gmra.mrb[0].mxu0 %v729
      %v2235 = vpop.f32.mrb[0].mxu0
      %v2236 = vadd.f32 0.0, %v2235
      %v2237 = vpop.f32.mrb[0].mxu0
      %v2238 = vadd.f32 0.0, %v2237
      %2239 = vdwg.mxu0
      %2240 = vmatprep.subr.mxu0 %v2156
      %2241 = vmatpush1.msra.mxu0 %v2155
      %2242 = vmatprep.subr.mxu0 %v2160
      %2243 = vmatpush1.msra.mxu0 %v2159
      %2244 = vmatprep.subr.mxu0 %v2164
      %2245 = vmatpush1.msra.mxu0 %v2163
      %2246 = vmatprep.subr.mxu0 %v2168
      %2247 = vmatpush1.msra.mxu0 %v2167
      %2248 = vmatprep.subr.mxu0 0.0
      %2249 = vmatpush1.msra.mxu0 0.0
      %2250 = vmatprep.subr.mxu0 0.0
      %2251 = vmatpush1.msra.mxu0 0.0
      %2252 = vmatprep.subr.mxu0 0.0
      %2253 = vmatpush1.msra.mxu0 0.0
      %2254 = vmatprep.subr.mxu0 0.0
      %2255 = vmatpush1.msra.mxu0 0.0
      %2256 = vmatprep.subr.mxu0 0.0
      %2257 = vmatpush1.msra.mxu0 0.0
      %2258 = vmatprep.subr.mxu0 0.0
      %2259 = vmatpush1.msra.mxu0 0.0
      %2260 = vmatprep.subr.mxu0 0.0
      %2261 = vmatpush1.msra.mxu0 0.0
      %2262 = vmatprep.subr.mxu0 0.0
      %2263 = vmatpush1.msra.mxu0 0.0
      %2264 = vmatprep.subr.mxu0 0.0
      %2265 = vmatpush1.msra.mxu0 0.0
      %2266 = vmatprep.subr.mxu0 0.0
      %2267 = vmatpush1.msra.mxu0 0.0
      %2268 = vmatprep.subr.mxu0 0.0
      %2269 = vmatpush1.msra.mxu0 0.0
      %2270 = vmatprep.subr.mxu0 0.0
      %2271 = vmatpush1.msra.mxu0 0.0
      %2272 = vmatprep.subr.mxu0 0.0
      %2273 = vmatpush1.msra.mxu0 0.0
      %2274 = vmatprep.subr.mxu0 0.0
      %2275 = vmatpush1.msra.mxu0 0.0
      %2276 = vmatprep.subr.mxu0 0.0
      %2277 = vmatpush1.msra.mxu0 0.0
      %2278 = vmatprep.subr.mxu0 0.0
      %2279 = vmatpush1.msra.mxu0 0.0
      %2280 = vmatprep.subr.mxu0 0.0
      %2281 = vmatpush1.msra.mxu0 0.0
      %2282 = vmatprep.subr.mxu0 0.0
      %2283 = vmatpush1.msra.mxu0 0.0
      %2284 = vmatprep.subr.mxu0 0.0
      %2285 = vmatpush1.msra.mxu0 0.0
      %2286 = vmatprep.subr.mxu0 0.0
      %2287 = vmatpush1.msra.mxu0 0.0
      %2288 = vmatprep.subr.mxu0 0.0
      %2289 = vmatpush1.msra.mxu0 0.0
      %2290 = vmatprep.subr.mxu0 0.0
      %2291 = vmatpush1.msra.mxu0 0.0
      %2292 = vmatprep.subr.mxu0 0.0
      %2293 = vmatpush1.msra.mxu0 0.0
      %2294 = vmatprep.subr.mxu0 0.0
      %2295 = vmatpush1.msra.mxu0 0.0
      %2296 = vmatprep.subr.mxu0 0.0
      %2297 = vmatpush1.msra.mxu0 0.0
      %2298 = vmatprep.subr.mxu0 0.0
      %2299 = vmatpush1.msra.mxu0 0.0
      %2300 = vmatprep.subr.mxu0 0.0
      %2301 = vmatpush1.msra.mxu0 0.0
      %2302 = vmatprep.subr.mxu0 0.0
      %2303 = vmatpush1.msra.mxu0 0.0
      %2304 = vmatprep.mubr.f32.mxu0 0.0
      %2305 = vmatmul.mubr.f32.gmra.mrb[0].mxu0 %v729
      %v2306 = vpop.f32.mrb[0].mxu0
      %v2307 = vadd.f32 0.0, %v2306
      %v2308 = vpop.f32.mrb[0].mxu0
      %v2309 = vadd.f32 0.0, %v2308
      %2310 = vdwg.mxu0
      %2311 = vrot.lane.b32.xlu0 %v408, 84
      %v2312 = vpop.permute.xlu0 %2311
      %2313 = vrot.lane.b32.xlu0 %v414, 84
      %v2314 = vpop.permute.xlu0 %2313
      %2315 = vrot.lane.b32.xlu0 %v432, 84
      %v2316 = vpop.permute.xlu0 %2315
      %2317 = vrot.lane.b32.xlu0 %v438, 84
      %v2318 = vpop.permute.xlu0 %2317
      %2319 = vrot.lane.b32.xlu0 %v410, 84
      %v2320 = vpop.permute.xlu0 %2319
      %2321 = vrot.lane.b32.xlu0 %v416, 84
      %v2322 = vpop.permute.xlu0 %2321
      %2323 = vrot.lane.b32.xlu0 %v434, 84
      %v2324 = vpop.permute.xlu0 %2323
      %2325 = vrot.lane.b32.xlu0 %v440, 84
      %v2326 = vpop.permute.xlu0 %2325
      %2327 = vrot.lane.b32.xlu0 %v545, 84
      %v2328 = vpop.permute.xlu0 %2327
      %2329 = vrot.lane.b32.xlu0 %v551, 84
      %v2330 = vpop.permute.xlu0 %2329
      %2331 = vrot.lane.b32.xlu0 %v569, 84
      %v2332 = vpop.permute.xlu0 %2331
      %2333 = vrot.lane.b32.xlu0 %v575, 84
      %v2334 = vpop.permute.xlu0 %2333
      %2335 = vrot.lane.b32.xlu0 %v547, 84
      %v2336 = vpop.permute.xlu0 %2335
      %2337 = vrot.lane.b32.xlu0 %v553, 84
      %v2338 = vpop.permute.xlu0 %2337
      %2339 = vrot.lane.b32.xlu0 %v571, 84
      %v2340 = vpop.permute.xlu0 %2339
      %2341 = vrot.lane.b32.xlu0 %v577, 84
      %v2342 = vpop.permute.xlu0 %2341
      %vm2343 = vcmp.lt.s32.totalorder %v645, 84
      %v2344 = vsel %vm2343, %v2328, %v2336
      %v2345 = vsel %vm2343, %v2330, %v2338
      %v2346 = vsel %vm2343, %v2332, %v2340
      %v2347 = vsel %vm2343, %v2334, %v2342
      %v2348 = vsel %vm2343, %v2320, %v2328
      %v2349 = vsel %vm2343, %v2322, %v2330
      %v2350 = vsel %vm2343, %v2324, %v2332
      %v2351 = vsel %vm2343, %v2326, %v2334
      %v2352 = vsel %vm2343, %v2312, %v2320
      %v2353 = vsel %vm2343, %v2314, %v2322
      %v2354 = vsel %vm2343, %v2316, %v2324
      %v2355 = vsel %vm2343, %v2318, %v2326
      %v2356 = vsel %vm2343, %v2336, %v2312
      %v2357 = vsel %vm2343, %v2338, %v2314
      %v2358 = vsel %vm2343, %v2340, %v2316
      %v2359 = vsel %vm2343, %v2342, %v2318
      %2360 = vrot.lane.b32.xlu0 %v420, 62
      %v2361 = vpop.permute.xlu0 %2360
      %2362 = vrot.lane.b32.xlu0 %v426, 62
      %v2363 = vpop.permute.xlu0 %2362
      %2364 = vrot.lane.b32.xlu0 %v444, 62
      %v2365 = vpop.permute.xlu0 %2364
      %2366 = vrot.lane.b32.xlu0 %v450, 62
      %v2367 = vpop.permute.xlu0 %2366
      %2368 = vrot.lane.b32.xlu0 %v422, 62
      %v2369 = vpop.permute.xlu0 %2368
      %2370 = vrot.lane.b32.xlu0 %v428, 62
      %v2371 = vpop.permute.xlu0 %2370
      %2372 = vrot.lane.b32.xlu0 %v446, 62
      %v2373 = vpop.permute.xlu0 %2372
      %2374 = vrot.lane.b32.xlu0 %v452, 62
      %v2375 = vpop.permute.xlu0 %2374
      %2376 = vrot.lane.b32.xlu0 %v557, 62
      %v2377 = vpop.permute.xlu0 %2376
      %2378 = vrot.lane.b32.xlu0 %v563, 62
      %v2379 = vpop.permute.xlu0 %2378
      %2380 = vrot.lane.b32.xlu0 %v581, 62
      %v2381 = vpop.permute.xlu0 %2380
      %2382 = vrot.lane.b32.xlu0 %v587, 62
      %v2383 = vpop.permute.xlu0 %2382
      %2384 = vrot.lane.b32.xlu0 %v559, 62
      %v2385 = vpop.permute.xlu0 %2384
      %2386 = vrot.lane.b32.xlu0 %v565, 62
      %v2387 = vpop.permute.xlu0 %2386
      %2388 = vrot.lane.b32.xlu0 %v583, 62
      %v2389 = vpop.permute.xlu0 %2388
      %2390 = vrot.lane.b32.xlu0 %v589, 62
      %v2391 = vpop.permute.xlu0 %2390
      %vm2392 = vcmp.lt.s32.totalorder %v645, 62
      %v2393 = vsel %vm2392, %v2377, %v2385
      %v2394 = vsel %vm2392, %v2379, %v2387
      %v2395 = vsel %vm2392, %v2381, %v2389
      %v2396 = vsel %vm2392, %v2383, %v2391
      %v2397 = vsel %vm2392, %v2369, %v2377
      %v2398 = vsel %vm2392, %v2371, %v2379
      %v2399 = vsel %vm2392, %v2373, %v2381
      %v2400 = vsel %vm2392, %v2375, %v2383
      %v2401 = vsel %vm2392, %v2361, %v2369
      %v2402 = vsel %vm2392, %v2363, %v2371
      %v2403 = vsel %vm2392, %v2365, %v2373
      %v2404 = vsel %vm2392, %v2367, %v2375
      %v2405 = vsel %vm2392, %v2385, %v2361
      %v2406 = vsel %vm2392, %v2387, %v2363
      %v2407 = vsel %vm2392, %v2389, %v2365
      %v2408 = vsel %vm2392, %v2391, %v2367
      %v2409 = vmul.f32 %v596, %v2352
      %v2410 = vmul.f32 %v597, %v2348
      %v2411 = vmul.f32 %v598, %v2344
      %v2412 = vmul.f32 %v599, %v2356
      %v2413 = vmul.f32 %v600, %v2353
      %v2414 = vmul.f32 %v601, %v2349
      %v2415 = vmul.f32 %v602, %v2345
      %v2416 = vmul.f32 %v603, %v2357
      %v2417 = vmul.f32 %v604, %v2401
      %v2418 = vmul.f32 %v605, %v2397
      %v2419 = vmul.f32 %v606, %v2393
      %v2420 = vmul.f32 %v607, %v2405
      %v2421 = vmul.f32 %v608, %v2402
      %v2422 = vmul.f32 %v609, %v2398
      %v2423 = vmul.f32 %v610, %v2394
      %v2424 = vmul.f32 %v611, %v2406
      %2425 = vmatprep.subr.mxu0 %v2410
      %2426 = vmatpush1.msra.mxu0 %v2409
      %2427 = vmatprep.subr.mxu0 %v2414
      %2428 = vmatpush1.msra.mxu0 %v2413
      %2429 = vmatprep.subr.mxu0 %v2418
      %2430 = vmatpush1.msra.mxu0 %v2417
      %2431 = vmatprep.subr.mxu0 %v2422
      %2432 = vmatpush1.msra.mxu0 %v2421
      %2433 = vmatprep.subr.mxu0 0.0
      %2434 = vmatpush1.msra.mxu0 0.0
      %2435 = vmatprep.subr.mxu0 0.0
      %2436 = vmatpush1.msra.mxu0 0.0
      %2437 = vmatprep.subr.mxu0 0.0
      %2438 = vmatpush1.msra.mxu0 0.0
      %2439 = vmatprep.subr.mxu0 0.0
      %2440 = vmatpush1.msra.mxu0 0.0
      %2441 = vmatprep.subr.mxu0 0.0
      %2442 = vmatpush1.msra.mxu0 0.0
      %2443 = vmatprep.subr.mxu0 0.0
      %2444 = vmatpush1.msra.mxu0 0.0
      %2445 = vmatprep.subr.mxu0 0.0
      %2446 = vmatpush1.msra.mxu0 0.0
      %2447 = vmatprep.subr.mxu0 0.0
      %2448 = vmatpush1.msra.mxu0 0.0
      %2449 = vmatprep.subr.mxu0 0.0
      %2450 = vmatpush1.msra.mxu0 0.0
      %2451 = vmatprep.subr.mxu0 0.0
      %2452 = vmatpush1.msra.mxu0 0.0
      %2453 = vmatprep.subr.mxu0 0.0
      %2454 = vmatpush1.msra.mxu0 0.0
      %2455 = vmatprep.subr.mxu0 0.0
      %2456 = vmatpush1.msra.mxu0 0.0
      %2457 = vmatprep.subr.mxu0 0.0
      %2458 = vmatpush1.msra.mxu0 0.0
      %2459 = vmatprep.subr.mxu0 0.0
      %2460 = vmatpush1.msra.mxu0 0.0
      %2461 = vmatprep.subr.mxu0 0.0
      %2462 = vmatpush1.msra.mxu0 0.0
      %2463 = vmatprep.subr.mxu0 0.0
      %2464 = vmatpush1.msra.mxu0 0.0
      %2465 = vmatprep.subr.mxu0 0.0
      %2466 = vmatpush1.msra.mxu0 0.0
      %2467 = vmatprep.subr.mxu0 0.0
      %2468 = vmatpush1.msra.mxu0 0.0
      %2469 = vmatprep.subr.mxu0 0.0
      %2470 = vmatpush1.msra.mxu0 0.0
      %2471 = vmatprep.subr.mxu0 0.0
      %2472 = vmatpush1.msra.mxu0 0.0
      %2473 = vmatprep.subr.mxu0 0.0
      %2474 = vmatpush1.msra.mxu0 0.0
      %2475 = vmatprep.subr.mxu0 0.0
      %2476 = vmatpush1.msra.mxu0 0.0
      %2477 = vmatprep.subr.mxu0 0.0
      %2478 = vmatpush1.msra.mxu0 0.0
      %2479 = vmatprep.subr.mxu0 0.0
      %2480 = vmatpush1.msra.mxu0 0.0
      %2481 = vmatprep.subr.mxu0 0.0
      %2482 = vmatpush1.msra.mxu0 0.0
      %2483 = vmatprep.subr.mxu0 0.0
      %2484 = vmatpush1.msra.mxu0 0.0
      %2485 = vmatprep.subr.mxu0 0.0
      %2486 = vmatpush1.msra.mxu0 0.0
      %2487 = vmatprep.subr.mxu0 0.0
      %2488 = vmatpush1.msra.mxu0 0.0
      %2489 = vmatprep.mubr.f32.mxu0 0.0
      %2490 = vmatmul.mubr.f32.gmra.mrb[0].mxu0 %v729
      %v2491 = vpop.f32.mrb[0].mxu0
      %v2492 = vadd.f32 0.0, %v2491
      %v2493 = vpop.f32.mrb[0].mxu0
      %v2494 = vadd.f32 0.0, %v2493
      %2495 = vdwg.mxu0
      %2496 = vmatprep.subr.mxu0 %v2412
      %2497 = vmatpush1.msra.mxu0 %v2411
      %2498 = vmatprep.subr.mxu0 %v2416
      %2499 = vmatpush1.msra.mxu0 %v2415
      %2500 = vmatprep.subr.mxu0 %v2420
      %2501 = vmatpush1.msra.mxu0 %v2419
      %2502 = vmatprep.subr.mxu0 %v2424
      %2503 = vmatpush1.msra.mxu0 %v2423
      %2504 = vmatprep.subr.mxu0 0.0
      %2505 = vmatpush1.msra.mxu0 0.0
      %2506 = vmatprep.subr.mxu0 0.0
      %2507 = vmatpush1.msra.mxu0 0.0
      %2508 = vmatprep.subr.mxu0 0.0
      %2509 = vmatpush1.msra.mxu0 0.0
      %2510 = vmatprep.subr.mxu0 0.0
      %2511 = vmatpush1.msra.mxu0 0.0
      %2512 = vmatprep.subr.mxu0 0.0
      %2513 = vmatpush1.msra.mxu0 0.0
      %2514 = vmatprep.subr.mxu0 0.0
      %2515 = vmatpush1.msra.mxu0 0.0
      %2516 = vmatprep.subr.mxu0 0.0
      %2517 = vmatpush1.msra.mxu0 0.0
      %2518 = vmatprep.subr.mxu0 0.0
      %2519 = vmatpush1.msra.mxu0 0.0
      %2520 = vmatprep.subr.mxu0 0.0
      %2521 = vmatpush1.msra.mxu0 0.0
      %2522 = vmatprep.subr.mxu0 0.0
      %2523 = vmatpush1.msra.mxu0 0.0
      %2524 = vmatprep.subr.mxu0 0.0
      %2525 = vmatpush1.msra.mxu0 0.0
      %2526 = vmatprep.subr.mxu0 0.0
      %2527 = vmatpush1.msra.mxu0 0.0
      %2528 = vmatprep.subr.mxu0 0.0
      %2529 = vmatpush1.msra.mxu0 0.0
      %2530 = vmatprep.subr.mxu0 0.0
      %2531 = vmatpush1.msra.mxu0 0.0
      %2532 = vmatprep.subr.mxu0 0.0
      %2533 = vmatpush1.msra.mxu0 0.0
      %2534 = vmatprep.subr.mxu0 0.0
      %2535 = vmatpush1.msra.mxu0 0.0
      %2536 = vmatprep.subr.mxu0 0.0
      %2537 = vmatpush1.msra.mxu0 0.0
      %2538 = vmatprep.subr.mxu0 0.0
      %2539 = vmatpush1.msra.mxu0 0.0
      %2540 = vmatprep.subr.mxu0 0.0
      %2541 = vmatpush1.msra.mxu0 0.0
      %2542 = vmatprep.subr.mxu0 0.0
      %2543 = vmatpush1.msra.mxu0 0.0
      %2544 = vmatprep.subr.mxu0 0.0
      %2545 = vmatpush1.msra.mxu0 0.0
      %2546 = vmatprep.subr.mxu0 0.0
      %2547 = vmatpush1.msra.mxu0 0.0
      %2548 = vmatprep.subr.mxu0 0.0
      %2549 = vmatpush1.msra.mxu0 0.0
      %2550 = vmatprep.subr.mxu0 0.0
      %2551 = vmatpush1.msra.mxu0 0.0
      %2552 = vmatprep.subr.mxu0 0.0
      %2553 = vmatpush1.msra.mxu0 0.0
      %2554 = vmatprep.subr.mxu0 0.0
      %2555 = vmatpush1.msra.mxu0 0.0
      %2556 = vmatprep.subr.mxu0 0.0
      %2557 = vmatpush1.msra.mxu0 0.0
      %2558 = vmatprep.subr.mxu0 0.0
      %2559 = vmatpush1.msra.mxu0 0.0
      %2560 = vmatprep.mubr.f32.mxu0 0.0
      %2561 = vmatmul.mubr.f32.gmra.mrb[0].mxu0 %v729
      %v2562 = vpop.f32.mrb[0].mxu0
      %v2563 = vadd.f32 0.0, %v2562
      %v2564 = vpop.f32.mrb[0].mxu0
      %v2565 = vadd.f32 0.0, %v2564
      %2566 = vdwg.mxu0
      %2567 = vrot.lane.b32.xlu0 %v408, 82
      %v2568 = vpop.permute.xlu0 %2567
      %2569 = vrot.lane.b32.xlu0 %v414, 82
      %v2570 = vpop.permute.xlu0 %2569
      %2571 = vrot.lane.b32.xlu0 %v432, 82
      %v2572 = vpop.permute.xlu0 %2571
      %2573 = vrot.lane.b32.xlu0 %v438, 82
      %v2574 = vpop.permute.xlu0 %2573
      %2575 = vrot.lane.b32.xlu0 %v410, 82
      %v2576 = vpop.permute.xlu0 %2575
      %2577 = vrot.lane.b32.xlu0 %v416, 82
      %v2578 = vpop.permute.xlu0 %2577
      %2579 = vrot.lane.b32.xlu0 %v434, 82
      %v2580 = vpop.permute.xlu0 %2579
      %2581 = vrot.lane.b32.xlu0 %v440, 82
      %v2582 = vpop.permute.xlu0 %2581
      %2583 = vrot.lane.b32.xlu0 %v545, 82
      %v2584 = vpop.permute.xlu0 %2583
      %2585 = vrot.lane.b32.xlu0 %v551, 82
      %v2586 = vpop.permute.xlu0 %2585
      %2587 = vrot.lane.b32.xlu0 %v569, 82
      %v2588 = vpop.permute.xlu0 %2587
      %2589 = vrot.lane.b32.xlu0 %v575, 82
      %v2590 = vpop.permute.xlu0 %2589
      %2591 = vrot.lane.b32.xlu0 %v547, 82
      %v2592 = vpop.permute.xlu0 %2591
      %2593 = vrot.lane.b32.xlu0 %v553, 82
      %v2594 = vpop.permute.xlu0 %2593
      %2595 = vrot.lane.b32.xlu0 %v571, 82
      %v2596 = vpop.permute.xlu0 %2595
      %2597 = vrot.lane.b32.xlu0 %v577, 82
      %v2598 = vpop.permute.xlu0 %2597
      %vm2599 = vcmp.lt.s32.totalorder %v645, 82
      %v2600 = vsel %vm2599, %v2584, %v2592
      %v2601 = vsel %vm2599, %v2586, %v2594
      %v2602 = vsel %vm2599, %v2588, %v2596
      %v2603 = vsel %vm2599, %v2590, %v2598
      %v2604 = vsel %vm2599, %v2576, %v2584
      %v2605 = vsel %vm2599, %v2578, %v2586
      %v2606 = vsel %vm2599, %v2580, %v2588
      %v2607 = vsel %vm2599, %v2582, %v2590
      %v2608 = vsel %vm2599, %v2568, %v2576
      %v2609 = vsel %vm2599, %v2570, %v2578
      %v2610 = vsel %vm2599, %v2572, %v2580
      %v2611 = vsel %vm2599, %v2574, %v2582
      %v2612 = vsel %vm2599, %v2592, %v2568
      %v2613 = vsel %vm2599, %v2594, %v2570
      %v2614 = vsel %vm2599, %v2596, %v2572
      %v2615 = vsel %vm2599, %v2598, %v2574
      %2616 = vrot.lane.b32.xlu0 %v420, 59
      %v2617 = vpop.permute.xlu0 %2616
      %2618 = vrot.lane.b32.xlu0 %v426, 59
      %v2619 = vpop.permute.xlu0 %2618
      %2620 = vrot.lane.b32.xlu0 %v444, 59
      %v2621 = vpop.permute.xlu0 %2620
      %2622 = vrot.lane.b32.xlu0 %v450, 59
      %v2623 = vpop.permute.xlu0 %2622
      %2624 = vrot.lane.b32.xlu0 %v422, 59
      %v2625 = vpop.permute.xlu0 %2624
      %2626 = vrot.lane.b32.xlu0 %v428, 59
      %v2627 = vpop.permute.xlu0 %2626
      %2628 = vrot.lane.b32.xlu0 %v446, 59
      %v2629 = vpop.permute.xlu0 %2628
      %2630 = vrot.lane.b32.xlu0 %v452, 59
      %v2631 = vpop.permute.xlu0 %2630
      %2632 = vrot.lane.b32.xlu0 %v557, 59
      %v2633 = vpop.permute.xlu0 %2632
      %2634 = vrot.lane.b32.xlu0 %v563, 59
      %v2635 = vpop.permute.xlu0 %2634
      %2636 = vrot.lane.b32.xlu0 %v581, 59
      %v2637 = vpop.permute.xlu0 %2636
      %2638 = vrot.lane.b32.xlu0 %v587, 59
      %v2639 = vpop.permute.xlu0 %2638
      %2640 = vrot.lane.b32.xlu0 %v559, 59
      %v2641 = vpop.permute.xlu0 %2640
      %2642 = vrot.lane.b32.xlu0 %v565, 59
      %v2643 = vpop.permute.xlu0 %2642
      %2644 = vrot.lane.b32.xlu0 %v583, 59
      %v2645 = vpop.permute.xlu0 %2644
      %2646 = vrot.lane.b32.xlu0 %v589, 59
      %v2647 = vpop.permute.xlu0 %2646
      %vm2648 = vcmp.lt.s32.totalorder %v645, 59
      %v2649 = vsel %vm2648, %v2633, %v2641
      %v2650 = vsel %vm2648, %v2635, %v2643
      %v2651 = vsel %vm2648, %v2637, %v2645
      %v2652 = vsel %vm2648, %v2639, %v2647
      %v2653 = vsel %vm2648, %v2625, %v2633
      %v2654 = vsel %vm2648, %v2627, %v2635
      %v2655 = vsel %vm2648, %v2629, %v2637
      %v2656 = vsel %vm2648, %v2631, %v2639
      %v2657 = vsel %vm2648, %v2617, %v2625
      %v2658 = vsel %vm2648, %v2619, %v2627
      %v2659 = vsel %vm2648, %v2621, %v2629
      %v2660 = vsel %vm2648, %v2623, %v2631
      %v2661 = vsel %vm2648, %v2641, %v2617
      %v2662 = vsel %vm2648, %v2643, %v2619
      %v2663 = vsel %vm2648, %v2645, %v2621
      %v2664 = vsel %vm2648, %v2647, %v2623
      %v2665 = vmul.f32 %v596, %v2608
      %v2666 = vmul.f32 %v597, %v2604
      %v2667 = vmul.f32 %v598, %v2600
      %v2668 = vmul.f32 %v599, %v2612
      %v2669 = vmul.f32 %v600, %v2609
      %v2670 = vmul.f32 %v601, %v2605
      %v2671 = vmul.f32 %v602, %v2601
      %v2672 = vmul.f32 %v603, %v2613
      %v2673 = vmul.f32 %v604, %v2657
      %v2674 = vmul.f32 %v605, %v2653
      %v2675 = vmul.f32 %v606, %v2649
      %v2676 = vmul.f32 %v607, %v2661
      %v2677 = vmul.f32 %v608, %v2658
      %v2678 = vmul.f32 %v609, %v2654
      %v2679 = vmul.f32 %v610, %v2650
      %v2680 = vmul.f32 %v611, %v2662
      %2681 = vmatprep.subr.mxu0 %v2666
      %2682 = vmatpush1.msra.mxu0 %v2665
      %2683 = vmatprep.subr.mxu0 %v2670
      %2684 = vmatpush1.msra.mxu0 %v2669
      %2685 = vmatprep.subr.mxu0 %v2674
      %2686 = vmatpush1.msra.mxu0 %v2673
      %2687 = vmatprep.subr.mxu0 %v2678
      %2688 = vmatpush1.msra.mxu0 %v2677
      %2689 = vmatprep.subr.mxu0 0.0
      %2690 = vmatpush1.msra.mxu0 0.0
      %2691 = vmatprep.subr.mxu0 0.0
      %2692 = vmatpush1.msra.mxu0 0.0
      %2693 = vmatprep.subr.mxu0 0.0
      %2694 = vmatpush1.msra.mxu0 0.0
      %2695 = vmatprep.subr.mxu0 0.0
      %2696 = vmatpush1.msra.mxu0 0.0
      %2697 = vmatprep.subr.mxu0 0.0
      %2698 = vmatpush1.msra.mxu0 0.0
      %2699 = vmatprep.subr.mxu0 0.0
      %2700 = vmatpush1.msra.mxu0 0.0
      %2701 = vmatprep.subr.mxu0 0.0
      %2702 = vmatpush1.msra.mxu0 0.0
      %2703 = vmatprep.subr.mxu0 0.0
      %2704 = vmatpush1.msra.mxu0 0.0
      %2705 = vmatprep.subr.mxu0 0.0
      %2706 = vmatpush1.msra.mxu0 0.0
      %2707 = vmatprep.subr.mxu0 0.0
      %2708 = vmatpush1.msra.mxu0 0.0
      %2709 = vmatprep.subr.mxu0 0.0
      %2710 = vmatpush1.msra.mxu0 0.0
      %2711 = vmatprep.subr.mxu0 0.0
      %2712 = vmatpush1.msra.mxu0 0.0
      %2713 = vmatprep.subr.mxu0 0.0
      %2714 = vmatpush1.msra.mxu0 0.0
      %2715 = vmatprep.subr.mxu0 0.0
      %2716 = vmatpush1.msra.mxu0 0.0
      %2717 = vmatprep.subr.mxu0 0.0
      %2718 = vmatpush1.msra.mxu0 0.0
      %2719 = vmatprep.subr.mxu0 0.0
      %2720 = vmatpush1.msra.mxu0 0.0
      %2721 = vmatprep.subr.mxu0 0.0
      %2722 = vmatpush1.msra.mxu0 0.0
      %2723 = vmatprep.subr.mxu0 0.0
      %2724 = vmatpush1.msra.mxu0 0.0
      %2725 = vmatprep.subr.mxu0 0.0
      %2726 = vmatpush1.msra.mxu0 0.0
      %2727 = vmatprep.subr.mxu0 0.0
      %2728 = vmatpush1.msra.mxu0 0.0
      %2729 = vmatprep.subr.mxu0 0.0
      %2730 = vmatpush1.msra.mxu0 0.0
      %2731 = vmatprep.subr.mxu0 0.0
      %2732 = vmatpush1.msra.mxu0 0.0
      %2733 = vmatprep.subr.mxu0 0.0
      %2734 = vmatpush1.msra.mxu0 0.0
      %2735 = vmatprep.subr.mxu0 0.0
      %2736 = vmatpush1.msra.mxu0 0.0
      %2737 = vmatprep.subr.mxu0 0.0
      %2738 = vmatpush1.msra.mxu0 0.0
      %2739 = vmatprep.subr.mxu0 0.0
      %2740 = vmatpush1.msra.mxu0 0.0
      %2741 = vmatprep.subr.mxu0 0.0
      %2742 = vmatpush1.msra.mxu0 0.0
      %2743 = vmatprep.subr.mxu0 0.0
      %2744 = vmatpush1.msra.mxu0 0.0
      %2745 = vmatprep.mubr.f32.mxu0 0.0
      %2746 = vmatmul.mubr.f32.gmra.mrb[0].mxu0 %v729
      %v2747 = vpop.f32.mrb[0].mxu0
      %v2748 = vadd.f32 0.0, %v2747
      %v2749 = vpop.f32.mrb[0].mxu0
      %v2750 = vadd.f32 0.0, %v2749
      %2751 = vdwg.mxu0
      %2752 = vmatprep.subr.mxu0 %v2668
      %2753 = vmatpush1.msra.mxu0 %v2667
      %2754 = vmatprep.subr.mxu0 %v2672
      %2755 = vmatpush1.msra.mxu0 %v2671
      %2756 = vmatprep.subr.mxu0 %v2676
      %2757 = vmatpush1.msra.mxu0 %v2675
      %2758 = vmatprep.subr.mxu0 %v2680
      %2759 = vmatpush1.msra.mxu0 %v2679
      %2760 = vmatprep.subr.mxu0 0.0
      %2761 = vmatpush1.msra.mxu0 0.0
      %2762 = vmatprep.subr.mxu0 0.0
      %2763 = vmatpush1.msra.mxu0 0.0
      %2764 = vmatprep.subr.mxu0 0.0
      %2765 = vmatpush1.msra.mxu0 0.0
      %2766 = vmatprep.subr.mxu0 0.0
      %2767 = vmatpush1.msra.mxu0 0.0
      %2768 = vmatprep.subr.mxu0 0.0
      %2769 = vmatpush1.msra.mxu0 0.0
      %2770 = vmatprep.subr.mxu0 0.0
      %2771 = vmatpush1.msra.mxu0 0.0
      %2772 = vmatprep.subr.mxu0 0.0
      %2773 = vmatpush1.msra.mxu0 0.0
      %2774 = vmatprep.subr.mxu0 0.0
      %2775 = vmatpush1.msra.mxu0 0.0
      %2776 = vmatprep.subr.mxu0 0.0
      %2777 = vmatpush1.msra.mxu0 0.0
      %2778 = vmatprep.subr.mxu0 0.0
      %2779 = vmatpush1.msra.mxu0 0.0
      %2780 = vmatprep.subr.mxu0 0.0
      %2781 = vmatpush1.msra.mxu0 0.0
      %2782 = vmatprep.subr.mxu0 0.0
      %2783 = vmatpush1.msra.mxu0 0.0
      %2784 = vmatprep.subr.mxu0 0.0
      %2785 = vmatpush1.msra.mxu0 0.0
      %2786 = vmatprep.subr.mxu0 0.0
      %2787 = vmatpush1.msra.mxu0 0.0
      %2788 = vmatprep.subr.mxu0 0.0
      %2789 = vmatpush1.msra.mxu0 0.0
      %2790 = vmatprep.subr.mxu0 0.0
      %2791 = vmatpush1.msra.mxu0 0.0
      %2792 = vmatprep.subr.mxu0 0.0
      %2793 = vmatpush1.msra.mxu0 0.0
      %2794 = vmatprep.subr.mxu0 0.0
      %2795 = vmatpush1.msra.mxu0 0.0
      %2796 = vmatprep.subr.mxu0 0.0
      %2797 = vmatpush1.msra.mxu0 0.0
      %2798 = vmatprep.subr.mxu0 0.0
      %2799 = vmatpush1.msra.mxu0 0.0
      %2800 = vmatprep.subr.mxu0 0.0
      %2801 = vmatpush1.msra.mxu0 0.0
      %2802 = vmatprep.subr.mxu0 0.0
      %2803 = vmatpush1.msra.mxu0 0.0
      %2804 = vmatprep.subr.mxu0 0.0
      %2805 = vmatpush1.msra.mxu0 0.0
      %2806 = vmatprep.subr.mxu0 0.0
      %2807 = vmatpush1.msra.mxu0 0.0
      %2808 = vmatprep.subr.mxu0 0.0
      %2809 = vmatpush1.msra.mxu0 0.0
      %2810 = vmatprep.subr.mxu0 0.0
      %2811 = vmatpush1.msra.mxu0 0.0
      %2812 = vmatprep.subr.mxu0 0.0
      %2813 = vmatpush1.msra.mxu0 0.0
      %2814 = vmatprep.subr.mxu0 0.0
      %2815 = vmatpush1.msra.mxu0 0.0
      %2816 = vmatprep.mubr.f32.mxu0 0.0
      %2817 = vmatmul.mubr.f32.gmra.mrb[0].mxu0 %v729
      %v2818 = vpop.f32.mrb[0].mxu0
      %v2819 = vadd.f32 0.0, %v2818
      %v2820 = vpop.f32.mrb[0].mxu0
      %v2821 = vadd.f32 0.0, %v2820
      %2822 = vdwg.mxu0
      %v2823 = vmax.f32 %v798, %v1054
      %v2824 = vmax.f32 %v800, %v1056
      %v2825 = vmax.f32 %v869, %v1125
      %v2826 = vmax.f32 %v871, %v1127
      %v2827 = vmax.f32 %v2823, %v1310
      %v2828 = vmax.f32 %v2824, %v1312
      %v2829 = vmax.f32 %v2825, %v1381
      %v2830 = vmax.f32 %v2826, %v1383
      %v2831 = vmax.f32 %v2827, %v1566
      %v2832 = vmax.f32 %v2828, %v1568
      %v2833 = vmax.f32 %v2829, %v1637
      %v2834 = vmax.f32 %v2830, %v1639
      %v2835 = vmax.f32 %v2831, %v1724
      %v2836 = vmax.f32 %v2832, %v1726
      %v2837 = vmax.f32 %v2833, %v1795
      %v2838 = vmax.f32 %v2834, %v1797
      %v2839 = vmax.f32 %v2835, %v1980
      %v2840 = vmax.f32 %v2836, %v1982
      %v2841 = vmax.f32 %v2837, %v2051
      %v2842 = vmax.f32 %v2838, %v2053
      %v2843 = vmax.f32 %v2839, %v2236
      %v2844 = vmax.f32 %v2840, %v2238
      %v2845 = vmax.f32 %v2841, %v2307
      %v2846 = vmax.f32 %v2842, %v2309
      %v2847 = vmax.f32 %v2843, %v2492
      %v2848 = vmax.f32 %v2844, %v2494
      %v2849 = vmax.f32 %v2845, %v2563
      %v2850 = vmax.f32 %v2846, %v2565
      %v2851 = vmax.f32 %v2847, %v2748
      %v2852 = vmax.f32 %v2848, %v2750
      %v2853 = vmax.f32 %v2849, %v2819
      %v2854 = vmax.f32 %v2850, %v2821
      %v2855 = vsub.f32 %v798, %v2851
      %v2856 = vsub.f32 %v800, %v2852
      %v2857 = vsub.f32 %v869, %v2853
      %v2858 = vsub.f32 %v871, %v2854
      %v2859 = vmul.f32 %v2855, 1.442695
      %v2860 = vpow.pop %v2859
      %v2861 = vmul.f32 %v2856, 1.442695
      %v2862 = vpow.pop %v2861
      %v2863 = vmul.f32 %v2857, 1.442695
      %v2864 = vpow.pop %v2863
      %v2865 = vmul.f32 %v2858, 1.442695
      %v2866 = vpow.pop %v2865
      %v2867 = vadd.f32 %v2860, 0.0
      %v2868 = vadd.f32 %v2862, 0.0
      %v2869 = vadd.f32 %v2864, 0.0
      %v2870 = vadd.f32 %v2866, 0.0
      %vm2871 = vcmask 64512
      %v2873 = vsel %vm2871, %v592, 0
      %v2876 = vsel %vm2871, %v593, 0
      %v2879 = vsel %vm2871, %v594, 0
      %v2882 = vsel %vm2871, %v595, 0
      %2884 = vmatprep.subr.mxu0 %v2862
      %2885 = vmatpush1.msra.mxu0 %v2860
      %2886 = vmatprep.subr.mxu0 0.0
      %2887 = vmatpush1.msra.mxu0 0.0
      %2888 = vmatprep.subr.mxu0 0.0
      %2889 = vmatpush1.msra.mxu0 0.0
      %2890 = vmatprep.subr.mxu0 0.0
      %2891 = vmatpush1.msra.mxu0 0.0
      %2892 = vmatprep.subr.mxu0 0.0
      %2893 = vmatpush1.msra.mxu0 0.0
      %2894 = vmatprep.subr.mxu0 0.0
      %2895 = vmatpush1.msra.mxu0 0.0
      %2896 = vmatprep.subr.mxu0 0.0
      %2897 = vmatpush1.msra.mxu0 0.0
      %2898 = vmatprep.subr.mxu0 0.0
      %2899 = vmatpush1.msra.mxu0 0.0
      %2900 = vmatprep.subr.mxu0 0.0
      %2901 = vmatpush1.msra.mxu0 0.0
      %2902 = vmatprep.subr.mxu0 0.0
      %2903 = vmatpush1.msra.mxu0 0.0
      %2904 = vmatprep.subr.mxu0 0.0
      %2905 = vmatpush1.msra.mxu0 0.0
      %2906 = vmatprep.subr.mxu0 0.0
      %2907 = vmatpush1.msra.mxu0 0.0
      %2908 = vmatprep.subr.mxu0 0.0
      %2909 = vmatpush1.msra.mxu0 0.0
      %2910 = vmatprep.subr.mxu0 0.0
      %2911 = vmatpush1.msra.mxu0 0.0
      %2912 = vmatprep.subr.mxu0 0.0
      %2913 = vmatpush1.msra.mxu0 0.0
      %2914 = vmatprep.subr.mxu0 0.0
      %2915 = vmatpush1.msra.mxu0 0.0
      %2916 = vmatprep.subr.mxu0 0.0
      %2917 = vmatpush1.msra.mxu0 0.0
      %2918 = vmatprep.subr.mxu0 0.0
      %2919 = vmatpush1.msra.mxu0 0.0
      %2920 = vmatprep.subr.mxu0 0.0
      %2921 = vmatpush1.msra.mxu0 0.0
      %2922 = vmatprep.subr.mxu0 0.0
      %2923 = vmatpush1.msra.mxu0 0.0
      %2924 = vmatprep.subr.mxu0 0.0
      %2925 = vmatpush1.msra.mxu0 0.0
      %2926 = vmatprep.subr.mxu0 0.0
      %2927 = vmatpush1.msra.mxu0 0.0
      %2928 = vmatprep.subr.mxu0 0.0
      %2929 = vmatpush1.msra.mxu0 0.0
      %2930 = vmatprep.subr.mxu0 0.0
      %2931 = vmatpush1.msra.mxu0 0.0
      %2932 = vmatprep.subr.mxu0 0.0
      %2933 = vmatpush1.msra.mxu0 0.0
      %2934 = vmatprep.subr.mxu0 0.0
      %2935 = vmatpush1.msra.mxu0 0.0
      %2936 = vmatprep.subr.mxu0 0.0
      %2937 = vmatpush1.msra.mxu0 0.0
      %2938 = vmatprep.subr.mxu0 0.0
      %2939 = vmatpush1.msra.mxu0 0.0
      %2940 = vmatprep.subr.mxu0 0.0
      %2941 = vmatpush1.msra.mxu0 0.0
      %2942 = vmatprep.subr.mxu0 0.0
      %2943 = vmatpush1.msra.mxu0 0.0
      %2944 = vmatprep.subr.mxu0 0.0
      %2945 = vmatpush1.msra.mxu0 0.0
      %2946 = vmatprep.subr.mxu0 0.0
      %2947 = vmatpush1.msra.mxu0 0.0
      %2948 = vmatprep.mubr.f32.mxu0 0.0
      %2949 = vmatmul.mubr.f32.gmra.mrb[0].mxu0 %v2873
      %v2950 = vpop.f32.mrb[0].mxu0
      %v2951 = vadd.f32 0.0, %v2950
      %v2952 = vpop.f32.mrb[0].mxu0
      %v2953 = vadd.f32 0.0, %v2952
      %2954 = vmatprep.mubr.f32.mxu0 0.0
      %2955 = vmatmul.mubr.f32.gmra.mrb[0].mxu0 %v2876
      %v2956 = vpop.f32.mrb[0].mxu0
      %v2957 = vadd.f32 0.0, %v2956
      %v2958 = vpop.f32.mrb[0].mxu0
      %v2959 = vadd.f32 0.0, %v2958
      %2960 = vmatprep.mubr.f32.mxu0 0.0
      %2961 = vmatmul.mubr.f32.gmra.mrb[0].mxu0 %v2879
      %v2962 = vpop.f32.mrb[0].mxu0
      %v2963 = vadd.f32 0.0, %v2962
      %v2964 = vpop.f32.mrb[0].mxu0
      %v2965 = vadd.f32 0.0, %v2964
      %2966 = vmatprep.mubr.f32.mxu0 0.0
      %2967 = vmatmul.mubr.f32.gmra.mrb[0].mxu0 %v2882
      %v2968 = vpop.f32.mrb[0].mxu0
      %v2969 = vadd.f32 0.0, %v2968
      %v2970 = vpop.f32.mrb[0].mxu0
      %v2971 = vadd.f32 0.0, %v2970
      %2972 = vdwg.mxu0
      %2973 = vmatprep.subr.mxu0 %v2866
      %2974 = vmatpush1.msra.mxu0 %v2864
      %2975 = vmatprep.subr.mxu0 0.0
      %2976 = vmatpush1.msra.mxu0 0.0
      %2977 = vmatprep.subr.mxu0 0.0
      %2978 = vmatpush1.msra.mxu0 0.0
      %2979 = vmatprep.subr.mxu0 0.0
      %2980 = vmatpush1.msra.mxu0 0.0
      %2981 = vmatprep.subr.mxu0 0.0
      %2982 = vmatpush1.msra.mxu0 0.0
      %2983 = vmatprep.subr.mxu0 0.0
      %2984 = vmatpush1.msra.mxu0 0.0
      %2985 = vmatprep.subr.mxu0 0.0
      %2986 = vmatpush1.msra.mxu0 0.0
      %2987 = vmatprep.subr.mxu0 0.0
      %2988 = vmatpush1.msra.mxu0 0.0
      %2989 = vmatprep.subr.mxu0 0.0
      %2990 = vmatpush1.msra.mxu0 0.0
      %2991 = vmatprep.subr.mxu0 0.0
      %2992 = vmatpush1.msra.mxu0 0.0
      %2993 = vmatprep.subr.mxu0 0.0
      %2994 = vmatpush1.msra.mxu0 0.0
      %2995 = vmatprep.subr.mxu0 0.0
      %2996 = vmatpush1.msra.mxu0 0.0
      %2997 = vmatprep.subr.mxu0 0.0
      %2998 = vmatpush1.msra.mxu0 0.0
      %2999 = vmatprep.subr.mxu0 0.0
      %3000 = vmatpush1.msra.mxu0 0.0
      %3001 = vmatprep.subr.mxu0 0.0
      %3002 = vmatpush1.msra.mxu0 0.0
      %3003 = vmatprep.subr.mxu0 0.0
      %3004 = vmatpush1.msra.mxu0 0.0
      %3005 = vmatprep.subr.mxu0 0.0
      %3006 = vmatpush1.msra.mxu0 0.0
      %3007 = vmatprep.subr.mxu0 0.0
      %3008 = vmatpush1.msra.mxu0 0.0
      %3009 = vmatprep.subr.mxu0 0.0
      %3010 = vmatpush1.msra.mxu0 0.0
      %3011 = vmatprep.subr.mxu0 0.0
      %3012 = vmatpush1.msra.mxu0 0.0
      %3013 = vmatprep.subr.mxu0 0.0
      %3014 = vmatpush1.msra.mxu0 0.0
      %3015 = vmatprep.subr.mxu0 0.0
      %3016 = vmatpush1.msra.mxu0 0.0
      %3017 = vmatprep.subr.mxu0 0.0
      %3018 = vmatpush1.msra.mxu0 0.0
      %3019 = vmatprep.subr.mxu0 0.0
      %3020 = vmatpush1.msra.mxu0 0.0
      %3021 = vmatprep.subr.mxu0 0.0
      %3022 = vmatpush1.msra.mxu0 0.0
      %3023 = vmatprep.subr.mxu0 0.0
      %3024 = vmatpush1.msra.mxu0 0.0
      %3025 = vmatprep.subr.mxu0 0.0
      %3026 = vmatpush1.msra.mxu0 0.0
      %3027 = vmatprep.subr.mxu0 0.0
      %3028 = vmatpush1.msra.mxu0 0.0
      %3029 = vmatprep.subr.mxu0 0.0
      %3030 = vmatpush1.msra.mxu0 0.0
      %3031 = vmatprep.subr.mxu0 0.0
      %3032 = vmatpush1.msra.mxu0 0.0
      %3033 = vmatprep.subr.mxu0 0.0
      %3034 = vmatpush1.msra.mxu0 0.0
      %3035 = vmatprep.subr.mxu0 0.0
      %3036 = vmatpush1.msra.mxu0 0.0
      %3037 = vmatprep.mubr.f32.mxu0 0.0
      %3038 = vmatmul.mubr.f32.gmra.mrb[0].mxu0 %v2873
      %v3039 = vpop.f32.mrb[0].mxu0
      %v3040 = vadd.f32 0.0, %v3039
      %v3041 = vpop.f32.mrb[0].mxu0
      %v3042 = vadd.f32 0.0, %v3041
      %3043 = vmatprep.mubr.f32.mxu0 0.0
      %3044 = vmatmul.mubr.f32.gmra.mrb[0].mxu0 %v2876
      %v3045 = vpop.f32.mrb[0].mxu0
      %v3046 = vadd.f32 0.0, %v3045
      %v3047 = vpop.f32.mrb[0].mxu0
      %v3048 = vadd.f32 0.0, %v3047
      %3049 = vmatprep.mubr.f32.mxu0 0.0
      %3050 = vmatmul.mubr.f32.gmra.mrb[0].mxu0 %v2879
      %v3051 = vpop.f32.mrb[0].mxu0
      %v3052 = vadd.f32 0.0, %v3051
      %v3053 = vpop.f32.mrb[0].mxu0
      %v3054 = vadd.f32 0.0, %v3053
      %3055 = vmatprep.mubr.f32.mxu0 0.0
      %3056 = vmatmul.mubr.f32.gmra.mrb[0].mxu0 %v2882
      %v3057 = vpop.f32.mrb[0].mxu0
      %v3058 = vadd.f32 0.0, %v3057
      %v3059 = vpop.f32.mrb[0].mxu0
      %v3060 = vadd.f32 0.0, %v3059
      %3061 = vdwg.mxu0
      %v3062 = vmul.f32 %v2951, %v661
      %v3063 = vmul.f32 %v2953, %v657
      %v3064 = vmul.f32 %v3040, %v653
      %v3065 = vmul.f32 %v3042, %v649
      %v3066 = vmul.f32 %v2957, %v662
      %v3067 = vmul.f32 %v2959, %v658
      %v3068 = vmul.f32 %v3046, %v654
      %v3069 = vmul.f32 %v3048, %v650
      %v3070 = vmul.f32 %v2963, %v710
      %v3071 = vmul.f32 %v2965, %v706
      %v3072 = vmul.f32 %v3052, %v702
      %v3073 = vmul.f32 %v3054, %v698
      %v3074 = vmul.f32 %v2969, %v711
      %v3075 = vmul.f32 %v2971, %v707
      %v3076 = vmul.f32 %v3058, %v703
      %v3077 = vmul.f32 %v3060, %v699
      %v3078 = vadd.f32 %v3062, 0.0
      %v3079 = vadd.f32 %v3063, 0.0
      %v3080 = vadd.f32 %v3064, 0.0
      %v3081 = vadd.f32 %v3065, 0.0
      %v3082 = vadd.f32 %v3066, 0.0
      %v3083 = vadd.f32 %v3067, 0.0
      %v3084 = vadd.f32 %v3068, 0.0
      %v3085 = vadd.f32 %v3069, 0.0
      %v3086 = vadd.f32 %v3070, 0.0
      %v3087 = vadd.f32 %v3071, 0.0
      %v3088 = vadd.f32 %v3072, 0.0
      %v3089 = vadd.f32 %v3073, 0.0
      %v3090 = vadd.f32 %v3074, 0.0
      %v3091 = vadd.f32 %v3075, 0.0
      %v3092 = vadd.f32 %v3076, 0.0
      %v3093 = vadd.f32 %v3077, 0.0
      %v3094 = vsub.f32 %v1054, %v2851
      %v3095 = vsub.f32 %v1056, %v2852
      %v3096 = vsub.f32 %v1125, %v2853
      %v3097 = vsub.f32 %v1127, %v2854
      %v3098 = vmul.f32 %v3094, 1.442695
      %v3099 = vpow.pop %v3098
      %v3100 = vmul.f32 %v3095, 1.442695
      %v3101 = vpow.pop %v3100
      %v3102 = vmul.f32 %v3096, 1.442695
      %v3103 = vpow.pop %v3102
      %v3104 = vmul.f32 %v3097, 1.442695
      %v3105 = vpow.pop %v3104
      %v3106 = vadd.f32 %v2867, %v3099
      %v3107 = vadd.f32 %v2868, %v3101
      %v3108 = vadd.f32 %v2869, %v3103
      %v3109 = vadd.f32 %v2870, %v3105
      %3110 = vmatprep.subr.mxu0 %v3101
      %3111 = vmatpush1.msra.mxu0 %v3099
      %3112 = vmatprep.subr.mxu0 0.0
      %3113 = vmatpush1.msra.mxu0 0.0
      %3114 = vmatprep.subr.mxu0 0.0
      %3115 = vmatpush1.msra.mxu0 0.0
      %3116 = vmatprep.subr.mxu0 0.0
      %3117 = vmatpush1.msra.mxu0 0.0
      %3118 = vmatprep.subr.mxu0 0.0
      %3119 = vmatpush1.msra.mxu0 0.0
      %3120 = vmatprep.subr.mxu0 0.0
      %3121 = vmatpush1.msra.mxu0 0.0
      %3122 = vmatprep.subr.mxu0 0.0
      %3123 = vmatpush1.msra.mxu0 0.0
      %3124 = vmatprep.subr.mxu0 0.0
      %3125 = vmatpush1.msra.mxu0 0.0
      %3126 = vmatprep.subr.mxu0 0.0
      %3127 = vmatpush1.msra.mxu0 0.0
      %3128 = vmatprep.subr.mxu0 0.0
      %3129 = vmatpush1.msra.mxu0 0.0
      %3130 = vmatprep.subr.mxu0 0.0
      %3131 = vmatpush1.msra.mxu0 0.0
      %3132 = vmatprep.subr.mxu0 0.0
      %3133 = vmatpush1.msra.mxu0 0.0
      %3134 = vmatprep.subr.mxu0 0.0
      %3135 = vmatpush1.msra.mxu0 0.0
      %3136 = vmatprep.subr.mxu0 0.0
      %3137 = vmatpush1.msra.mxu0 0.0
      %3138 = vmatprep.subr.mxu0 0.0
      %3139 = vmatpush1.msra.mxu0 0.0
      %3140 = vmatprep.subr.mxu0 0.0
      %3141 = vmatpush1.msra.mxu0 0.0
      %3142 = vmatprep.subr.mxu0 0.0
      %3143 = vmatpush1.msra.mxu0 0.0
      %3144 = vmatprep.subr.mxu0 0.0
      %3145 = vmatpush1.msra.mxu0 0.0
      %3146 = vmatprep.subr.mxu0 0.0
      %3147 = vmatpush1.msra.mxu0 0.0
      %3148 = vmatprep.subr.mxu0 0.0
      %3149 = vmatpush1.msra.mxu0 0.0
      %3150 = vmatprep.subr.mxu0 0.0
      %3151 = vmatpush1.msra.mxu0 0.0
      %3152 = vmatprep.subr.mxu0 0.0
      %3153 = vmatpush1.msra.mxu0 0.0
      %3154 = vmatprep.subr.mxu0 0.0
      %3155 = vmatpush1.msra.mxu0 0.0
      %3156 = vmatprep.subr.mxu0 0.0
      %3157 = vmatpush1.msra.mxu0 0.0
      %3158 = vmatprep.subr.mxu0 0.0
      %3159 = vmatpush1.msra.mxu0 0.0
      %3160 = vmatprep.subr.mxu0 0.0
      %3161 = vmatpush1.msra.mxu0 0.0
      %3162 = vmatprep.subr.mxu0 0.0
      %3163 = vmatpush1.msra.mxu0 0.0
      %3164 = vmatprep.subr.mxu0 0.0
      %3165 = vmatpush1.msra.mxu0 0.0
      %3166 = vmatprep.subr.mxu0 0.0
      %3167 = vmatpush1.msra.mxu0 0.0
      %3168 = vmatprep.subr.mxu0 0.0
      %3169 = vmatpush1.msra.mxu0 0.0
      %3170 = vmatprep.subr.mxu0 0.0
      %3171 = vmatpush1.msra.mxu0 0.0
      %3172 = vmatprep.subr.mxu0 0.0
      %3173 = vmatpush1.msra.mxu0 0.0
      %3174 = vmatprep.mubr.f32.mxu0 0.0
      %3175 = vmatmul.mubr.f32.gmra.mrb[0].mxu0 %v2873
      %v3176 = vpop.f32.mrb[0].mxu0
      %v3177 = vadd.f32 0.0, %v3176
      %v3178 = vpop.f32.mrb[0].mxu0
      %v3179 = vadd.f32 0.0, %v3178
      %3180 = vmatprep.mubr.f32.mxu0 0.0
      %3181 = vmatmul.mubr.f32.gmra.mrb[0].mxu0 %v2876
      %v3182 = vpop.f32.mrb[0].mxu0
      %v3183 = vadd.f32 0.0, %v3182
      %v3184 = vpop.f32.mrb[0].mxu0
      %v3185 = vadd.f32 0.0, %v3184
      %3186 = vmatprep.mubr.f32.mxu0 0.0
      %3187 = vmatmul.mubr.f32.gmra.mrb[0].mxu0 %v2879
      %v3188 = vpop.f32.mrb[0].mxu0
      %v3189 = vadd.f32 0.0, %v3188
      %v3190 = vpop.f32.mrb[0].mxu0
      %v3191 = vadd.f32 0.0, %v3190
      %3192 = vmatprep.mubr.f32.mxu0 0.0
      %3193 = vmatmul.mubr.f32.gmra.mrb[0].mxu0 %v2882
      %v3194 = vpop.f32.mrb[0].mxu0
      %v3195 = vadd.f32 0.0, %v3194
      %v3196 = vpop.f32.mrb[0].mxu0
      %v3197 = vadd.f32 0.0, %v3196
      %3198 = vdwg.mxu0
      %3199 = vmatprep.subr.mxu0 %v3105
      %3200 = vmatpush1.msra.mxu0 %v3103
      %3201 = vmatprep.subr.mxu0 0.0
      %3202 = vmatpush1.msra.mxu0 0.0
      %3203 = vmatprep.subr.mxu0 0.0
      %3204 = vmatpush1.msra.mxu0 0.0
      %3205 = vmatprep.subr.mxu0 0.0
      %3206 = vmatpush1.msra.mxu0 0.0
      %3207 = vmatprep.subr.mxu0 0.0
      %3208 = vmatpush1.msra.mxu0 0.0
      %3209 = vmatprep.subr.mxu0 0.0
      %3210 = vmatpush1.msra.mxu0 0.0
      %3211 = vmatprep.subr.mxu0 0.0
      %3212 = vmatpush1.msra.mxu0 0.0
      %3213 = vmatprep.subr.mxu0 0.0
      %3214 = vmatpush1.msra.mxu0 0.0
      %3215 = vmatprep.subr.mxu0 0.0
      %3216 = vmatpush1.msra.mxu0 0.0
      %3217 = vmatprep.subr.mxu0 0.0
      %3218 = vmatpush1.msra.mxu0 0.0
      %3219 = vmatprep.subr.mxu0 0.0
      %3220 = vmatpush1.msra.mxu0 0.0
      %3221 = vmatprep.subr.mxu0 0.0
      %3222 = vmatpush1.msra.mxu0 0.0
      %3223 = vmatprep.subr.mxu0 0.0
      %3224 = vmatpush1.msra.mxu0 0.0
      %3225 = vmatprep.subr.mxu0 0.0
      %3226 = vmatpush1.msra.mxu0 0.0
      %3227 = vmatprep.subr.mxu0 0.0
      %3228 = vmatpush1.msra.mxu0 0.0
      %3229 = vmatprep.subr.mxu0 0.0
      %3230 = vmatpush1.msra.mxu0 0.0
      %3231 = vmatprep.subr.mxu0 0.0
      %3232 = vmatpush1.msra.mxu0 0.0
      %3233 = vmatprep.subr.mxu0 0.0
      %3234 = vmatpush1.msra.mxu0 0.0
      %3235 = vmatprep.subr.mxu0 0.0
      %3236 = vmatpush1.msra.mxu0 0.0
      %3237 = vmatprep.subr.mxu0 0.0
      %3238 = vmatpush1.msra.mxu0 0.0
      %3239 = vmatprep.subr.mxu0 0.0
      %3240 = vmatpush1.msra.mxu0 0.0
      %3241 = vmatprep.subr.mxu0 0.0
      %3242 = vmatpush1.msra.mxu0 0.0
      %3243 = vmatprep.subr.mxu0 0.0
      %3244 = vmatpush1.msra.mxu0 0.0
      %3245 = vmatprep.subr.mxu0 0.0
      %3246 = vmatpush1.msra.mxu0 0.0
      %3247 = vmatprep.subr.mxu0 0.0
      %3248 = vmatpush1.msra.mxu0 0.0
      %3249 = vmatprep.subr.mxu0 0.0
      %3250 = vmatpush1.msra.mxu0 0.0
      %3251 = vmatprep.subr.mxu0 0.0
      %3252 = vmatpush1.msra.mxu0 0.0
      %3253 = vmatprep.subr.mxu0 0.0
      %3254 = vmatpush1.msra.mxu0 0.0
      %3255 = vmatprep.subr.mxu0 0.0
      %3256 = vmatpush1.msra.mxu0 0.0
      %3257 = vmatprep.subr.mxu0 0.0
      %3258 = vmatpush1.msra.mxu0 0.0
      %3259 = vmatprep.subr.mxu0 0.0
      %3260 = vmatpush1.msra.mxu0 0.0
      %3261 = vmatprep.subr.mxu0 0.0
      %3262 = vmatpush1.msra.mxu0 0.0
      %3263 = vmatprep.mubr.f32.mxu0 0.0
      %3264 = vmatmul.mubr.f32.gmra.mrb[0].mxu0 %v2873
      %v3265 = vpop.f32.mrb[0].mxu0
      %v3266 = vadd.f32 0.0, %v3265
      %v3267 = vpop.f32.mrb[0].mxu0
      %v3268 = vadd.f32 0.0, %v3267
      %3269 = vmatprep.mubr.f32.mxu0 0.0
      %3270 = vmatmul.mubr.f32.gmra.mrb[0].mxu0 %v2876
      %v3271 = vpop.f32.mrb[0].mxu0
      %v3272 = vadd.f32 0.0, %v3271
      %v3273 = vpop.f32.mrb[0].mxu0
      %v3274 = vadd.f32 0.0, %v3273
      %3275 = vmatprep.mubr.f32.mxu0 0.0
      %3276 = vmatmul.mubr.f32.gmra.mrb[0].mxu0 %v2879
      %v3277 = vpop.f32.mrb[0].mxu0
      %v3278 = vadd.f32 0.0, %v3277
      %v3279 = vpop.f32.mrb[0].mxu0
      %v3280 = vadd.f32 0.0, %v3279
      %3281 = vmatprep.mubr.f32.mxu0 0.0
      %3282 = vmatmul.mubr.f32.gmra.mrb[0].mxu0 %v2882
      %v3283 = vpop.f32.mrb[0].mxu0
      %v3284 = vadd.f32 0.0, %v3283
      %v3285 = vpop.f32.mrb[0].mxu0
      %v3286 = vadd.f32 0.0, %v3285
      %3287 = vdwg.mxu0
      %v3288 = vmul.f32 %v3177, %v920
      %v3289 = vmul.f32 %v3179, %v916
      %v3290 = vmul.f32 %v3266, %v912
      %v3291 = vmul.f32 %v3268, %v908
      %v3292 = vmul.f32 %v3183, %v921
      %v3293 = vmul.f32 %v3185, %v917
      %v3294 = vmul.f32 %v3272, %v913
      %v3295 = vmul.f32 %v3274, %v909
      %v3296 = vmul.f32 %v3189, %v969
      %v3297 = vmul.f32 %v3191, %v965
      %v3298 = vmul.f32 %v3278, %v961
      %v3299 = vmul.f32 %v3280, %v957
      %v3300 = vmul.f32 %v3195, %v970
      %v3301 = vmul.f32 %v3197, %v966
      %v3302 = vmul.f32 %v3284, %v962
      %v3303 = vmul.f32 %v3286, %v958
      %v3304 = vadd.f32 %v3078, %v3288
      %v3305 = vadd.f32 %v3079, %v3289
      %v3306 = vadd.f32 %v3080, %v3290
      %v3307 = vadd.f32 %v3081, %v3291
      %v3308 = vadd.f32 %v3082, %v3292
      %v3309 = vadd.f32 %v3083, %v3293
      %v3310 = vadd.f32 %v3084, %v3294
      %v3311 = vadd.f32 %v3085, %v3295
      %v3312 = vadd.f32 %v3086, %v3296
      %v3313 = vadd.f32 %v3087, %v3297
      %v3314 = vadd.f32 %v3088, %v3298
      %v3315 = vadd.f32 %v3089, %v3299
      %v3316 = vadd.f32 %v3090, %v3300
      %v3317 = vadd.f32 %v3091, %v3301
      %v3318 = vadd.f32 %v3092, %v3302
      %v3319 = vadd.f32 %v3093, %v3303
      %v3320 = vsub.f32 %v1310, %v2851
      %v3321 = vsub.f32 %v1312, %v2852
      %v3322 = vsub.f32 %v1381, %v2853
      %v3323 = vsub.f32 %v1383, %v2854
      %v3324 = vmul.f32 %v3320, 1.442695
      %v3325 = vpow.pop %v3324
      %v3326 = vmul.f32 %v3321, 1.442695
      %v3327 = vpow.pop %v3326
      %v3328 = vmul.f32 %v3322, 1.442695
      %v3329 = vpow.pop %v3328
      %v3330 = vmul.f32 %v3323, 1.442695
      %v3331 = vpow.pop %v3330
      %v3332 = vadd.f32 %v3106, %v3325
      %v3333 = vadd.f32 %v3107, %v3327
      %v3334 = vadd.f32 %v3108, %v3329
      %v3335 = vadd.f32 %v3109, %v3331
      %3336 = vmatprep.subr.mxu0 %v3327
      %3337 = vmatpush1.msra.mxu0 %v3325
      %3338 = vmatprep.subr.mxu0 0.0
      %3339 = vmatpush1.msra.mxu0 0.0
      %3340 = vmatprep.subr.mxu0 0.0
      %3341 = vmatpush1.msra.mxu0 0.0
      %3342 = vmatprep.subr.mxu0 0.0
      %3343 = vmatpush1.msra.mxu0 0.0
      %3344 = vmatprep.subr.mxu0 0.0
      %3345 = vmatpush1.msra.mxu0 0.0
      %3346 = vmatprep.subr.mxu0 0.0
      %3347 = vmatpush1.msra.mxu0 0.0
      %3348 = vmatprep.subr.mxu0 0.0
      %3349 = vmatpush1.msra.mxu0 0.0
      %3350 = vmatprep.subr.mxu0 0.0
      %3351 = vmatpush1.msra.mxu0 0.0
      %3352 = vmatprep.subr.mxu0 0.0
      %3353 = vmatpush1.msra.mxu0 0.0
      %3354 = vmatprep.subr.mxu0 0.0
      %3355 = vmatpush1.msra.mxu0 0.0
      %3356 = vmatprep.subr.mxu0 0.0
      %3357 = vmatpush1.msra.mxu0 0.0
      %3358 = vmatprep.subr.mxu0 0.0
      %3359 = vmatpush1.msra.mxu0 0.0
      %3360 = vmatprep.subr.mxu0 0.0
      %3361 = vmatpush1.msra.mxu0 0.0
      %3362 = vmatprep.subr.mxu0 0.0
      %3363 = vmatpush1.msra.mxu0 0.0
      %3364 = vmatprep.subr.mxu0 0.0
      %3365 = vmatpush1.msra.mxu0 0.0
      %3366 = vmatprep.subr.mxu0 0.0
      %3367 = vmatpush1.msra.mxu0 0.0
      %3368 = vmatprep.subr.mxu0 0.0
      %3369 = vmatpush1.msra.mxu0 0.0
      %3370 = vmatprep.subr.mxu0 0.0
      %3371 = vmatpush1.msra.mxu0 0.0
      %3372 = vmatprep.subr.mxu0 0.0
      %3373 = vmatpush1.msra.mxu0 0.0
      %3374 = vmatprep.subr.mxu0 0.0
      %3375 = vmatpush1.msra.mxu0 0.0
      %3376 = vmatprep.subr.mxu0 0.0
      %3377 = vmatpush1.msra.mxu0 0.0
      %3378 = vmatprep.subr.mxu0 0.0
      %3379 = vmatpush1.msra.mxu0 0.0
      %3380 = vmatprep.subr.mxu0 0.0
      %3381 = vmatpush1.msra.mxu0 0.0
      %3382 = vmatprep.subr.mxu0 0.0
      %3383 = vmatpush1.msra.mxu0 0.0
      %3384 = vmatprep.subr.mxu0 0.0
      %3385 = vmatpush1.msra.mxu0 0.0
      %3386 = vmatprep.subr.mxu0 0.0
      %3387 = vmatpush1.msra.mxu0 0.0
      %3388 = vmatprep.subr.mxu0 0.0
      %3389 = vmatpush1.msra.mxu0 0.0
      %3390 = vmatprep.subr.mxu0 0.0
      %3391 = vmatpush1.msra.mxu0 0.0
      %3392 = vmatprep.subr.mxu0 0.0
      %3393 = vmatpush1.msra.mxu0 0.0
      %3394 = vmatprep.subr.mxu0 0.0
      %3395 = vmatpush1.msra.mxu0 0.0
      %3396 = vmatprep.subr.mxu0 0.0
      %3397 = vmatpush1.msra.mxu0 0.0
      %3398 = vmatprep.subr.mxu0 0.0
      %3399 = vmatpush1.msra.mxu0 0.0
      %3400 = vmatprep.mubr.f32.mxu0 0.0
      %3401 = vmatmul.mubr.f32.gmra.mrb[0].mxu0 %v2873
      %v3402 = vpop.f32.mrb[0].mxu0
      %v3403 = vadd.f32 0.0, %v3402
      %v3404 = vpop.f32.mrb[0].mxu0
      %v3405 = vadd.f32 0.0, %v3404
      %3406 = vmatprep.mubr.f32.mxu0 0.0
      %3407 = vmatmul.mubr.f32.gmra.mrb[0].mxu0 %v2876
      %v3408 = vpop.f32.mrb[0].mxu0
      %v3409 = vadd.f32 0.0, %v3408
      %v3410 = vpop.f32.mrb[0].mxu0
      %v3411 = vadd.f32 0.0, %v3410
      %3412 = vmatprep.mubr.f32.mxu0 0.0
      %3413 = vmatmul.mubr.f32.gmra.mrb[0].mxu0 %v2879
      %v3414 = vpop.f32.mrb[0].mxu0
      %v3415 = vadd.f32 0.0, %v3414
      %v3416 = vpop.f32.mrb[0].mxu0
      %v3417 = vadd.f32 0.0, %v3416
      %3418 = vmatprep.mubr.f32.mxu0 0.0
      %3419 = vmatmul.mubr.f32.gmra.mrb[0].mxu0 %v2882
      %v3420 = vpop.f32.mrb[0].mxu0
      %v3421 = vadd.f32 0.0, %v3420
      %v3422 = vpop.f32.mrb[0].mxu0
      %v3423 = vadd.f32 0.0, %v3422
      %3424 = vdwg.mxu0
      %3425 = vmatprep.subr.mxu0 %v3331
      %3426 = vmatpush1.msra.mxu0 %v3329
      %3427 = vmatprep.subr.mxu0 0.0
      %3428 = vmatpush1.msra.mxu0 0.0
      %3429 = vmatprep.subr.mxu0 0.0
      %3430 = vmatpush1.msra.mxu0 0.0
      %3431 = vmatprep.subr.mxu0 0.0
      %3432 = vmatpush1.msra.mxu0 0.0
      %3433 = vmatprep.subr.mxu0 0.0
      %3434 = vmatpush1.msra.mxu0 0.0
      %3435 = vmatprep.subr.mxu0 0.0
      %3436 = vmatpush1.msra.mxu0 0.0
      %3437 = vmatprep.subr.mxu0 0.0
      %3438 = vmatpush1.msra.mxu0 0.0
      %3439 = vmatprep.subr.mxu0 0.0
      %3440 = vmatpush1.msra.mxu0 0.0
      %3441 = vmatprep.subr.mxu0 0.0
      %3442 = vmatpush1.msra.mxu0 0.0
      %3443 = vmatprep.subr.mxu0 0.0
      %3444 = vmatpush1.msra.mxu0 0.0
      %3445 = vmatprep.subr.mxu0 0.0
      %3446 = vmatpush1.msra.mxu0 0.0
      %3447 = vmatprep.subr.mxu0 0.0
      %3448 = vmatpush1.msra.mxu0 0.0
      %3449 = vmatprep.subr.mxu0 0.0
      %3450 = vmatpush1.msra.mxu0 0.0
      %3451 = vmatprep.subr.mxu0 0.0
      %3452 = vmatpush1.msra.mxu0 0.0
      %3453 = vmatprep.subr.mxu0 0.0
      %3454 = vmatpush1.msra.mxu0 0.0
      %3455 = vmatprep.subr.mxu0 0.0
      %3456 = vmatpush1.msra.mxu0 0.0
      %3457 = vmatprep.subr.mxu0 0.0
      %3458 = vmatpush1.msra.mxu0 0.0
      %3459 = vmatprep.subr.mxu0 0.0
      %3460 = vmatpush1.msra.mxu0 0.0
      %3461 = vmatprep.subr.mxu0 0.0
      %3462 = vmatpush1.msra.mxu0 0.0
      %3463 = vmatprep.subr.mxu0 0.0
      %3464 = vmatpush1.msra.mxu0 0.0
      %3465 = vmatprep.subr.mxu0 0.0
      %3466 = vmatpush1.msra.mxu0 0.0
      %3467 = vmatprep.subr.mxu0 0.0
      %3468 = vmatpush1.msra.mxu0 0.0
      %3469 = vmatprep.subr.mxu0 0.0
      %3470 = vmatpush1.msra.mxu0 0.0
      %3471 = vmatprep.subr.mxu0 0.0
      %3472 = vmatpush1.msra.mxu0 0.0
      %3473 = vmatprep.subr.mxu0 0.0
      %3474 = vmatpush1.msra.mxu0 0.0
      %3475 = vmatprep.subr.mxu0 0.0
      %3476 = vmatpush1.msra.mxu0 0.0
      %3477 = vmatprep.subr.mxu0 0.0
      %3478 = vmatpush1.msra.mxu0 0.0
      %3479 = vmatprep.subr.mxu0 0.0
      %3480 = vmatpush1.msra.mxu0 0.0
      %3481 = vmatprep.subr.mxu0 0.0
      %3482 = vmatpush1.msra.mxu0 0.0
      %3483 = vmatprep.subr.mxu0 0.0
      %3484 = vmatpush1.msra.mxu0 0.0
      %3485 = vmatprep.subr.mxu0 0.0
      %3486 = vmatpush1.msra.mxu0 0.0
      %3487 = vmatprep.subr.mxu0 0.0
      %3488 = vmatpush1.msra.mxu0 0.0
      %3489 = vmatprep.mubr.f32.mxu0 0.0
      %3490 = vmatmul.mubr.f32.gmra.mrb[0].mxu0 %v2873
      %v3491 = vpop.f32.mrb[0].mxu0
      %v3492 = vadd.f32 0.0, %v3491
      %v3493 = vpop.f32.mrb[0].mxu0
      %v3494 = vadd.f32 0.0, %v3493
      %3495 = vmatprep.mubr.f32.mxu0 0.0
      %3496 = vmatmul.mubr.f32.gmra.mrb[0].mxu0 %v2876
      %v3497 = vpop.f32.mrb[0].mxu0
      %v3498 = vadd.f32 0.0, %v3497
      %v3499 = vpop.f32.mrb[0].mxu0
      %v3500 = vadd.f32 0.0, %v3499
      %3501 = vmatprep.mubr.f32.mxu0 0.0
      %3502 = vmatmul.mubr.f32.gmra.mrb[0].mxu0 %v2879
      %v3503 = vpop.f32.mrb[0].mxu0
      %v3504 = vadd.f32 0.0, %v3503
      %v3505 = vpop.f32.mrb[0].mxu0
      %v3506 = vadd.f32 0.0, %v3505
      %3507 = vmatprep.mubr.f32.mxu0 0.0
      %3508 = vmatmul.mubr.f32.gmra.mrb[0].mxu0 %v2882
      %v3509 = vpop.f32.mrb[0].mxu0
      %v3510 = vadd.f32 0.0, %v3509
      %v3511 = vpop.f32.mrb[0].mxu0
      %v3512 = vadd.f32 0.0, %v3511
      %3513 = vdwg.mxu0
      %v3514 = vmul.f32 %v3403, %v1176
      %v3515 = vmul.f32 %v3405, %v1172
      %v3516 = vmul.f32 %v3492, %v1168
      %v3517 = vmul.f32 %v3494, %v1164
      %v3518 = vmul.f32 %v3409, %v1177
      %v3519 = vmul.f32 %v3411, %v1173
      %v3520 = vmul.f32 %v3498, %v1169
      %v3521 = vmul.f32 %v3500, %v1165
      %v3522 = vmul.f32 %v3415, %v1225
      %v3523 = vmul.f32 %v3417, %v1221
      %v3524 = vmul.f32 %v3504, %v1217
      %v3525 = vmul.f32 %v3506, %v1213
      %v3526 = vmul.f32 %v3421, %v1226
      %v3527 = vmul.f32 %v3423, %v1222
      %v3528 = vmul.f32 %v3510, %v1218
      %v3529 = vmul.f32 %v3512, %v1214
      %v3530 = vadd.f32 %v3304, %v3514
      %v3531 = vadd.f32 %v3305, %v3515
      %v3532 = vadd.f32 %v3306, %v3516
      %v3533 = vadd.f32 %v3307, %v3517
      %v3534 = vadd.f32 %v3308, %v3518
      %v3535 = vadd.f32 %v3309, %v3519
      %v3536 = vadd.f32 %v3310, %v3520
      %v3537 = vadd.f32 %v3311, %v3521
      %v3538 = vadd.f32 %v3312, %v3522
      %v3539 = vadd.f32 %v3313, %v3523
      %v3540 = vadd.f32 %v3314, %v3524
      %v3541 = vadd.f32 %v3315, %v3525
      %v3542 = vadd.f32 %v3316, %v3526
      %v3543 = vadd.f32 %v3317, %v3527
      %v3544 = vadd.f32 %v3318, %v3528
      %v3545 = vadd.f32 %v3319, %v3529
      %v3546 = vsub.f32 %v1566, %v2851
      %v3547 = vsub.f32 %v1568, %v2852
      %v3548 = vsub.f32 %v1637, %v2853
      %v3549 = vsub.f32 %v1639, %v2854
      %v3550 = vmul.f32 %v3546, 1.442695
      %v3551 = vpow.pop %v3550
      %v3552 = vmul.f32 %v3547, 1.442695
      %v3553 = vpow.pop %v3552
      %v3554 = vmul.f32 %v3548, 1.442695
      %v3555 = vpow.pop %v3554
      %v3556 = vmul.f32 %v3549, 1.442695
      %v3557 = vpow.pop %v3556
      %v3558 = vadd.f32 %v3332, %v3551
      %v3559 = vadd.f32 %v3333, %v3553
      %v3560 = vadd.f32 %v3334, %v3555
      %v3561 = vadd.f32 %v3335, %v3557
      %3562 = vmatprep.subr.mxu0 %v3553
      %3563 = vmatpush1.msra.mxu0 %v3551
      %3564 = vmatprep.subr.mxu0 0.0
      %3565 = vmatpush1.msra.mxu0 0.0
      %3566 = vmatprep.subr.mxu0 0.0
      %3567 = vmatpush1.msra.mxu0 0.0
      %3568 = vmatprep.subr.mxu0 0.0
      %3569 = vmatpush1.msra.mxu0 0.0
      %3570 = vmatprep.subr.mxu0 0.0
      %3571 = vmatpush1.msra.mxu0 0.0
      %3572 = vmatprep.subr.mxu0 0.0
      %3573 = vmatpush1.msra.mxu0 0.0
      %3574 = vmatprep.subr.mxu0 0.0
      %3575 = vmatpush1.msra.mxu0 0.0
      %3576 = vmatprep.subr.mxu0 0.0
      %3577 = vmatpush1.msra.mxu0 0.0
      %3578 = vmatprep.subr.mxu0 0.0
      %3579 = vmatpush1.msra.mxu0 0.0
      %3580 = vmatprep.subr.mxu0 0.0
      %3581 = vmatpush1.msra.mxu0 0.0
      %3582 = vmatprep.subr.mxu0 0.0
      %3583 = vmatpush1.msra.mxu0 0.0
      %3584 = vmatprep.subr.mxu0 0.0
      %3585 = vmatpush1.msra.mxu0 0.0
      %3586 = vmatprep.subr.mxu0 0.0
      %3587 = vmatpush1.msra.mxu0 0.0
      %3588 = vmatprep.subr.mxu0 0.0
      %3589 = vmatpush1.msra.mxu0 0.0
      %3590 = vmatprep.subr.mxu0 0.0
      %3591 = vmatpush1.msra.mxu0 0.0
      %3592 = vmatprep.subr.mxu0 0.0
      %3593 = vmatpush1.msra.mxu0 0.0
      %3594 = vmatprep.subr.mxu0 0.0
      %3595 = vmatpush1.msra.mxu0 0.0
      %3596 = vmatprep.subr.mxu0 0.0
      %3597 = vmatpush1.msra.mxu0 0.0
      %3598 = vmatprep.subr.mxu0 0.0
      %3599 = vmatpush1.msra.mxu0 0.0
      %3600 = vmatprep.subr.mxu0 0.0
      %3601 = vmatpush1.msra.mxu0 0.0
      %3602 = vmatprep.subr.mxu0 0.0
      %3603 = vmatpush1.msra.mxu0 0.0
      %3604 = vmatprep.subr.mxu0 0.0
      %3605 = vmatpush1.msra.mxu0 0.0
      %3606 = vmatprep.subr.mxu0 0.0
      %3607 = vmatpush1.msra.mxu0 0.0
      %3608 = vmatprep.subr.mxu0 0.0
      %3609 = vmatpush1.msra.mxu0 0.0
      %3610 = vmatprep.subr.mxu0 0.0
      %3611 = vmatpush1.msra.mxu0 0.0
      %3612 = vmatprep.subr.mxu0 0.0
      %3613 = vmatpush1.msra.mxu0 0.0
      %3614 = vmatprep.subr.mxu0 0.0
      %3615 = vmatpush1.msra.mxu0 0.0
      %3616 = vmatprep.subr.mxu0 0.0
      %3617 = vmatpush1.msra.mxu0 0.0
      %3618 = vmatprep.subr.mxu0 0.0
      %3619 = vmatpush1.msra.mxu0 0.0
      %3620 = vmatprep.subr.mxu0 0.0
      %3621 = vmatpush1.msra.mxu0 0.0
      %3622 = vmatprep.subr.mxu0 0.0
      %3623 = vmatpush1.msra.mxu0 0.0
      %3624 = vmatprep.subr.mxu0 0.0
      %3625 = vmatpush1.msra.mxu0 0.0
      %3626 = vmatprep.mubr.f32.mxu0 0.0
      %3627 = vmatmul.mubr.f32.gmra.mrb[0].mxu0 %v2873
      %v3628 = vpop.f32.mrb[0].mxu0
      %v3629 = vadd.f32 0.0, %v3628
      %v3630 = vpop.f32.mrb[0].mxu0
      %v3631 = vadd.f32 0.0, %v3630
      %3632 = vmatprep.mubr.f32.mxu0 0.0
      %3633 = vmatmul.mubr.f32.gmra.mrb[0].mxu0 %v2876
      %v3634 = vpop.f32.mrb[0].mxu0
      %v3635 = vadd.f32 0.0, %v3634
      %v3636 = vpop.f32.mrb[0].mxu0
      %v3637 = vadd.f32 0.0, %v3636
      %3638 = vmatprep.mubr.f32.mxu0 0.0
      %3639 = vmatmul.mubr.f32.gmra.mrb[0].mxu0 %v2879
      %v3640 = vpop.f32.mrb[0].mxu0
      %v3641 = vadd.f32 0.0, %v3640
      %v3642 = vpop.f32.mrb[0].mxu0
      %v3643 = vadd.f32 0.0, %v3642
      %3644 = vmatprep.mubr.f32.mxu0 0.0
      %3645 = vmatmul.mubr.f32.gmra.mrb[0].mxu0 %v2882
      %v3646 = vpop.f32.mrb[0].mxu0
      %v3647 = vadd.f32 0.0, %v3646
      %v3648 = vpop.f32.mrb[0].mxu0
      %v3649 = vadd.f32 0.0, %v3648
      %3650 = vdwg.mxu0
      %3651 = vmatprep.subr.mxu0 %v3557
      %3652 = vmatpush1.msra.mxu0 %v3555
      %3653 = vmatprep.subr.mxu0 0.0
      %3654 = vmatpush1.msra.mxu0 0.0
      %3655 = vmatprep.subr.mxu0 0.0
      %3656 = vmatpush1.msra.mxu0 0.0
      %3657 = vmatprep.subr.mxu0 0.0
      %3658 = vmatpush1.msra.mxu0 0.0
      %3659 = vmatprep.subr.mxu0 0.0
      %3660 = vmatpush1.msra.mxu0 0.0
      %3661 = vmatprep.subr.mxu0 0.0
      %3662 = vmatpush1.msra.mxu0 0.0
      %3663 = vmatprep.subr.mxu0 0.0
      %3664 = vmatpush1.msra.mxu0 0.0
      %3665 = vmatprep.subr.mxu0 0.0
      %3666 = vmatpush1.msra.mxu0 0.0
      %3667 = vmatprep.subr.mxu0 0.0
      %3668 = vmatpush1.msra.mxu0 0.0
      %3669 = vmatprep.subr.mxu0 0.0
      %3670 = vmatpush1.msra.mxu0 0.0
      %3671 = vmatprep.subr.mxu0 0.0
      %3672 = vmatpush1.msra.mxu0 0.0
      %3673 = vmatprep.subr.mxu0 0.0
      %3674 = vmatpush1.msra.mxu0 0.0
      %3675 = vmatprep.subr.mxu0 0.0
      %3676 = vmatpush1.msra.mxu0 0.0
      %3677 = vmatprep.subr.mxu0 0.0
      %3678 = vmatpush1.msra.mxu0 0.0
      %3679 = vmatprep.subr.mxu0 0.0
      %3680 = vmatpush1.msra.mxu0 0.0
      %3681 = vmatprep.subr.mxu0 0.0
      %3682 = vmatpush1.msra.mxu0 0.0
      %3683 = vmatprep.subr.mxu0 0.0
      %3684 = vmatpush1.msra.mxu0 0.0
      %3685 = vmatprep.subr.mxu0 0.0
      %3686 = vmatpush1.msra.mxu0 0.0
      %3687 = vmatprep.subr.mxu0 0.0
      %3688 = vmatpush1.msra.mxu0 0.0
      %3689 = vmatprep.subr.mxu0 0.0
      %3690 = vmatpush1.msra.mxu0 0.0
      %3691 = vmatprep.subr.mxu0 0.0
      %3692 = vmatpush1.msra.mxu0 0.0
      %3693 = vmatprep.subr.mxu0 0.0
      %3694 = vmatpush1.msra.mxu0 0.0
      %3695 = vmatprep.subr.mxu0 0.0
      %3696 = vmatpush1.msra.mxu0 0.0
      %3697 = vmatprep.subr.mxu0 0.0
      %3698 = vmatpush1.msra.mxu0 0.0
      %3699 = vmatprep.subr.mxu0 0.0
      %3700 = vmatpush1.msra.mxu0 0.0
      %3701 = vmatprep.subr.mxu0 0.0
      %3702 = vmatpush1.msra.mxu0 0.0
      %3703 = vmatprep.subr.mxu0 0.0
      %3704 = vmatpush1.msra.mxu0 0.0
      %3705 = vmatprep.subr.mxu0 0.0
      %3706 = vmatpush1.msra.mxu0 0.0
      %3707 = vmatprep.subr.mxu0 0.0
      %3708 = vmatpush1.msra.mxu0 0.0
      %3709 = vmatprep.subr.mxu0 0.0
      %3710 = vmatpush1.msra.mxu0 0.0
      %3711 = vmatprep.subr.mxu0 0.0
      %3712 = vmatpush1.msra.mxu0 0.0
      %3713 = vmatprep.subr.mxu0 0.0
      %3714 = vmatpush1.msra.mxu0 0.0
      %3715 = vmatprep.mubr.f32.mxu0 0.0
      %3716 = vmatmul.mubr.f32.gmra.mrb[0].mxu0 %v2873
      %v3717 = vpop.f32.mrb[0].mxu0
      %v3718 = vadd.f32 0.0, %v3717
      %v3719 = vpop.f32.mrb[0].mxu0
      %v3720 = vadd.f32 0.0, %v3719
      %3721 = vmatprep.mubr.f32.mxu0 0.0
      %3722 = vmatmul.mubr.f32.gmra.mrb[0].mxu0 %v2876
      %v3723 = vpop.f32.mrb[0].mxu0
      %v3724 = vadd.f32 0.0, %v3723
      %v3725 = vpop.f32.mrb[0].mxu0
      %v3726 = vadd.f32 0.0, %v3725
      %3727 = vmatprep.mubr.f32.mxu0 0.0
      %3728 = vmatmul.mubr.f32.gmra.mrb[0].mxu0 %v2879
      %v3729 = vpop.f32.mrb[0].mxu0
      %v3730 = vadd.f32 0.0, %v3729
      %v3731 = vpop.f32.mrb[0].mxu0
      %v3732 = vadd.f32 0.0, %v3731
      %3733 = vmatprep.mubr.f32.mxu0 0.0
      %3734 = vmatmul.mubr.f32.gmra.mrb[0].mxu0 %v2882
      %v3735 = vpop.f32.mrb[0].mxu0
      %v3736 = vadd.f32 0.0, %v3735
      %v3737 = vpop.f32.mrb[0].mxu0
      %v3738 = vadd.f32 0.0, %v3737
      %3739 = vdwg.mxu0
      %v3740 = vmul.f32 %v3629, %v1432
      %v3741 = vmul.f32 %v3631, %v1428
      %v3742 = vmul.f32 %v3718, %v1424
      %v3743 = vmul.f32 %v3720, %v1420
      %v3744 = vmul.f32 %v3635, %v1433
      %v3745 = vmul.f32 %v3637, %v1429
      %v3746 = vmul.f32 %v3724, %v1425
      %v3747 = vmul.f32 %v3726, %v1421
      %v3748 = vmul.f32 %v3641, %v1481
      %v3749 = vmul.f32 %v3643, %v1477
      %v3750 = vmul.f32 %v3730, %v1473
      %v3751 = vmul.f32 %v3732, %v1469
      %v3752 = vmul.f32 %v3647, %v1482
      %v3753 = vmul.f32 %v3649, %v1478
      %v3754 = vmul.f32 %v3736, %v1474
      %v3755 = vmul.f32 %v3738, %v1470
      %v3756 = vadd.f32 %v3530, %v3740
      %v3757 = vadd.f32 %v3531, %v3741
      %v3758 = vadd.f32 %v3532, %v3742
      %v3759 = vadd.f32 %v3533, %v3743
      %v3760 = vadd.f32 %v3534, %v3744
      %v3761 = vadd.f32 %v3535, %v3745
      %v3762 = vadd.f32 %v3536, %v3746
      %v3763 = vadd.f32 %v3537, %v3747
      %v3764 = vadd.f32 %v3538, %v3748
      %v3765 = vadd.f32 %v3539, %v3749
      %v3766 = vadd.f32 %v3540, %v3750
      %v3767 = vadd.f32 %v3541, %v3751
      %v3768 = vadd.f32 %v3542, %v3752
      %v3769 = vadd.f32 %v3543, %v3753
      %v3770 = vadd.f32 %v3544, %v3754
      %v3771 = vadd.f32 %v3545, %v3755
      %v3772 = vsub.f32 %v1724, %v2851
      %v3773 = vsub.f32 %v1726, %v2852
      %v3774 = vsub.f32 %v1795, %v2853
      %v3775 = vsub.f32 %v1797, %v2854
      %v3776 = vmul.f32 %v3772, 1.442695
      %v3777 = vpow.pop %v3776
      %v3778 = vmul.f32 %v3773, 1.442695
      %v3779 = vpow.pop %v3778
      %v3780 = vmul.f32 %v3774, 1.442695
      %v3781 = vpow.pop %v3780
      %v3782 = vmul.f32 %v3775, 1.442695
      %v3783 = vpow.pop %v3782
      %v3784 = vadd.f32 %v3558, %v3777
      %v3785 = vadd.f32 %v3559, %v3779
      %v3786 = vadd.f32 %v3560, %v3781
      %v3787 = vadd.f32 %v3561, %v3783
      %3788 = vmatprep.subr.mxu0 %v3779
      %3789 = vmatpush1.msra.mxu0 %v3777
      %3790 = vmatprep.subr.mxu0 0.0
      %3791 = vmatpush1.msra.mxu0 0.0
      %3792 = vmatprep.subr.mxu0 0.0
      %3793 = vmatpush1.msra.mxu0 0.0
      %3794 = vmatprep.subr.mxu0 0.0
      %3795 = vmatpush1.msra.mxu0 0.0
      %3796 = vmatprep.subr.mxu0 0.0
      %3797 = vmatpush1.msra.mxu0 0.0
      %3798 = vmatprep.subr.mxu0 0.0
      %3799 = vmatpush1.msra.mxu0 0.0
      %3800 = vmatprep.subr.mxu0 0.0
      %3801 = vmatpush1.msra.mxu0 0.0
      %3802 = vmatprep.subr.mxu0 0.0
      %3803 = vmatpush1.msra.mxu0 0.0
      %3804 = vmatprep.subr.mxu0 0.0
      %3805 = vmatpush1.msra.mxu0 0.0
      %3806 = vmatprep.subr.mxu0 0.0
      %3807 = vmatpush1.msra.mxu0 0.0
      %3808 = vmatprep.subr.mxu0 0.0
      %3809 = vmatpush1.msra.mxu0 0.0
      %3810 = vmatprep.subr.mxu0 0.0
      %3811 = vmatpush1.msra.mxu0 0.0
      %3812 = vmatprep.subr.mxu0 0.0
      %3813 = vmatpush1.msra.mxu0 0.0
      %3814 = vmatprep.subr.mxu0 0.0
      %3815 = vmatpush1.msra.mxu0 0.0
      %3816 = vmatprep.subr.mxu0 0.0
      %3817 = vmatpush1.msra.mxu0 0.0
      %3818 = vmatprep.subr.mxu0 0.0
      %3819 = vmatpush1.msra.mxu0 0.0
      %3820 = vmatprep.subr.mxu0 0.0
      %3821 = vmatpush1.msra.mxu0 0.0
      %3822 = vmatprep.subr.mxu0 0.0
      %3823 = vmatpush1.msra.mxu0 0.0
      %3824 = vmatprep.subr.mxu0 0.0
      %3825 = vmatpush1.msra.mxu0 0.0
      %3826 = vmatprep.subr.mxu0 0.0
      %3827 = vmatpush1.msra.mxu0 0.0
      %3828 = vmatprep.subr.mxu0 0.0
      %3829 = vmatpush1.msra.mxu0 0.0
      %3830 = vmatprep.subr.mxu0 0.0
      %3831 = vmatpush1.msra.mxu0 0.0
      %3832 = vmatprep.subr.mxu0 0.0
      %3833 = vmatpush1.msra.mxu0 0.0
      %3834 = vmatprep.subr.mxu0 0.0
      %3835 = vmatpush1.msra.mxu0 0.0
      %3836 = vmatprep.subr.mxu0 0.0
      %3837 = vmatpush1.msra.mxu0 0.0
      %3838 = vmatprep.subr.mxu0 0.0
      %3839 = vmatpush1.msra.mxu0 0.0
      %3840 = vmatprep.subr.mxu0 0.0
      %3841 = vmatpush1.msra.mxu0 0.0
      %3842 = vmatprep.subr.mxu0 0.0
      %3843 = vmatpush1.msra.mxu0 0.0
      %3844 = vmatprep.subr.mxu0 0.0
      %3845 = vmatpush1.msra.mxu0 0.0
      %3846 = vmatprep.subr.mxu0 0.0
      %3847 = vmatpush1.msra.mxu0 0.0
      %3848 = vmatprep.subr.mxu0 0.0
      %3849 = vmatpush1.msra.mxu0 0.0
      %3850 = vmatprep.subr.mxu0 0.0
      %3851 = vmatpush1.msra.mxu0 0.0
      %3852 = vmatprep.mubr.f32.mxu0 0.0
      %3853 = vmatmul.mubr.f32.gmra.mrb[0].mxu0 %v2873
      %v3854 = vpop.f32.mrb[0].mxu0
      %v3855 = vadd.f32 0.0, %v3854
      %v3856 = vpop.f32.mrb[0].mxu0
      %v3857 = vadd.f32 0.0, %v3856
      %3858 = vmatprep.mubr.f32.mxu0 0.0
      %3859 = vmatmul.mubr.f32.gmra.mrb[0].mxu0 %v2876
      %v3860 = vpop.f32.mrb[0].mxu0
      %v3861 = vadd.f32 0.0, %v3860
      %v3862 = vpop.f32.mrb[0].mxu0
      %v3863 = vadd.f32 0.0, %v3862
      %3864 = vmatprep.mubr.f32.mxu0 0.0
      %3865 = vmatmul.mubr.f32.gmra.mrb[0].mxu0 %v2879
      %v3866 = vpop.f32.mrb[0].mxu0
      %v3867 = vadd.f32 0.0, %v3866
      %v3868 = vpop.f32.mrb[0].mxu0
      %v3869 = vadd.f32 0.0, %v3868
      %3870 = vmatprep.mubr.f32.mxu0 0.0
      %3871 = vmatmul.mubr.f32.gmra.mrb[0].mxu0 %v2882
      %v3872 = vpop.f32.mrb[0].mxu0
      %v3873 = vadd.f32 0.0, %v3872
      %v3874 = vpop.f32.mrb[0].mxu0
      %v3875 = vadd.f32 0.0, %v3874
      %3876 = vdwg.mxu0
      %3877 = vmatprep.subr.mxu0 %v3783
      %3878 = vmatpush1.msra.mxu0 %v3781
      %3879 = vmatprep.subr.mxu0 0.0
      %3880 = vmatpush1.msra.mxu0 0.0
      %3881 = vmatprep.subr.mxu0 0.0
      %3882 = vmatpush1.msra.mxu0 0.0
      %3883 = vmatprep.subr.mxu0 0.0
      %3884 = vmatpush1.msra.mxu0 0.0
      %3885 = vmatprep.subr.mxu0 0.0
      %3886 = vmatpush1.msra.mxu0 0.0
      %3887 = vmatprep.subr.mxu0 0.0
      %3888 = vmatpush1.msra.mxu0 0.0
      %3889 = vmatprep.subr.mxu0 0.0
      %3890 = vmatpush1.msra.mxu0 0.0
      %3891 = vmatprep.subr.mxu0 0.0
      %3892 = vmatpush1.msra.mxu0 0.0
      %3893 = vmatprep.subr.mxu0 0.0
      %3894 = vmatpush1.msra.mxu0 0.0
      %3895 = vmatprep.subr.mxu0 0.0
      %3896 = vmatpush1.msra.mxu0 0.0
      %3897 = vmatprep.subr.mxu0 0.0
      %3898 = vmatpush1.msra.mxu0 0.0
      %3899 = vmatprep.subr.mxu0 0.0
      %3900 = vmatpush1.msra.mxu0 0.0
      %3901 = vmatprep.subr.mxu0 0.0
      %3902 = vmatpush1.msra.mxu0 0.0
      %3903 = vmatprep.subr.mxu0 0.0
      %3904 = vmatpush1.msra.mxu0 0.0
      %3905 = vmatprep.subr.mxu0 0.0
      %3906 = vmatpush1.msra.mxu0 0.0
      %3907 = vmatprep.subr.mxu0 0.0
      %3908 = vmatpush1.msra.mxu0 0.0
      %3909 = vmatprep.subr.mxu0 0.0
      %3910 = vmatpush1.msra.mxu0 0.0
      %3911 = vmatprep.subr.mxu0 0.0
      %3912 = vmatpush1.msra.mxu0 0.0
      %3913 = vmatprep.subr.mxu0 0.0
      %3914 = vmatpush1.msra.mxu0 0.0
      %3915 = vmatprep.subr.mxu0 0.0
      %3916 = vmatpush1.msra.mxu0 0.0
      %3917 = vmatprep.subr.mxu0 0.0
      %3918 = vmatpush1.msra.mxu0 0.0
      %3919 = vmatprep.subr.mxu0 0.0
      %3920 = vmatpush1.msra.mxu0 0.0
      %3921 = vmatprep.subr.mxu0 0.0
      %3922 = vmatpush1.msra.mxu0 0.0
      %3923 = vmatprep.subr.mxu0 0.0
      %3924 = vmatpush1.msra.mxu0 0.0
      %3925 = vmatprep.subr.mxu0 0.0
      %3926 = vmatpush1.msra.mxu0 0.0
      %3927 = vmatprep.subr.mxu0 0.0
      %3928 = vmatpush1.msra.mxu0 0.0
      %3929 = vmatprep.subr.mxu0 0.0
      %3930 = vmatpush1.msra.mxu0 0.0
      %3931 = vmatprep.subr.mxu0 0.0
      %3932 = vmatpush1.msra.mxu0 0.0
      %3933 = vmatprep.subr.mxu0 0.0
      %3934 = vmatpush1.msra.mxu0 0.0
      %3935 = vmatprep.subr.mxu0 0.0
      %3936 = vmatpush1.msra.mxu0 0.0
      %3937 = vmatprep.subr.mxu0 0.0
      %3938 = vmatpush1.msra.mxu0 0.0
      %3939 = vmatprep.subr.mxu0 0.0
      %3940 = vmatpush1.msra.mxu0 0.0
      %3941 = vmatprep.mubr.f32.mxu0 0.0
      %3942 = vmatmul.mubr.f32.gmra.mrb[0].mxu0 %v2873
      %v3943 = vpop.f32.mrb[0].mxu0
      %v3944 = vadd.f32 0.0, %v3943
      %v3945 = vpop.f32.mrb[0].mxu0
      %v3946 = vadd.f32 0.0, %v3945
      %3947 = vmatprep.mubr.f32.mxu0 0.0
      %3948 = vmatmul.mubr.f32.gmra.mrb[0].mxu0 %v2876
      %v3949 = vpop.f32.mrb[0].mxu0
      %v3950 = vadd.f32 0.0, %v3949
      %v3951 = vpop.f32.mrb[0].mxu0
      %v3952 = vadd.f32 0.0, %v3951
      %3953 = vmatprep.mubr.f32.mxu0 0.0
      %3954 = vmatmul.mubr.f32.gmra.mrb[0].mxu0 %v2879
      %v3955 = vpop.f32.mrb[0].mxu0
      %v3956 = vadd.f32 0.0, %v3955
      %v3957 = vpop.f32.mrb[0].mxu0
      %v3958 = vadd.f32 0.0, %v3957
      %3959 = vmatprep.mubr.f32.mxu0 0.0
      %3960 = vmatmul.mubr.f32.gmra.mrb[0].mxu0 %v2882
      %v3961 = vpop.f32.mrb[0].mxu0
      %v3962 = vadd.f32 0.0, %v3961
      %v3963 = vpop.f32.mrb[0].mxu0
      %v3964 = vadd.f32 0.0, %v3963
      %3965 = vdwg.mxu0
      %v3966 = vmul.f32 %v3855, %v432
      %v3967 = vmul.f32 %v3857, %v434
      %v3968 = vmul.f32 %v3944, %v569
      %v3969 = vmul.f32 %v3946, %v571
      %v3970 = vmul.f32 %v3861, %v438
      %v3971 = vmul.f32 %v3863, %v440
      %v3972 = vmul.f32 %v3950, %v575
      %v3973 = vmul.f32 %v3952, %v577
      %v3974 = vmul.f32 %v3867, %v444
      %v3975 = vmul.f32 %v3869, %v446
      %v3976 = vmul.f32 %v3956, %v581
      %v3977 = vmul.f32 %v3958, %v583
      %v3978 = vmul.f32 %v3873, %v450
      %v3979 = vmul.f32 %v3875, %v452
      %v3980 = vmul.f32 %v3962, %v587
      %v3981 = vmul.f32 %v3964, %v589
      %v3982 = vadd.f32 %v3756, %v3966
      %v3983 = vadd.f32 %v3757, %v3967
      %v3984 = vadd.f32 %v3758, %v3968
      %v3985 = vadd.f32 %v3759, %v3969
      %v3986 = vadd.f32 %v3760, %v3970
      %v3987 = vadd.f32 %v3761, %v3971
      %v3988 = vadd.f32 %v3762, %v3972
      %v3989 = vadd.f32 %v3763, %v3973
      %v3990 = vadd.f32 %v3764, %v3974
      %v3991 = vadd.f32 %v3765, %v3975
      %v3992 = vadd.f32 %v3766, %v3976
      %v3993 = vadd.f32 %v3767, %v3977
      %v3994 = vadd.f32 %v3768, %v3978
      %v3995 = vadd.f32 %v3769, %v3979
      %v3996 = vadd.f32 %v3770, %v3980
      %v3997 = vadd.f32 %v3771, %v3981
      %v3998 = vsub.f32 %v1980, %v2851
      %v3999 = vsub.f32 %v1982, %v2852
      %v4000 = vsub.f32 %v2051, %v2853
      %v4001 = vsub.f32 %v2053, %v2854
      %v4002 = vmul.f32 %v3998, 1.442695
      %v4003 = vpow.pop %v4002
      %v4004 = vmul.f32 %v3999, 1.442695
      %v4005 = vpow.pop %v4004
      %v4006 = vmul.f32 %v4000, 1.442695
      %v4007 = vpow.pop %v4006
      %v4008 = vmul.f32 %v4001, 1.442695
      %v4009 = vpow.pop %v4008
      %v4010 = vadd.f32 %v3784, %v4003
      %v4011 = vadd.f32 %v3785, %v4005
      %v4012 = vadd.f32 %v3786, %v4007
      %v4013 = vadd.f32 %v3787, %v4009
      %4014 = vmatprep.subr.mxu0 %v4005
      %4015 = vmatpush1.msra.mxu0 %v4003
      %4016 = vmatprep.subr.mxu0 0.0
      %4017 = vmatpush1.msra.mxu0 0.0
      %4018 = vmatprep.subr.mxu0 0.0
      %4019 = vmatpush1.msra.mxu0 0.0
      %4020 = vmatprep.subr.mxu0 0.0
      %4021 = vmatpush1.msra.mxu0 0.0
      %4022 = vmatprep.subr.mxu0 0.0
      %4023 = vmatpush1.msra.mxu0 0.0
      %4024 = vmatprep.subr.mxu0 0.0
      %4025 = vmatpush1.msra.mxu0 0.0
      %4026 = vmatprep.subr.mxu0 0.0
      %4027 = vmatpush1.msra.mxu0 0.0
      %4028 = vmatprep.subr.mxu0 0.0
      %4029 = vmatpush1.msra.mxu0 0.0
      %4030 = vmatprep.subr.mxu0 0.0
      %4031 = vmatpush1.msra.mxu0 0.0
      %4032 = vmatprep.subr.mxu0 0.0
      %4033 = vmatpush1.msra.mxu0 0.0
      %4034 = vmatprep.subr.mxu0 0.0
      %4035 = vmatpush1.msra.mxu0 0.0
      %4036 = vmatprep.subr.mxu0 0.0
      %4037 = vmatpush1.msra.mxu0 0.0
      %4038 = vmatprep.subr.mxu0 0.0
      %4039 = vmatpush1.msra.mxu0 0.0
      %4040 = vmatprep.subr.mxu0 0.0
      %4041 = vmatpush1.msra.mxu0 0.0
      %4042 = vmatprep.subr.mxu0 0.0
      %4043 = vmatpush1.msra.mxu0 0.0
      %4044 = vmatprep.subr.mxu0 0.0
      %4045 = vmatpush1.msra.mxu0 0.0
      %4046 = vmatprep.subr.mxu0 0.0
      %4047 = vmatpush1.msra.mxu0 0.0
      %4048 = vmatprep.subr.mxu0 0.0
      %4049 = vmatpush1.msra.mxu0 0.0
      %4050 = vmatprep.subr.mxu0 0.0
      %4051 = vmatpush1.msra.mxu0 0.0
      %4052 = vmatprep.subr.mxu0 0.0
      %4053 = vmatpush1.msra.mxu0 0.0
      %4054 = vmatprep.subr.mxu0 0.0
      %4055 = vmatpush1.msra.mxu0 0.0
      %4056 = vmatprep.subr.mxu0 0.0
      %4057 = vmatpush1.msra.mxu0 0.0
      %4058 = vmatprep.subr.mxu0 0.0
      %4059 = vmatpush1.msra.mxu0 0.0
      %4060 = vmatprep.subr.mxu0 0.0
      %4061 = vmatpush1.msra.mxu0 0.0
      %4062 = vmatprep.subr.mxu0 0.0
      %4063 = vmatpush1.msra.mxu0 0.0
      %4064 = vmatprep.subr.mxu0 0.0
      %4065 = vmatpush1.msra.mxu0 0.0
      %4066 = vmatprep.subr.mxu0 0.0
      %4067 = vmatpush1.msra.mxu0 0.0
      %4068 = vmatprep.subr.mxu0 0.0
      %4069 = vmatpush1.msra.mxu0 0.0
      %4070 = vmatprep.subr.mxu0 0.0
      %4071 = vmatpush1.msra.mxu0 0.0
      %4072 = vmatprep.subr.mxu0 0.0
      %4073 = vmatpush1.msra.mxu0 0.0
      %4074 = vmatprep.subr.mxu0 0.0
      %4075 = vmatpush1.msra.mxu0 0.0
      %4076 = vmatprep.subr.mxu0 0.0
      %4077 = vmatpush1.msra.mxu0 0.0
      %4078 = vmatprep.mubr.f32.mxu0 0.0
      %4079 = vmatmul.mubr.f32.gmra.mrb[0].mxu0 %v2873
      %v4080 = vpop.f32.mrb[0].mxu0
      %v4081 = vadd.f32 0.0, %v4080
      %v4082 = vpop.f32.mrb[0].mxu0
      %v4083 = vadd.f32 0.0, %v4082
      %4084 = vmatprep.mubr.f32.mxu0 0.0
      %4085 = vmatmul.mubr.f32.gmra.mrb[0].mxu0 %v2876
      %v4086 = vpop.f32.mrb[0].mxu0
      %v4087 = vadd.f32 0.0, %v4086
      %v4088 = vpop.f32.mrb[0].mxu0
      %v4089 = vadd.f32 0.0, %v4088
      %4090 = vmatprep.mubr.f32.mxu0 0.0
      %4091 = vmatmul.mubr.f32.gmra.mrb[0].mxu0 %v2879
      %v4092 = vpop.f32.mrb[0].mxu0
      %v4093 = vadd.f32 0.0, %v4092
      %v4094 = vpop.f32.mrb[0].mxu0
      %v4095 = vadd.f32 0.0, %v4094
      %4096 = vmatprep.mubr.f32.mxu0 0.0
      %4097 = vmatmul.mubr.f32.gmra.mrb[0].mxu0 %v2882
      %v4098 = vpop.f32.mrb[0].mxu0
      %v4099 = vadd.f32 0.0, %v4098
      %v4100 = vpop.f32.mrb[0].mxu0
      %v4101 = vadd.f32 0.0, %v4100
      %4102 = vdwg.mxu0
      %4103 = vmatprep.subr.mxu0 %v4009
      %4104 = vmatpush1.msra.mxu0 %v4007
      %4105 = vmatprep.subr.mxu0 0.0
      %4106 = vmatpush1.msra.mxu0 0.0
      %4107 = vmatprep.subr.mxu0 0.0
      %4108 = vmatpush1.msra.mxu0 0.0
      %4109 = vmatprep.subr.mxu0 0.0
      %4110 = vmatpush1.msra.mxu0 0.0
      %4111 = vmatprep.subr.mxu0 0.0
      %4112 = vmatpush1.msra.mxu0 0.0
      %4113 = vmatprep.subr.mxu0 0.0
      %4114 = vmatpush1.msra.mxu0 0.0
      %4115 = vmatprep.subr.mxu0 0.0
      %4116 = vmatpush1.msra.mxu0 0.0
      %4117 = vmatprep.subr.mxu0 0.0
      %4118 = vmatpush1.msra.mxu0 0.0
      %4119 = vmatprep.subr.mxu0 0.0
      %4120 = vmatpush1.msra.mxu0 0.0
      %4121 = vmatprep.subr.mxu0 0.0
      %4122 = vmatpush1.msra.mxu0 0.0
      %4123 = vmatprep.subr.mxu0 0.0
      %4124 = vmatpush1.msra.mxu0 0.0
      %4125 = vmatprep.subr.mxu0 0.0
      %4126 = vmatpush1.msra.mxu0 0.0
      %4127 = vmatprep.subr.mxu0 0.0
      %4128 = vmatpush1.msra.mxu0 0.0
      %4129 = vmatprep.subr.mxu0 0.0
      %4130 = vmatpush1.msra.mxu0 0.0
      %4131 = vmatprep.subr.mxu0 0.0
      %4132 = vmatpush1.msra.mxu0 0.0
      %4133 = vmatprep.subr.mxu0 0.0
      %4134 = vmatpush1.msra.mxu0 0.0
      %4135 = vmatprep.subr.mxu0 0.0
      %4136 = vmatpush1.msra.mxu0 0.0
      %4137 = vmatprep.subr.mxu0 0.0
      %4138 = vmatpush1.msra.mxu0 0.0
      %4139 = vmatprep.subr.mxu0 0.0
      %4140 = vmatpush1.msra.mxu0 0.0
      %4141 = vmatprep.subr.mxu0 0.0
      %4142 = vmatpush1.msra.mxu0 0.0
      %4143 = vmatprep.subr.mxu0 0.0
      %4144 = vmatpush1.msra.mxu0 0.0
      %4145 = vmatprep.subr.mxu0 0.0
      %4146 = vmatpush1.msra.mxu0 0.0
      %4147 = vmatprep.subr.mxu0 0.0
      %4148 = vmatpush1.msra.mxu0 0.0
      %4149 = vmatprep.subr.mxu0 0.0
      %4150 = vmatpush1.msra.mxu0 0.0
      %4151 = vmatprep.subr.mxu0 0.0
      %4152 = vmatpush1.msra.mxu0 0.0
      %4153 = vmatprep.subr.mxu0 0.0
      %4154 = vmatpush1.msra.mxu0 0.0
      %4155 = vmatprep.subr.mxu0 0.0
      %4156 = vmatpush1.msra.mxu0 0.0
      %4157 = vmatprep.subr.mxu0 0.0
      %4158 = vmatpush1.msra.mxu0 0.0
      %4159 = vmatprep.subr.mxu0 0.0
      %4160 = vmatpush1.msra.mxu0 0.0
      %4161 = vmatprep.subr.mxu0 0.0
      %4162 = vmatpush1.msra.mxu0 0.0
      %4163 = vmatprep.subr.mxu0 0.0
      %4164 = vmatpush1.msra.mxu0 0.0
      %4165 = vmatprep.subr.mxu0 0.0
      %4166 = vmatpush1.msra.mxu0 0.0
      %4167 = vmatprep.mubr.f32.mxu0 0.0
      %4168 = vmatmul.mubr.f32.gmra.mrb[0].mxu0 %v2873
      %v4169 = vpop.f32.mrb[0].mxu0
      %v4170 = vadd.f32 0.0, %v4169
      %v4171 = vpop.f32.mrb[0].mxu0
      %v4172 = vadd.f32 0.0, %v4171
      %4173 = vmatprep.mubr.f32.mxu0 0.0
      %4174 = vmatmul.mubr.f32.gmra.mrb[0].mxu0 %v2876
      %v4175 = vpop.f32.mrb[0].mxu0
      %v4176 = vadd.f32 0.0, %v4175
      %v4177 = vpop.f32.mrb[0].mxu0
      %v4178 = vadd.f32 0.0, %v4177
      %4179 = vmatprep.mubr.f32.mxu0 0.0
      %4180 = vmatmul.mubr.f32.gmra.mrb[0].mxu0 %v2879
      %v4181 = vpop.f32.mrb[0].mxu0
      %v4182 = vadd.f32 0.0, %v4181
      %v4183 = vpop.f32.mrb[0].mxu0
      %v4184 = vadd.f32 0.0, %v4183
      %4185 = vmatprep.mubr.f32.mxu0 0.0
      %4186 = vmatmul.mubr.f32.gmra.mrb[0].mxu0 %v2882
      %v4187 = vpop.f32.mrb[0].mxu0
      %v4188 = vadd.f32 0.0, %v4187
      %v4189 = vpop.f32.mrb[0].mxu0
      %v4190 = vadd.f32 0.0, %v4189
      %4191 = vdwg.mxu0
      %v4192 = vmul.f32 %v4081, %v1842
      %v4193 = vmul.f32 %v4083, %v1838
      %v4194 = vmul.f32 %v4170, %v1834
      %v4195 = vmul.f32 %v4172, %v1846
      %v4196 = vmul.f32 %v4087, %v1843
      %v4197 = vmul.f32 %v4089, %v1839
      %v4198 = vmul.f32 %v4176, %v1835
      %v4199 = vmul.f32 %v4178, %v1847
      %v4200 = vmul.f32 %v4093, %v1891
      %v4201 = vmul.f32 %v4095, %v1887
      %v4202 = vmul.f32 %v4182, %v1883
      %v4203 = vmul.f32 %v4184, %v1895
      %v4204 = vmul.f32 %v4099, %v1892
      %v4205 = vmul.f32 %v4101, %v1888
      %v4206 = vmul.f32 %v4188, %v1884
      %v4207 = vmul.f32 %v4190, %v1896
      %v4208 = vadd.f32 %v3982, %v4192
      %v4209 = vadd.f32 %v3983, %v4193
      %v4210 = vadd.f32 %v3984, %v4194
      %v4211 = vadd.f32 %v3985, %v4195
      %v4212 = vadd.f32 %v3986, %v4196
      %v4213 = vadd.f32 %v3987, %v4197
      %v4214 = vadd.f32 %v3988, %v4198
      %v4215 = vadd.f32 %v3989, %v4199
      %v4216 = vadd.f32 %v3990, %v4200
      %v4217 = vadd.f32 %v3991, %v4201
      %v4218 = vadd.f32 %v3992, %v4202
      %v4219 = vadd.f32 %v3993, %v4203
      %v4220 = vadd.f32 %v3994, %v4204
      %v4221 = vadd.f32 %v3995, %v4205
      %v4222 = vadd.f32 %v3996, %v4206
      %v4223 = vadd.f32 %v3997, %v4207
      %v4224 = vsub.f32 %v2236, %v2851
      %v4225 = vsub.f32 %v2238, %v2852
      %v4226 = vsub.f32 %v2307, %v2853
      %v4227 = vsub.f32 %v2309, %v2854
      %v4228 = vmul.f32 %v4224, 1.442695
      %v4229 = vpow.pop %v4228
      %v4230 = vmul.f32 %v4225, 1.442695
      %v4231 = vpow.pop %v4230
      %v4232 = vmul.f32 %v4226, 1.442695
      %v4233 = vpow.pop %v4232
      %v4234 = vmul.f32 %v4227, 1.442695
      %v4235 = vpow.pop %v4234
      %v4236 = vadd.f32 %v4010, %v4229
      %v4237 = vadd.f32 %v4011, %v4231
      %v4238 = vadd.f32 %v4012, %v4233
      %v4239 = vadd.f32 %v4013, %v4235
      %4240 = vmatprep.subr.mxu0 %v4231
      %4241 = vmatpush1.msra.mxu0 %v4229
      %4242 = vmatprep.subr.mxu0 0.0
      %4243 = vmatpush1.msra.mxu0 0.0
      %4244 = vmatprep.subr.mxu0 0.0
      %4245 = vmatpush1.msra.mxu0 0.0
      %4246 = vmatprep.subr.mxu0 0.0
      %4247 = vmatpush1.msra.mxu0 0.0
      %4248 = vmatprep.subr.mxu0 0.0
      %4249 = vmatpush1.msra.mxu0 0.0
      %4250 = vmatprep.subr.mxu0 0.0
      %4251 = vmatpush1.msra.mxu0 0.0
      %4252 = vmatprep.subr.mxu0 0.0
      %4253 = vmatpush1.msra.mxu0 0.0
      %4254 = vmatprep.subr.mxu0 0.0
      %4255 = vmatpush1.msra.mxu0 0.0
      %4256 = vmatprep.subr.mxu0 0.0
      %4257 = vmatpush1.msra.mxu0 0.0
      %4258 = vmatprep.subr.mxu0 0.0
      %4259 = vmatpush1.msra.mxu0 0.0
      %4260 = vmatprep.subr.mxu0 0.0
      %4261 = vmatpush1.msra.mxu0 0.0
      %4262 = vmatprep.subr.mxu0 0.0
      %4263 = vmatpush1.msra.mxu0 0.0
      %4264 = vmatprep.subr.mxu0 0.0
      %4265 = vmatpush1.msra.mxu0 0.0
      %4266 = vmatprep.subr.mxu0 0.0
      %4267 = vmatpush1.msra.mxu0 0.0
      %4268 = vmatprep.subr.mxu0 0.0
      %4269 = vmatpush1.msra.mxu0 0.0
      %4270 = vmatprep.subr.mxu0 0.0
      %4271 = vmatpush1.msra.mxu0 0.0
      %4272 = vmatprep.subr.mxu0 0.0
      %4273 = vmatpush1.msra.mxu0 0.0
      %4274 = vmatprep.subr.mxu0 0.0
      %4275 = vmatpush1.msra.mxu0 0.0
      %4276 = vmatprep.subr.mxu0 0.0
      %4277 = vmatpush1.msra.mxu0 0.0
      %4278 = vmatprep.subr.mxu0 0.0
      %4279 = vmatpush1.msra.mxu0 0.0
      %4280 = vmatprep.subr.mxu0 0.0
      %4281 = vmatpush1.msra.mxu0 0.0
      %4282 = vmatprep.subr.mxu0 0.0
      %4283 = vmatpush1.msra.mxu0 0.0
      %4284 = vmatprep.subr.mxu0 0.0
      %4285 = vmatpush1.msra.mxu0 0.0
      %4286 = vmatprep.subr.mxu0 0.0
      %4287 = vmatpush1.msra.mxu0 0.0
      %4288 = vmatprep.subr.mxu0 0.0
      %4289 = vmatpush1.msra.mxu0 0.0
      %4290 = vmatprep.subr.mxu0 0.0
      %4291 = vmatpush1.msra.mxu0 0.0
      %4292 = vmatprep.subr.mxu0 0.0
      %4293 = vmatpush1.msra.mxu0 0.0
      %4294 = vmatprep.subr.mxu0 0.0
      %4295 = vmatpush1.msra.mxu0 0.0
      %4296 = vmatprep.subr.mxu0 0.0
      %4297 = vmatpush1.msra.mxu0 0.0
      %4298 = vmatprep.subr.mxu0 0.0
      %4299 = vmatpush1.msra.mxu0 0.0
      %4300 = vmatprep.subr.mxu0 0.0
      %4301 = vmatpush1.msra.mxu0 0.0
      %4302 = vmatprep.subr.mxu0 0.0
      %4303 = vmatpush1.msra.mxu0 0.0
      %4304 = vmatprep.mubr.f32.mxu0 0.0
      %4305 = vmatmul.mubr.f32.gmra.mrb[0].mxu0 %v2873
      %v4306 = vpop.f32.mrb[0].mxu0
      %v4307 = vadd.f32 0.0, %v4306
      %v4308 = vpop.f32.mrb[0].mxu0
      %v4309 = vadd.f32 0.0, %v4308
      %4310 = vmatprep.mubr.f32.mxu0 0.0
      %4311 = vmatmul.mubr.f32.gmra.mrb[0].mxu0 %v2876
      %v4312 = vpop.f32.mrb[0].mxu0
      %v4313 = vadd.f32 0.0, %v4312
      %v4314 = vpop.f32.mrb[0].mxu0
      %v4315 = vadd.f32 0.0, %v4314
      %4316 = vmatprep.mubr.f32.mxu0 0.0
      %4317 = vmatmul.mubr.f32.gmra.mrb[0].mxu0 %v2879
      %v4318 = vpop.f32.mrb[0].mxu0
      %v4319 = vadd.f32 0.0, %v4318
      %v4320 = vpop.f32.mrb[0].mxu0
      %v4321 = vadd.f32 0.0, %v4320
      %4322 = vmatprep.mubr.f32.mxu0 0.0
      %4323 = vmatmul.mubr.f32.gmra.mrb[0].mxu0 %v2882
      %v4324 = vpop.f32.mrb[0].mxu0
      %v4325 = vadd.f32 0.0, %v4324
      %v4326 = vpop.f32.mrb[0].mxu0
      %v4327 = vadd.f32 0.0, %v4326
      %4328 = vdwg.mxu0
      %4329 = vmatprep.subr.mxu0 %v4235
      %4330 = vmatpush1.msra.mxu0 %v4233
      %4331 = vmatprep.subr.mxu0 0.0
      %4332 = vmatpush1.msra.mxu0 0.0
      %4333 = vmatprep.subr.mxu0 0.0
      %4334 = vmatpush1.msra.mxu0 0.0
      %4335 = vmatprep.subr.mxu0 0.0
      %4336 = vmatpush1.msra.mxu0 0.0
      %4337 = vmatprep.subr.mxu0 0.0
      %4338 = vmatpush1.msra.mxu0 0.0
      %4339 = vmatprep.subr.mxu0 0.0
      %4340 = vmatpush1.msra.mxu0 0.0
      %4341 = vmatprep.subr.mxu0 0.0
      %4342 = vmatpush1.msra.mxu0 0.0
      %4343 = vmatprep.subr.mxu0 0.0
      %4344 = vmatpush1.msra.mxu0 0.0
      %4345 = vmatprep.subr.mxu0 0.0
      %4346 = vmatpush1.msra.mxu0 0.0
      %4347 = vmatprep.subr.mxu0 0.0
      %4348 = vmatpush1.msra.mxu0 0.0
      %4349 = vmatprep.subr.mxu0 0.0
      %4350 = vmatpush1.msra.mxu0 0.0
      %4351 = vmatprep.subr.mxu0 0.0
      %4352 = vmatpush1.msra.mxu0 0.0
      %4353 = vmatprep.subr.mxu0 0.0
      %4354 = vmatpush1.msra.mxu0 0.0
      %4355 = vmatprep.subr.mxu0 0.0
      %4356 = vmatpush1.msra.mxu0 0.0
      %4357 = vmatprep.subr.mxu0 0.0
      %4358 = vmatpush1.msra.mxu0 0.0
      %4359 = vmatprep.subr.mxu0 0.0
      %4360 = vmatpush1.msra.mxu0 0.0
      %4361 = vmatprep.subr.mxu0 0.0
      %4362 = vmatpush1.msra.mxu0 0.0
      %4363 = vmatprep.subr.mxu0 0.0
      %4364 = vmatpush1.msra.mxu0 0.0
      %4365 = vmatprep.subr.mxu0 0.0
      %4366 = vmatpush1.msra.mxu0 0.0
      %4367 = vmatprep.subr.mxu0 0.0
      %4368 = vmatpush1.msra.mxu0 0.0
      %4369 = vmatprep.subr.mxu0 0.0
      %4370 = vmatpush1.msra.mxu0 0.0
      %4371 = vmatprep.subr.mxu0 0.0
      %4372 = vmatpush1.msra.mxu0 0.0
      %4373 = vmatprep.subr.mxu0 0.0
      %4374 = vmatpush1.msra.mxu0 0.0
      %4375 = vmatprep.subr.mxu0 0.0
      %4376 = vmatpush1.msra.mxu0 0.0
      %4377 = vmatprep.subr.mxu0 0.0
      %4378 = vmatpush1.msra.mxu0 0.0
      %4379 = vmatprep.subr.mxu0 0.0
      %4380 = vmatpush1.msra.mxu0 0.0
      %4381 = vmatprep.subr.mxu0 0.0
      %4382 = vmatpush1.msra.mxu0 0.0
      %4383 = vmatprep.subr.mxu0 0.0
      %4384 = vmatpush1.msra.mxu0 0.0
      %4385 = vmatprep.subr.mxu0 0.0
      %4386 = vmatpush1.msra.mxu0 0.0
      %4387 = vmatprep.subr.mxu0 0.0
      %4388 = vmatpush1.msra.mxu0 0.0
      %4389 = vmatprep.subr.mxu0 0.0
      %4390 = vmatpush1.msra.mxu0 0.0
      %4391 = vmatprep.subr.mxu0 0.0
      %4392 = vmatpush1.msra.mxu0 0.0
      %4393 = vmatprep.mubr.f32.mxu0 0.0
      %4394 = vmatmul.mubr.f32.gmra.mrb[0].mxu0 %v2873
      %v4395 = vpop.f32.mrb[0].mxu0
      %v4396 = vadd.f32 0.0, %v4395
      %v4397 = vpop.f32.mrb[0].mxu0
      %v4398 = vadd.f32 0.0, %v4397
      %4399 = vmatprep.mubr.f32.mxu0 0.0
      %4400 = vmatmul.mubr.f32.gmra.mrb[0].mxu0 %v2876
      %v4401 = vpop.f32.mrb[0].mxu0
      %v4402 = vadd.f32 0.0, %v4401
      %v4403 = vpop.f32.mrb[0].mxu0
      %v4404 = vadd.f32 0.0, %v4403
      %4405 = vmatprep.mubr.f32.mxu0 0.0
      %4406 = vmatmul.mubr.f32.gmra.mrb[0].mxu0 %v2879
      %v4407 = vpop.f32.mrb[0].mxu0
      %v4408 = vadd.f32 0.0, %v4407
      %v4409 = vpop.f32.mrb[0].mxu0
      %v4410 = vadd.f32 0.0, %v4409
      %4411 = vmatprep.mubr.f32.mxu0 0.0
      %4412 = vmatmul.mubr.f32.gmra.mrb[0].mxu0 %v2882
      %v4413 = vpop.f32.mrb[0].mxu0
      %v4414 = vadd.f32 0.0, %v4413
      %v4415 = vpop.f32.mrb[0].mxu0
      %v4416 = vadd.f32 0.0, %v4415
      %4417 = vdwg.mxu0
      %v4418 = vmul.f32 %v4307, %v2098
      %v4419 = vmul.f32 %v4309, %v2094
      %v4420 = vmul.f32 %v4396, %v2090
      %v4421 = vmul.f32 %v4398, %v2102
      %v4422 = vmul.f32 %v4313, %v2099
      %v4423 = vmul.f32 %v4315, %v2095
      %v4424 = vmul.f32 %v4402, %v2091
      %v4425 = vmul.f32 %v4404, %v2103
      %v4426 = vmul.f32 %v4319, %v2147
      %v4427 = vmul.f32 %v4321, %v2143
      %v4428 = vmul.f32 %v4408, %v2139
      %v4429 = vmul.f32 %v4410, %v2151
      %v4430 = vmul.f32 %v4325, %v2148
      %v4431 = vmul.f32 %v4327, %v2144
      %v4432 = vmul.f32 %v4414, %v2140
      %v4433 = vmul.f32 %v4416, %v2152
      %v4434 = vadd.f32 %v4208, %v4418
      %v4435 = vadd.f32 %v4209, %v4419
      %v4436 = vadd.f32 %v4210, %v4420
      %v4437 = vadd.f32 %v4211, %v4421
      %v4438 = vadd.f32 %v4212, %v4422
      %v4439 = vadd.f32 %v4213, %v4423
      %v4440 = vadd.f32 %v4214, %v4424
      %v4441 = vadd.f32 %v4215, %v4425
      %v4442 = vadd.f32 %v4216, %v4426
      %v4443 = vadd.f32 %v4217, %v4427
      %v4444 = vadd.f32 %v4218, %v4428
      %v4445 = vadd.f32 %v4219, %v4429
      %v4446 = vadd.f32 %v4220, %v4430
      %v4447 = vadd.f32 %v4221, %v4431
      %v4448 = vadd.f32 %v4222, %v4432
      %v4449 = vadd.f32 %v4223, %v4433
      %v4450 = vsub.f32 %v2492, %v2851
      %v4451 = vsub.f32 %v2494, %v2852
      %v4452 = vsub.f32 %v2563, %v2853
      %v4453 = vsub.f32 %v2565, %v2854
      %v4454 = vmul.f32 %v4450, 1.442695
      %v4455 = vpow.pop %v4454
      %v4456 = vmul.f32 %v4451, 1.442695
      %v4457 = vpow.pop %v4456
      %v4458 = vmul.f32 %v4452, 1.442695
      %v4459 = vpow.pop %v4458
      %v4460 = vmul.f32 %v4453, 1.442695
      %v4461 = vpow.pop %v4460
      %v4462 = vadd.f32 %v4236, %v4455
      %v4463 = vadd.f32 %v4237, %v4457
      %v4464 = vadd.f32 %v4238, %v4459
      %v4465 = vadd.f32 %v4239, %v4461
      %4466 = vmatprep.subr.mxu0 %v4457
      %4467 = vmatpush1.msra.mxu0 %v4455
      %4468 = vmatprep.subr.mxu0 0.0
      %4469 = vmatpush1.msra.mxu0 0.0
      %4470 = vmatprep.subr.mxu0 0.0
      %4471 = vmatpush1.msra.mxu0 0.0
      %4472 = vmatprep.subr.mxu0 0.0
      %4473 = vmatpush1.msra.mxu0 0.0
      %4474 = vmatprep.subr.mxu0 0.0
      %4475 = vmatpush1.msra.mxu0 0.0
      %4476 = vmatprep.subr.mxu0 0.0
      %4477 = vmatpush1.msra.mxu0 0.0
      %4478 = vmatprep.subr.mxu0 0.0
      %4479 = vmatpush1.msra.mxu0 0.0
      %4480 = vmatprep.subr.mxu0 0.0
      %4481 = vmatpush1.msra.mxu0 0.0
      %4482 = vmatprep.subr.mxu0 0.0
      %4483 = vmatpush1.msra.mxu0 0.0
      %4484 = vmatprep.subr.mxu0 0.0
      %4485 = vmatpush1.msra.mxu0 0.0
      %4486 = vmatprep.subr.mxu0 0.0
      %4487 = vmatpush1.msra.mxu0 0.0
      %4488 = vmatprep.subr.mxu0 0.0
      %4489 = vmatpush1.msra.mxu0 0.0
      %4490 = vmatprep.subr.mxu0 0.0
      %4491 = vmatpush1.msra.mxu0 0.0
      %4492 = vmatprep.subr.mxu0 0.0
      %4493 = vmatpush1.msra.mxu0 0.0
      %4494 = vmatprep.subr.mxu0 0.0
      %4495 = vmatpush1.msra.mxu0 0.0
      %4496 = vmatprep.subr.mxu0 0.0
      %4497 = vmatpush1.msra.mxu0 0.0
      %4498 = vmatprep.subr.mxu0 0.0
      %4499 = vmatpush1.msra.mxu0 0.0
      %4500 = vmatprep.subr.mxu0 0.0
      %4501 = vmatpush1.msra.mxu0 0.0
      %4502 = vmatprep.subr.mxu0 0.0
      %4503 = vmatpush1.msra.mxu0 0.0
      %4504 = vmatprep.subr.mxu0 0.0
      %4505 = vmatpush1.msra.mxu0 0.0
      %4506 = vmatprep.subr.mxu0 0.0
      %4507 = vmatpush1.msra.mxu0 0.0
      %4508 = vmatprep.subr.mxu0 0.0
      %4509 = vmatpush1.msra.mxu0 0.0
      %4510 = vmatprep.subr.mxu0 0.0
      %4511 = vmatpush1.msra.mxu0 0.0
      %4512 = vmatprep.subr.mxu0 0.0
      %4513 = vmatpush1.msra.mxu0 0.0
      %4514 = vmatprep.subr.mxu0 0.0
      %4515 = vmatpush1.msra.mxu0 0.0
      %4516 = vmatprep.subr.mxu0 0.0
      %4517 = vmatpush1.msra.mxu0 0.0
      %4518 = vmatprep.subr.mxu0 0.0
      %4519 = vmatpush1.msra.mxu0 0.0
      %4520 = vmatprep.subr.mxu0 0.0
      %4521 = vmatpush1.msra.mxu0 0.0
      %4522 = vmatprep.subr.mxu0 0.0
      %4523 = vmatpush1.msra.mxu0 0.0
      %4524 = vmatprep.subr.mxu0 0.0
      %4525 = vmatpush1.msra.mxu0 0.0
      %4526 = vmatprep.subr.mxu0 0.0
      %4527 = vmatpush1.msra.mxu0 0.0
      %4528 = vmatprep.subr.mxu0 0.0
      %4529 = vmatpush1.msra.mxu0 0.0
      %4530 = vmatprep.mubr.f32.mxu0 0.0
      %4531 = vmatmul.mubr.f32.gmra.mrb[0].mxu0 %v2873
      %v4532 = vpop.f32.mrb[0].mxu0
      %v4533 = vadd.f32 0.0, %v4532
      %v4534 = vpop.f32.mrb[0].mxu0
      %v4535 = vadd.f32 0.0, %v4534
      %4536 = vmatprep.mubr.f32.mxu0 0.0
      %4537 = vmatmul.mubr.f32.gmra.mrb[0].mxu0 %v2876
      %v4538 = vpop.f32.mrb[0].mxu0
      %v4539 = vadd.f32 0.0, %v4538
      %v4540 = vpop.f32.mrb[0].mxu0
      %v4541 = vadd.f32 0.0, %v4540
      %4542 = vmatprep.mubr.f32.mxu0 0.0
      %4543 = vmatmul.mubr.f32.gmra.mrb[0].mxu0 %v2879
      %v4544 = vpop.f32.mrb[0].mxu0
      %v4545 = vadd.f32 0.0, %v4544
      %v4546 = vpop.f32.mrb[0].mxu0
      %v4547 = vadd.f32 0.0, %v4546
      %4548 = vmatprep.mubr.f32.mxu0 0.0
      %4549 = vmatmul.mubr.f32.gmra.mrb[0].mxu0 %v2882
      %v4550 = vpop.f32.mrb[0].mxu0
      %v4551 = vadd.f32 0.0, %v4550
      %v4552 = vpop.f32.mrb[0].mxu0
      %v4553 = vadd.f32 0.0, %v4552
      %4554 = vdwg.mxu0
      %4555 = vmatprep.subr.mxu0 %v4461
      %4556 = vmatpush1.msra.mxu0 %v4459
      %4557 = vmatprep.subr.mxu0 0.0
      %4558 = vmatpush1.msra.mxu0 0.0
      %4559 = vmatprep.subr.mxu0 0.0
      %4560 = vmatpush1.msra.mxu0 0.0
      %4561 = vmatprep.subr.mxu0 0.0
      %4562 = vmatpush1.msra.mxu0 0.0
      %4563 = vmatprep.subr.mxu0 0.0
      %4564 = vmatpush1.msra.mxu0 0.0
      %4565 = vmatprep.subr.mxu0 0.0
      %4566 = vmatpush1.msra.mxu0 0.0
      %4567 = vmatprep.subr.mxu0 0.0
      %4568 = vmatpush1.msra.mxu0 0.0
      %4569 = vmatprep.subr.mxu0 0.0
      %4570 = vmatpush1.msra.mxu0 0.0
      %4571 = vmatprep.subr.mxu0 0.0
      %4572 = vmatpush1.msra.mxu0 0.0
      %4573 = vmatprep.subr.mxu0 0.0
      %4574 = vmatpush1.msra.mxu0 0.0
      %4575 = vmatprep.subr.mxu0 0.0
      %4576 = vmatpush1.msra.mxu0 0.0
      %4577 = vmatprep.subr.mxu0 0.0
      %4578 = vmatpush1.msra.mxu0 0.0
      %4579 = vmatprep.subr.mxu0 0.0
      %4580 = vmatpush1.msra.mxu0 0.0
      %4581 = vmatprep.subr.mxu0 0.0
      %4582 = vmatpush1.msra.mxu0 0.0
      %4583 = vmatprep.subr.mxu0 0.0
      %4584 = vmatpush1.msra.mxu0 0.0
      %4585 = vmatprep.subr.mxu0 0.0
      %4586 = vmatpush1.msra.mxu0 0.0
      %4587 = vmatprep.subr.mxu0 0.0
      %4588 = vmatpush1.msra.mxu0 0.0
      %4589 = vmatprep.subr.mxu0 0.0
      %4590 = vmatpush1.msra.mxu0 0.0
      %4591 = vmatprep.subr.mxu0 0.0
      %4592 = vmatpush1.msra.mxu0 0.0
      %4593 = vmatprep.subr.mxu0 0.0
      %4594 = vmatpush1.msra.mxu0 0.0
      %4595 = vmatprep.subr.mxu0 0.0
      %4596 = vmatpush1.msra.mxu0 0.0
      %4597 = vmatprep.subr.mxu0 0.0
      %4598 = vmatpush1.msra.mxu0 0.0
      %4599 = vmatprep.subr.mxu0 0.0
      %4600 = vmatpush1.msra.mxu0 0.0
      %4601 = vmatprep.subr.mxu0 0.0
      %4602 = vmatpush1.msra.mxu0 0.0
      %4603 = vmatprep.subr.mxu0 0.0
      %4604 = vmatpush1.msra.mxu0 0.0
      %4605 = vmatprep.subr.mxu0 0.0
      %4606 = vmatpush1.msra.mxu0 0.0
      %4607 = vmatprep.subr.mxu0 0.0
      %4608 = vmatpush1.msra.mxu0 0.0
      %4609 = vmatprep.subr.mxu0 0.0
      %4610 = vmatpush1.msra.mxu0 0.0
      %4611 = vmatprep.subr.mxu0 0.0
      %4612 = vmatpush1.msra.mxu0 0.0
      %4613 = vmatprep.subr.mxu0 0.0
      %4614 = vmatpush1.msra.mxu0 0.0
      %4615 = vmatprep.subr.mxu0 0.0
      %4616 = vmatpush1.msra.mxu0 0.0
      %4617 = vmatprep.subr.mxu0 0.0
      %4618 = vmatpush1.msra.mxu0 0.0
      %4619 = vmatprep.mubr.f32.mxu0 0.0
      %4620 = vmatmul.mubr.f32.gmra.mrb[0].mxu0 %v2873
      %v4621 = vpop.f32.mrb[0].mxu0
      %v4622 = vadd.f32 0.0, %v4621
      %v4623 = vpop.f32.mrb[0].mxu0
      %v4624 = vadd.f32 0.0, %v4623
      %4625 = vmatprep.mubr.f32.mxu0 0.0
      %4626 = vmatmul.mubr.f32.gmra.mrb[0].mxu0 %v2876
      %v4627 = vpop.f32.mrb[0].mxu0
      %v4628 = vadd.f32 0.0, %v4627
      %v4629 = vpop.f32.mrb[0].mxu0
      %v4630 = vadd.f32 0.0, %v4629
      %4631 = vmatprep.mubr.f32.mxu0 0.0
      %4632 = vmatmul.mubr.f32.gmra.mrb[0].mxu0 %v2879
      %v4633 = vpop.f32.mrb[0].mxu0
      %v4634 = vadd.f32 0.0, %v4633
      %v4635 = vpop.f32.mrb[0].mxu0
      %v4636 = vadd.f32 0.0, %v4635
      %4637 = vmatprep.mubr.f32.mxu0 0.0
      %4638 = vmatmul.mubr.f32.gmra.mrb[0].mxu0 %v2882
      %v4639 = vpop.f32.mrb[0].mxu0
      %v4640 = vadd.f32 0.0, %v4639
      %v4641 = vpop.f32.mrb[0].mxu0
      %v4642 = vadd.f32 0.0, %v4641
      %4643 = vdwg.mxu0
      %v4644 = vmul.f32 %v4533, %v2354
      %v4645 = vmul.f32 %v4535, %v2350
      %v4646 = vmul.f32 %v4622, %v2346
      %v4647 = vmul.f32 %v4624, %v2358
      %v4648 = vmul.f32 %v4539, %v2355
      %v4649 = vmul.f32 %v4541, %v2351
      %v4650 = vmul.f32 %v4628, %v2347
      %v4651 = vmul.f32 %v4630, %v2359
      %v4652 = vmul.f32 %v4545, %v2403
      %v4653 = vmul.f32 %v4547, %v2399
      %v4654 = vmul.f32 %v4634, %v2395
      %v4655 = vmul.f32 %v4636, %v2407
      %v4656 = vmul.f32 %v4551, %v2404
      %v4657 = vmul.f32 %v4553, %v2400
      %v4658 = vmul.f32 %v4640, %v2396
      %v4659 = vmul.f32 %v4642, %v2408
      %v4660 = vadd.f32 %v4434, %v4644
      %v4661 = vadd.f32 %v4435, %v4645
      %v4662 = vadd.f32 %v4436, %v4646
      %v4663 = vadd.f32 %v4437, %v4647
      %v4664 = vadd.f32 %v4438, %v4648
      %v4665 = vadd.f32 %v4439, %v4649
      %v4666 = vadd.f32 %v4440, %v4650
      %v4667 = vadd.f32 %v4441, %v4651
      %v4668 = vadd.f32 %v4442, %v4652
      %v4669 = vadd.f32 %v4443, %v4653
      %v4670 = vadd.f32 %v4444, %v4654
      %v4671 = vadd.f32 %v4445, %v4655
      %v4672 = vadd.f32 %v4446, %v4656
      %v4673 = vadd.f32 %v4447, %v4657
      %v4674 = vadd.f32 %v4448, %v4658
      %v4675 = vadd.f32 %v4449, %v4659
      %v4676 = vsub.f32 %v2748, %v2851
      %v4677 = vsub.f32 %v2750, %v2852
      %v4678 = vsub.f32 %v2819, %v2853
      %v4679 = vsub.f32 %v2821, %v2854
      %v4680 = vmul.f32 %v4676, 1.442695
      %v4681 = vpow.pop %v4680
      %v4682 = vmul.f32 %v4677, 1.442695
      %v4683 = vpow.pop %v4682
      %v4684 = vmul.f32 %v4678, 1.442695
      %v4685 = vpow.pop %v4684
      %v4686 = vmul.f32 %v4679, 1.442695
      %v4687 = vpow.pop %v4686
      %v4688 = vadd.f32 %v4462, %v4681
      %v4689 = vadd.f32 %v4463, %v4683
      %v4690 = vadd.f32 %v4464, %v4685
      %v4691 = vadd.f32 %v4465, %v4687
      %4692 = vmatprep.subr.mxu0 %v4683
      %4693 = vmatpush1.msra.mxu0 %v4681
      %4694 = vmatprep.subr.mxu0 0.0
      %4695 = vmatpush1.msra.mxu0 0.0
      %4696 = vmatprep.subr.mxu0 0.0
      %4697 = vmatpush1.msra.mxu0 0.0
      %4698 = vmatprep.subr.mxu0 0.0
      %4699 = vmatpush1.msra.mxu0 0.0
      %4700 = vmatprep.subr.mxu0 0.0
      %4701 = vmatpush1.msra.mxu0 0.0
      %4702 = vmatprep.subr.mxu0 0.0
      %4703 = vmatpush1.msra.mxu0 0.0
      %4704 = vmatprep.subr.mxu0 0.0
      %4705 = vmatpush1.msra.mxu0 0.0
      %4706 = vmatprep.subr.mxu0 0.0
      %4707 = vmatpush1.msra.mxu0 0.0
      %4708 = vmatprep.subr.mxu0 0.0
      %4709 = vmatpush1.msra.mxu0 0.0
      %4710 = vmatprep.subr.mxu0 0.0
      %4711 = vmatpush1.msra.mxu0 0.0
      %4712 = vmatprep.subr.mxu0 0.0
      %4713 = vmatpush1.msra.mxu0 0.0
      %4714 = vmatprep.subr.mxu0 0.0
      %4715 = vmatpush1.msra.mxu0 0.0
      %4716 = vmatprep.subr.mxu0 0.0
      %4717 = vmatpush1.msra.mxu0 0.0
      %4718 = vmatprep.subr.mxu0 0.0
      %4719 = vmatpush1.msra.mxu0 0.0
      %4720 = vmatprep.subr.mxu0 0.0
      %4721 = vmatpush1.msra.mxu0 0.0
      %4722 = vmatprep.subr.mxu0 0.0
      %4723 = vmatpush1.msra.mxu0 0.0
      %4724 = vmatprep.subr.mxu0 0.0
      %4725 = vmatpush1.msra.mxu0 0.0
      %4726 = vmatprep.subr.mxu0 0.0
      %4727 = vmatpush1.msra.mxu0 0.0
      %4728 = vmatprep.subr.mxu0 0.0
      %4729 = vmatpush1.msra.mxu0 0.0
      %4730 = vmatprep.subr.mxu0 0.0
      %4731 = vmatpush1.msra.mxu0 0.0
      %4732 = vmatprep.subr.mxu0 0.0
      %4733 = vmatpush1.msra.mxu0 0.0
      %4734 = vmatprep.subr.mxu0 0.0
      %4735 = vmatpush1.msra.mxu0 0.0
      %4736 = vmatprep.subr.mxu0 0.0
      %4737 = vmatpush1.msra.mxu0 0.0
      %4738 = vmatprep.subr.mxu0 0.0
      %4739 = vmatpush1.msra.mxu0 0.0
      %4740 = vmatprep.subr.mxu0 0.0
      %4741 = vmatpush1.msra.mxu0 0.0
      %4742 = vmatprep.subr.mxu0 0.0
      %4743 = vmatpush1.msra.mxu0 0.0
      %4744 = vmatprep.subr.mxu0 0.0
      %4745 = vmatpush1.msra.mxu0 0.0
      %4746 = vmatprep.subr.mxu0 0.0
      %4747 = vmatpush1.msra.mxu0 0.0
      %4748 = vmatprep.subr.mxu0 0.0
      %4749 = vmatpush1.msra.mxu0 0.0
      %4750 = vmatprep.subr.mxu0 0.0
      %4751 = vmatpush1.msra.mxu0 0.0
      %4752 = vmatprep.subr.mxu0 0.0
      %4753 = vmatpush1.msra.mxu0 0.0
      %4754 = vmatprep.subr.mxu0 0.0
      %4755 = vmatpush1.msra.mxu0 0.0
      %4756 = vmatprep.mubr.f32.mxu0 0.0
      %4757 = vmatmul.mubr.f32.gmra.mrb[0].mxu0 %v2873
      %v4758 = vpop.f32.mrb[0].mxu0
      %v4759 = vadd.f32 0.0, %v4758
      %v4760 = vpop.f32.mrb[0].mxu0
      %v4761 = vadd.f32 0.0, %v4760
      %4762 = vmatprep.mubr.f32.mxu0 0.0
      %4763 = vmatmul.mubr.f32.gmra.mrb[0].mxu0 %v2876
      %v4764 = vpop.f32.mrb[0].mxu0
      %v4765 = vadd.f32 0.0, %v4764
      %v4766 = vpop.f32.mrb[0].mxu0
      %v4767 = vadd.f32 0.0, %v4766
      %4768 = vmatprep.mubr.f32.mxu0 0.0
      %4769 = vmatmul.mubr.f32.gmra.mrb[0].mxu0 %v2879
      %v4770 = vpop.f32.mrb[0].mxu0
      %v4771 = vadd.f32 0.0, %v4770
      %v4772 = vpop.f32.mrb[0].mxu0
      %v4773 = vadd.f32 0.0, %v4772
      %4774 = vmatprep.mubr.f32.mxu0 0.0
      %4775 = vmatmul.mubr.f32.gmra.mrb[0].mxu0 %v2882
      %v4776 = vpop.f32.mrb[0].mxu0
      %v4777 = vadd.f32 0.0, %v4776
      %v4778 = vpop.f32.mrb[0].mxu0
      %v4779 = vadd.f32 0.0, %v4778
      %4780 = vdwg.mxu0
      %4781 = vmatprep.subr.mxu0 %v4687
      %4782 = vmatpush1.msra.mxu0 %v4685
      %4783 = vmatprep.subr.mxu0 0.0
      %4784 = vmatpush1.msra.mxu0 0.0
      %4785 = vmatprep.subr.mxu0 0.0
      %4786 = vmatpush1.msra.mxu0 0.0
      %4787 = vmatprep.subr.mxu0 0.0
      %4788 = vmatpush1.msra.mxu0 0.0
      %4789 = vmatprep.subr.mxu0 0.0
      %4790 = vmatpush1.msra.mxu0 0.0
      %4791 = vmatprep.subr.mxu0 0.0
      %4792 = vmatpush1.msra.mxu0 0.0
      %4793 = vmatprep.subr.mxu0 0.0
      %4794 = vmatpush1.msra.mxu0 0.0
      %4795 = vmatprep.subr.mxu0 0.0
      %4796 = vmatpush1.msra.mxu0 0.0
      %4797 = vmatprep.subr.mxu0 0.0
      %4798 = vmatpush1.msra.mxu0 0.0
      %4799 = vmatprep.subr.mxu0 0.0
      %4800 = vmatpush1.msra.mxu0 0.0
      %4801 = vmatprep.subr.mxu0 0.0
      %4802 = vmatpush1.msra.mxu0 0.0
      %4803 = vmatprep.subr.mxu0 0.0
      %4804 = vmatpush1.msra.mxu0 0.0
      %4805 = vmatprep.subr.mxu0 0.0
      %4806 = vmatpush1.msra.mxu0 0.0
      %4807 = vmatprep.subr.mxu0 0.0
      %4808 = vmatpush1.msra.mxu0 0.0
      %4809 = vmatprep.subr.mxu0 0.0
      %4810 = vmatpush1.msra.mxu0 0.0
      %4811 = vmatprep.subr.mxu0 0.0
      %4812 = vmatpush1.msra.mxu0 0.0
      %4813 = vmatprep.subr.mxu0 0.0
      %4814 = vmatpush1.msra.mxu0 0.0
      %4815 = vmatprep.subr.mxu0 0.0
      %4816 = vmatpush1.msra.mxu0 0.0
      %4817 = vmatprep.subr.mxu0 0.0
      %4818 = vmatpush1.msra.mxu0 0.0
      %4819 = vmatprep.subr.mxu0 0.0
      %4820 = vmatpush1.msra.mxu0 0.0
      %4821 = vmatprep.subr.mxu0 0.0
      %4822 = vmatpush1.msra.mxu0 0.0
      %4823 = vmatprep.subr.mxu0 0.0
      %4824 = vmatpush1.msra.mxu0 0.0
      %4825 = vmatprep.subr.mxu0 0.0
      %4826 = vmatpush1.msra.mxu0 0.0
      %4827 = vmatprep.subr.mxu0 0.0
      %4828 = vmatpush1.msra.mxu0 0.0
      %4829 = vmatprep.subr.mxu0 0.0
      %4830 = vmatpush1.msra.mxu0 0.0
      %4831 = vmatprep.subr.mxu0 0.0
      %4832 = vmatpush1.msra.mxu0 0.0
      %4833 = vmatprep.subr.mxu0 0.0
      %4834 = vmatpush1.msra.mxu0 0.0
      %4835 = vmatprep.subr.mxu0 0.0
      %4836 = vmatpush1.msra.mxu0 0.0
      %4837 = vmatprep.subr.mxu0 0.0
      %4838 = vmatpush1.msra.mxu0 0.0
      %4839 = vmatprep.subr.mxu0 0.0
      %4840 = vmatpush1.msra.mxu0 0.0
      %4841 = vmatprep.subr.mxu0 0.0
      %4842 = vmatpush1.msra.mxu0 0.0
      %4843 = vmatprep.subr.mxu0 0.0
      %4844 = vmatpush1.msra.mxu0 0.0
      %4845 = vmatprep.mubr.f32.mxu0 0.0
      %4846 = vmatmul.mubr.f32.gmra.mrb[0].mxu0 %v2873
      %v4847 = vpop.f32.mrb[0].mxu0
      %v4848 = vadd.f32 0.0, %v4847
      %v4849 = vpop.f32.mrb[0].mxu0
      %v4850 = vadd.f32 0.0, %v4849
      %4851 = vmatprep.mubr.f32.mxu0 0.0
      %4852 = vmatmul.mubr.f32.gmra.mrb[0].mxu0 %v2876
      %v4853 = vpop.f32.mrb[0].mxu0
      %v4854 = vadd.f32 0.0, %v4853
      %v4855 = vpop.f32.mrb[0].mxu0
      %v4856 = vadd.f32 0.0, %v4855
      %4857 = vmatprep.mubr.f32.mxu0 0.0
      %4858 = vmatmul.mubr.f32.gmra.mrb[0].mxu0 %v2879
      %v4859 = vpop.f32.mrb[0].mxu0
      %v4860 = vadd.f32 0.0, %v4859
      %v4861 = vpop.f32.mrb[0].mxu0
      %v4862 = vadd.f32 0.0, %v4861
      %4863 = vmatprep.mubr.f32.mxu0 0.0
      %4864 = vmatmul.mubr.f32.gmra.mrb[0].mxu0 %v2882
      %v4865 = vpop.f32.mrb[0].mxu0
      %v4866 = vadd.f32 0.0, %v4865
      %v4867 = vpop.f32.mrb[0].mxu0
      %v4868 = vadd.f32 0.0, %v4867
      %4869 = vdwg.mxu0
      %v4870 = vmul.f32 %v4759, %v2610
      %v4871 = vmul.f32 %v4761, %v2606
      %v4872 = vmul.f32 %v4848, %v2602
      %v4873 = vmul.f32 %v4850, %v2614
      %v4874 = vmul.f32 %v4765, %v2611
      %v4875 = vmul.f32 %v4767, %v2607
      %v4876 = vmul.f32 %v4854, %v2603
      %v4877 = vmul.f32 %v4856, %v2615
      %v4878 = vmul.f32 %v4771, %v2659
      %v4879 = vmul.f32 %v4773, %v2655
      %v4880 = vmul.f32 %v4860, %v2651
      %v4881 = vmul.f32 %v4862, %v2663
      %v4882 = vmul.f32 %v4777, %v2660
      %v4883 = vmul.f32 %v4779, %v2656
      %v4884 = vmul.f32 %v4866, %v2652
      %v4885 = vmul.f32 %v4868, %v2664
      %v4886 = vadd.f32 %v4660, %v4870
      %v4887 = vadd.f32 %v4661, %v4871
      %v4888 = vadd.f32 %v4662, %v4872
      %v4889 = vadd.f32 %v4663, %v4873
      %v4890 = vadd.f32 %v4664, %v4874
      %v4891 = vadd.f32 %v4665, %v4875
      %v4892 = vadd.f32 %v4666, %v4876
      %v4893 = vadd.f32 %v4667, %v4877
      %v4894 = vadd.f32 %v4668, %v4878
      %v4895 = vadd.f32 %v4669, %v4879
      %v4896 = vadd.f32 %v4670, %v4880
      %v4897 = vadd.f32 %v4671, %v4881
      %v4898 = vadd.f32 %v4672, %v4882
      %v4899 = vadd.f32 %v4673, %v4883
      %v4900 = vadd.f32 %v4674, %v4884
      %v4901 = vadd.f32 %v4675, %v4885
      %v4902 = vrcp.pop %v4688
      %v4903 = vrcp.pop %v4689
      %v4904 = vrcp.pop %v4690
      %v4905 = vrcp.pop %v4691
      %4906 = vmatprep.subr.mxu0 %v4903
      %4907 = vmatpush1.msra.mxu0 %v4902
      %4908 = vmatprep.subr.mxu0 0.0
      %4909 = vmatpush1.msra.mxu0 0.0
      %4910 = vmatprep.subr.mxu0 0.0
      %4911 = vmatpush1.msra.mxu0 0.0
      %4912 = vmatprep.subr.mxu0 0.0
      %4913 = vmatpush1.msra.mxu0 0.0
      %4914 = vmatprep.subr.mxu0 0.0
      %4915 = vmatpush1.msra.mxu0 0.0
      %4916 = vmatprep.subr.mxu0 0.0
      %4917 = vmatpush1.msra.mxu0 0.0
      %4918 = vmatprep.subr.mxu0 0.0
      %4919 = vmatpush1.msra.mxu0 0.0
      %4920 = vmatprep.subr.mxu0 0.0
      %4921 = vmatpush1.msra.mxu0 0.0
      %4922 = vmatprep.subr.mxu0 0.0
      %4923 = vmatpush1.msra.mxu0 0.0
      %4924 = vmatprep.subr.mxu0 0.0
      %4925 = vmatpush1.msra.mxu0 0.0
      %4926 = vmatprep.subr.mxu0 0.0
      %4927 = vmatpush1.msra.mxu0 0.0
      %4928 = vmatprep.subr.mxu0 0.0
      %4929 = vmatpush1.msra.mxu0 0.0
      %4930 = vmatprep.subr.mxu0 0.0
      %4931 = vmatpush1.msra.mxu0 0.0
      %4932 = vmatprep.subr.mxu0 0.0
      %4933 = vmatpush1.msra.mxu0 0.0
      %4934 = vmatprep.subr.mxu0 0.0
      %4935 = vmatpush1.msra.mxu0 0.0
      %4936 = vmatprep.subr.mxu0 0.0
      %4937 = vmatpush1.msra.mxu0 0.0
      %4938 = vmatprep.subr.mxu0 0.0
      %4939 = vmatpush1.msra.mxu0 0.0
      %4940 = vmatprep.subr.mxu0 0.0
      %4941 = vmatpush1.msra.mxu0 0.0
      %4942 = vmatprep.subr.mxu0 0.0
      %4943 = vmatpush1.msra.mxu0 0.0
      %4944 = vmatprep.subr.mxu0 0.0
      %4945 = vmatpush1.msra.mxu0 0.0
      %4946 = vmatprep.subr.mxu0 0.0
      %4947 = vmatpush1.msra.mxu0 0.0
      %4948 = vmatprep.subr.mxu0 0.0
      %4949 = vmatpush1.msra.mxu0 0.0
      %4950 = vmatprep.subr.mxu0 0.0
      %4951 = vmatpush1.msra.mxu0 0.0
      %4952 = vmatprep.subr.mxu0 0.0
      %4953 = vmatpush1.msra.mxu0 0.0
      %4954 = vmatprep.subr.mxu0 0.0
      %4955 = vmatpush1.msra.mxu0 0.0
      %4956 = vmatprep.subr.mxu0 0.0
      %4957 = vmatpush1.msra.mxu0 0.0
      %4958 = vmatprep.subr.mxu0 0.0
      %4959 = vmatpush1.msra.mxu0 0.0
      %4960 = vmatprep.subr.mxu0 0.0
      %4961 = vmatpush1.msra.mxu0 0.0
      %4962 = vmatprep.subr.mxu0 0.0
      %4963 = vmatpush1.msra.mxu0 0.0
      %4964 = vmatprep.subr.mxu0 0.0
      %4965 = vmatpush1.msra.mxu0 0.0
      %4966 = vmatprep.subr.mxu0 0.0
      %4967 = vmatpush1.msra.mxu0 0.0
      %4968 = vmatprep.subr.mxu0 0.0
      %4969 = vmatpush1.msra.mxu0 0.0
      %4970 = vmatprep.mubr.f32.mxu0 0.0
      %4971 = vmatmul.mubr.f32.gmra.mrb[0].mxu0 %v2873
      %v4972 = vpop.f32.mrb[0].mxu0
      %v4973 = vadd.f32 0.0, %v4972
      %v4974 = vpop.f32.mrb[0].mxu0
      %v4975 = vadd.f32 0.0, %v4974
      %4976 = vmatprep.mubr.f32.mxu0 0.0
      %4977 = vmatmul.mubr.f32.gmra.mrb[0].mxu0 %v2876
      %v4978 = vpop.f32.mrb[0].mxu0
      %v4979 = vadd.f32 0.0, %v4978
      %v4980 = vpop.f32.mrb[0].mxu0
      %v4981 = vadd.f32 0.0, %v4980
      %4982 = vmatprep.mubr.f32.mxu0 0.0
      %4983 = vmatmul.mubr.f32.gmra.mrb[0].mxu0 %v2879
      %v4984 = vpop.f32.mrb[0].mxu0
      %v4985 = vadd.f32 0.0, %v4984
      %v4986 = vpop.f32.mrb[0].mxu0
      %v4987 = vadd.f32 0.0, %v4986
      %4988 = vmatprep.mubr.f32.mxu0 0.0
      %4989 = vmatmul.mubr.f32.gmra.mrb[0].mxu0 %v2882
      %v4990 = vpop.f32.mrb[0].mxu0
      %v4991 = vadd.f32 0.0, %v4990
      %v4992 = vpop.f32.mrb[0].mxu0
      %v4993 = vadd.f32 0.0, %v4992
      %4994 = vdwg.mxu0
      %4995 = vmatprep.subr.mxu0 %v4905
      %4996 = vmatpush1.msra.mxu0 %v4904
      %4997 = vmatprep.subr.mxu0 0.0
      %4998 = vmatpush1.msra.mxu0 0.0
      %4999 = vmatprep.subr.mxu0 0.0
      %5000 = vmatpush1.msra.mxu0 0.0
      %5001 = vmatprep.subr.mxu0 0.0
      %5002 = vmatpush1.msra.mxu0 0.0
      %5003 = vmatprep.subr.mxu0 0.0
      %5004 = vmatpush1.msra.mxu0 0.0
      %5005 = vmatprep.subr.mxu0 0.0
      %5006 = vmatpush1.msra.mxu0 0.0
      %5007 = vmatprep.subr.mxu0 0.0
      %5008 = vmatpush1.msra.mxu0 0.0
      %5009 = vmatprep.subr.mxu0 0.0
      %5010 = vmatpush1.msra.mxu0 0.0
      %5011 = vmatprep.subr.mxu0 0.0
      %5012 = vmatpush1.msra.mxu0 0.0
      %5013 = vmatprep.subr.mxu0 0.0
      %5014 = vmatpush1.msra.mxu0 0.0
      %5015 = vmatprep.subr.mxu0 0.0
      %5016 = vmatpush1.msra.mxu0 0.0
      %5017 = vmatprep.subr.mxu0 0.0
      %5018 = vmatpush1.msra.mxu0 0.0
      %5019 = vmatprep.subr.mxu0 0.0
      %5020 = vmatpush1.msra.mxu0 0.0
      %5021 = vmatprep.subr.mxu0 0.0
      %5022 = vmatpush1.msra.mxu0 0.0
      %5023 = vmatprep.subr.mxu0 0.0
      %5024 = vmatpush1.msra.mxu0 0.0
      %5025 = vmatprep.subr.mxu0 0.0
      %5026 = vmatpush1.msra.mxu0 0.0
      %5027 = vmatprep.subr.mxu0 0.0
      %5028 = vmatpush1.msra.mxu0 0.0
      %5029 = vmatprep.subr.mxu0 0.0
      %5030 = vmatpush1.msra.mxu0 0.0
      %5031 = vmatprep.subr.mxu0 0.0
      %5032 = vmatpush1.msra.mxu0 0.0
      %5033 = vmatprep.subr.mxu0 0.0
      %5034 = vmatpush1.msra.mxu0 0.0
      %5035 = vmatprep.subr.mxu0 0.0
      %5036 = vmatpush1.msra.mxu0 0.0
      %5037 = vmatprep.subr.mxu0 0.0
      %5038 = vmatpush1.msra.mxu0 0.0
      %5039 = vmatprep.subr.mxu0 0.0
      %5040 = vmatpush1.msra.mxu0 0.0
      %5041 = vmatprep.subr.mxu0 0.0
      %5042 = vmatpush1.msra.mxu0 0.0
      %5043 = vmatprep.subr.mxu0 0.0
      %5044 = vmatpush1.msra.mxu0 0.0
      %5045 = vmatprep.subr.mxu0 0.0
      %5046 = vmatpush1.msra.mxu0 0.0
      %5047 = vmatprep.subr.mxu0 0.0
      %5048 = vmatpush1.msra.mxu0 0.0
      %5049 = vmatprep.subr.mxu0 0.0
      %5050 = vmatpush1.msra.mxu0 0.0
      %5051 = vmatprep.subr.mxu0 0.0
      %5052 = vmatpush1.msra.mxu0 0.0
      %5053 = vmatprep.subr.mxu0 0.0
      %5054 = vmatpush1.msra.mxu0 0.0
      %5055 = vmatprep.subr.mxu0 0.0
      %5056 = vmatpush1.msra.mxu0 0.0
      %5057 = vmatprep.subr.mxu0 0.0
      %5058 = vmatpush1.msra.mxu0 0.0
      %5059 = vmatprep.mubr.f32.mxu0 0.0
      %5060 = vmatmul.mubr.f32.gmra.mrb[0].mxu0 %v2873
      %v5061 = vpop.f32.mrb[0].mxu0
      %v5062 = vadd.f32 0.0, %v5061
      %v5063 = vpop.f32.mrb[0].mxu0
      %v5064 = vadd.f32 0.0, %v5063
      %5065 = vmatprep.mubr.f32.mxu0 0.0
      %5066 = vmatmul.mubr.f32.gmra.mrb[0].mxu0 %v2876
      %v5067 = vpop.f32.mrb[0].mxu0
      %v5068 = vadd.f32 0.0, %v5067
      %v5069 = vpop.f32.mrb[0].mxu0
      %v5070 = vadd.f32 0.0, %v5069
      %5071 = vmatprep.mubr.f32.mxu0 0.0
      %5072 = vmatmul.mubr.f32.gmra.mrb[0].mxu0 %v2879
      %v5073 = vpop.f32.mrb[0].mxu0
      %v5074 = vadd.f32 0.0, %v5073
      %v5075 = vpop.f32.mrb[0].mxu0
      %v5076 = vadd.f32 0.0, %v5075
      %5077 = vmatprep.mubr.f32.mxu0 0.0
      %5078 = vmatmul.mubr.f32.gmra.mrb[0].mxu0 %v2882
      %v5079 = vpop.f32.mrb[0].mxu0
      %v5080 = vadd.f32 0.0, %v5079
      %v5081 = vpop.f32.mrb[0].mxu0
      %v5082 = vadd.f32 0.0, %v5081
      %5083 = vdwg.mxu0
      %v5084 = vmul.f32 %v4886, %v4973
      %v5085 = vmul.f32 %v4887, %v4975
      %v5086 = vmul.f32 %v4888, %v5062
      %v5087 = vmul.f32 %v4889, %v5064
      %v5088 = vmul.f32 %v4890, %v4979
      %v5089 = vmul.f32 %v4891, %v4981
      %v5090 = vmul.f32 %v4892, %v5068
      %v5091 = vmul.f32 %v4893, %v5070
      %v5092 = vmul.f32 %v4894, %v4985
      %v5093 = vmul.f32 %v4895, %v4987
      %v5094 = vmul.f32 %v4896, %v5074
      %v5095 = vmul.f32 %v4897, %v5076
      %v5096 = vmul.f32 %v4898, %v4991
      %v5097 = vmul.f32 %v4899, %v4993
      %v5098 = vmul.f32 %v4900, %v5080
      %v5099 = vmul.f32 %v4901, %v5082
      %v5100 = vld [vmem:[%s2] sm:$0xff]
      %v5101 = vld [vmem:[%s2 + $0x8] sm:$0xff]
      %v5102 = vld [vmem:[%s2 + $0x10] sm:$0xff]
      %v5103 = vld [vmem:[%s2 + $0x18] sm:$0xff]
      %v5104 = vld [vmem:[%s3] sm:$0xff]
      %v5105 = vld [vmem:[%s3 + $0x8] sm:$0xff]
      %v5106 = vld [vmem:[%s3 + $0x10] sm:$0xff]
      %v5107 = vld [vmem:[%s3 + $0x18] sm:$0xff]
      %5109 = vset.pattern.permute.xlu0 0
      %5110 = vperm.xlu0 %5109, %v5104
      %v5111 = vpop.permute.xlu0 %5110
      %5114 = vset.pattern.permute.xlu0 0
      %5115 = vperm.xlu0 %5114, %v5105
      %v5116 = vpop.permute.xlu0 %5115
      %5119 = vset.pattern.permute.xlu0 0
      %5120 = vperm.xlu0 %5119, %v5106
      %v5121 = vpop.permute.xlu0 %5120
      %5124 = vset.pattern.permute.xlu0 0
      %5125 = vperm.xlu0 %5124, %v5107
      %v5126 = vpop.permute.xlu0 %5125
      %v5129 = vsel %vm280, %v5100, 0
      %v5132 = vsel %vm280, %v5101, 0
      %v5135 = vsel %vm280, %v5102, 0
      %v5138 = vsel %vm280, %v5103, 0
      %5140 = vmatprep.subr.mxu0 %v5085
      %5141 = vmatpush1.msra.mxu0 %v5084
      %5142 = vmatprep.subr.mxu0 %v5089
      %5143 = vmatpush1.msra.mxu0 %v5088
      %5144 = vmatprep.subr.mxu0 %v5093
      %5145 = vmatpush1.msra.mxu0 %v5092
      %5146 = vmatprep.subr.mxu0 %v5097
      %5147 = vmatpush1.msra.mxu0 %v5096
      %5148 = vmatprep.subr.mxu0 0.0
      %5149 = vmatpush1.msra.mxu0 0.0
      %5150 = vmatprep.subr.mxu0 0.0
      %5151 = vmatpush1.msra.mxu0 0.0
      %5152 = vmatprep.subr.mxu0 0.0
      %5153 = vmatpush1.msra.mxu0 0.0
      %5154 = vmatprep.subr.mxu0 0.0
      %5155 = vmatpush1.msra.mxu0 0.0
      %5156 = vmatprep.subr.mxu0 0.0
      %5157 = vmatpush1.msra.mxu0 0.0
      %5158 = vmatprep.subr.mxu0 0.0
      %5159 = vmatpush1.msra.mxu0 0.0
      %5160 = vmatprep.subr.mxu0 0.0
      %5161 = vmatpush1.msra.mxu0 0.0
      %5162 = vmatprep.subr.mxu0 0.0
      %5163 = vmatpush1.msra.mxu0 0.0
      %5164 = vmatprep.subr.mxu0 0.0
      %5165 = vmatpush1.msra.mxu0 0.0
      %5166 = vmatprep.subr.mxu0 0.0
      %5167 = vmatpush1.msra.mxu0 0.0
      %5168 = vmatprep.subr.mxu0 0.0
      %5169 = vmatpush1.msra.mxu0 0.0
      %5170 = vmatprep.subr.mxu0 0.0
      %5171 = vmatpush1.msra.mxu0 0.0
      %5172 = vmatprep.subr.mxu0 0.0
      %5173 = vmatpush1.msra.mxu0 0.0
      %5174 = vmatprep.subr.mxu0 0.0
      %5175 = vmatpush1.msra.mxu0 0.0
      %5176 = vmatprep.subr.mxu0 0.0
      %5177 = vmatpush1.msra.mxu0 0.0
      %5178 = vmatprep.subr.mxu0 0.0
      %5179 = vmatpush1.msra.mxu0 0.0
      %5180 = vmatprep.subr.mxu0 0.0
      %5181 = vmatpush1.msra.mxu0 0.0
      %5182 = vmatprep.subr.mxu0 0.0
      %5183 = vmatpush1.msra.mxu0 0.0
      %5184 = vmatprep.subr.mxu0 0.0
      %5185 = vmatpush1.msra.mxu0 0.0
      %5186 = vmatprep.subr.mxu0 0.0
      %5187 = vmatpush1.msra.mxu0 0.0
      %5188 = vmatprep.subr.mxu0 0.0
      %5189 = vmatpush1.msra.mxu0 0.0
      %5190 = vmatprep.subr.mxu0 0.0
      %5191 = vmatpush1.msra.mxu0 0.0
      %5192 = vmatprep.subr.mxu0 0.0
      %5193 = vmatpush1.msra.mxu0 0.0
      %5194 = vmatprep.subr.mxu0 0.0
      %5195 = vmatpush1.msra.mxu0 0.0
      %5196 = vmatprep.subr.mxu0 0.0
      %5197 = vmatpush1.msra.mxu0 0.0
      %5198 = vmatprep.subr.mxu0 0.0
      %5199 = vmatpush1.msra.mxu0 0.0
      %5200 = vmatprep.subr.mxu0 0.0
      %5201 = vmatpush1.msra.mxu0 0.0
      %5202 = vmatprep.subr.mxu0 0.0
      %5203 = vmatpush1.msra.mxu0 0.0
      %5204 = vmatprep.mubr.f32.mxu0 0.0
      %5205 = vmatmul.mubr.f32.gmra.mrb[0].mxu0 %v5129
      %v5206 = vpop.f32.mrb[0].mxu0
      %v5207 = vadd.f32 %v5111, %v5206
      %v5208 = vpop.f32.mrb[0].mxu0
      %v5209 = vadd.f32 %v5111, %v5208
      %5210 = vmatprep.mubr.f32.mxu0 0.0
      %5211 = vmatmul.mubr.f32.gmra.mrb[0].mxu0 %v5132
      %v5212 = vpop.f32.mrb[0].mxu0
      %v5213 = vadd.f32 %v5116, %v5212
      %v5214 = vpop.f32.mrb[0].mxu0
      %v5215 = vadd.f32 %v5116, %v5214
      %5216 = vmatprep.mubr.f32.mxu0 0.0
      %5217 = vmatmul.mubr.f32.gmra.mrb[0].mxu0 %v5135
      %v5218 = vpop.f32.mrb[0].mxu0
      %v5219 = vadd.f32 %v5121, %v5218
      %v5220 = vpop.f32.mrb[0].mxu0
      %v5221 = vadd.f32 %v5121, %v5220
      %5222 = vmatprep.mubr.f32.mxu0 0.0
      %5223 = vmatmul.mubr.f32.gmra.mrb[0].mxu0 %v5138
      %v5224 = vpop.f32.mrb[0].mxu0
      %v5225 = vadd.f32 %v5126, %v5224
      %v5226 = vpop.f32.mrb[0].mxu0
      %v5227 = vadd.f32 %v5126, %v5226
      %5228 = vdwg.mxu0
      %5229 = vmatprep.subr.mxu0 %v5087
      %5230 = vmatpush1.msra.mxu0 %v5086
      %5231 = vmatprep.subr.mxu0 %v5091
      %5232 = vmatpush1.msra.mxu0 %v5090
      %5233 = vmatprep.subr.mxu0 %v5095
      %5234 = vmatpush1.msra.mxu0 %v5094
      %5235 = vmatprep.subr.mxu0 %v5099
      %5236 = vmatpush1.msra.mxu0 %v5098
      %5237 = vmatprep.subr.mxu0 0.0
      %5238 = vmatpush1.msra.mxu0 0.0
      %5239 = vmatprep.subr.mxu0 0.0
      %5240 = vmatpush1.msra.mxu0 0.0
      %5241 = vmatprep.subr.mxu0 0.0
      %5242 = vmatpush1.msra.mxu0 0.0
      %5243 = vmatprep.subr.mxu0 0.0
      %5244 = vmatpush1.msra.mxu0 0.0
      %5245 = vmatprep.subr.mxu0 0.0
      %5246 = vmatpush1.msra.mxu0 0.0
      %5247 = vmatprep.subr.mxu0 0.0
      %5248 = vmatpush1.msra.mxu0 0.0
      %5249 = vmatprep.subr.mxu0 0.0
      %5250 = vmatpush1.msra.mxu0 0.0
      %5251 = vmatprep.subr.mxu0 0.0
      %5252 = vmatpush1.msra.mxu0 0.0
      %5253 = vmatprep.subr.mxu0 0.0
      %5254 = vmatpush1.msra.mxu0 0.0
      %5255 = vmatprep.subr.mxu0 0.0
      %5256 = vmatpush1.msra.mxu0 0.0
      %5257 = vmatprep.subr.mxu0 0.0
      %5258 = vmatpush1.msra.mxu0 0.0
      %5259 = vmatprep.subr.mxu0 0.0
      %5260 = vmatpush1.msra.mxu0 0.0
      %5261 = vmatprep.subr.mxu0 0.0
      %5262 = vmatpush1.msra.mxu0 0.0
      %5263 = vmatprep.subr.mxu0 0.0
      %5264 = vmatpush1.msra.mxu0 0.0
      %5265 = vmatprep.subr.mxu0 0.0
      %5266 = vmatpush1.msra.mxu0 0.0
      %5267 = vmatprep.subr.mxu0 0.0
      %5268 = vmatpush1.msra.mxu0 0.0
      %5269 = vmatprep.subr.mxu0 0.0
      %5270 = vmatpush1.msra.mxu0 0.0
      %5271 = vmatprep.subr.mxu0 0.0
      %5272 = vmatpush1.msra.mxu0 0.0
      %5273 = vmatprep.subr.mxu0 0.0
      %5274 = vmatpush1.msra.mxu0 0.0
      %5275 = vmatprep.subr.mxu0 0.0
      %5276 = vmatpush1.msra.mxu0 0.0
      %5277 = vmatprep.subr.mxu0 0.0
      %5278 = vmatpush1.msra.mxu0 0.0
      %5279 = vmatprep.subr.mxu0 0.0
      %5280 = vmatpush1.msra.mxu0 0.0
      %5281 = vmatprep.subr.mxu0 0.0
      %5282 = vmatpush1.msra.mxu0 0.0
      %5283 = vmatprep.subr.mxu0 0.0
      %5284 = vmatpush1.msra.mxu0 0.0
      %5285 = vmatprep.subr.mxu0 0.0
      %5286 = vmatpush1.msra.mxu0 0.0
      %5287 = vmatprep.subr.mxu0 0.0
      %5288 = vmatpush1.msra.mxu0 0.0
      %5289 = vmatprep.subr.mxu0 0.0
      %5290 = vmatpush1.msra.mxu0 0.0
      %5291 = vmatprep.subr.mxu0 0.0
      %5292 = vmatpush1.msra.mxu0 0.0
      %5293 = vmatprep.mubr.f32.mxu0 0.0
      %5294 = vmatmul.mubr.f32.gmra.mrb[0].mxu0 %v5129
      %v5295 = vpop.f32.mrb[0].mxu0
      %v5296 = vadd.f32 %v5111, %v5295
      %v5297 = vpop.f32.mrb[0].mxu0
      %v5298 = vadd.f32 %v5111, %v5297
      %5299 = vmatprep.mubr.f32.mxu0 0.0
      %5300 = vmatmul.mubr.f32.gmra.mrb[0].mxu0 %v5132
      %v5301 = vpop.f32.mrb[0].mxu0
      %v5302 = vadd.f32 %v5116, %v5301
      %v5303 = vpop.f32.mrb[0].mxu0
      %v5304 = vadd.f32 %v5116, %v5303
      %5305 = vmatprep.mubr.f32.mxu0 0.0
      %5306 = vmatmul.mubr.f32.gmra.mrb[0].mxu0 %v5135
      %v5307 = vpop.f32.mrb[0].mxu0
      %v5308 = vadd.f32 %v5121, %v5307
      %v5309 = vpop.f32.mrb[0].mxu0
      %v5310 = vadd.f32 %v5121, %v5309
      %5311 = vmatprep.mubr.f32.mxu0 0.0
      %5312 = vmatmul.mubr.f32.gmra.mrb[0].mxu0 %v5138
      %v5313 = vpop.f32.mrb[0].mxu0
      %v5314 = vadd.f32 %v5126, %v5313
      %v5315 = vpop.f32.mrb[0].mxu0
      %v5316 = vadd.f32 %v5126, %v5315
      %5317 = vdwg.mxu0
      %5318 = vst [vmem:[%s251] sm:$0xff] %v5207
      %5319 = vst [vmem:[%s251 + $0x8] sm:$0xff] %v5209
      %5320 = vst [vmem:[%s251 + $0x10] sm:$0xff] %v5296
      %5321 = vst [vmem:[%s251 + $0x18] sm:$0xff] %v5298
      %5322 = vst [vmem:[%s251 + $0x20] sm:$0xff] %v5213
      %5323 = vst [vmem:[%s251 + $0x28] sm:$0xff] %v5215
      %5324 = vst [vmem:[%s251 + $0x30] sm:$0xff] %v5302
      %5325 = vst [vmem:[%s251 + $0x38] sm:$0xff] %v5304
      %5326 = vst [vmem:[%s251 + $0x40] sm:$0xff] %v5219
      %5327 = vst [vmem:[%s251 + $0x48] sm:$0xff] %v5221
      %5328 = vst [vmem:[%s251 + $0x50] sm:$0xff] %v5308
      %5329 = vst [vmem:[%s251 + $0x58] sm:$0xff] %v5310
      %5330 = vst [vmem:[%s251 + $0x60] sm:$0xff] %v5225
      %5331 = vst [vmem:[%s251 + $0x68] sm:$0xff] %v5227
      %5332 = vst [vmem:[%s251 + $0x70] sm:$0xff] %v5314
      %5333 = vst [vmem:[%s251 + $0x78] sm:$0xff] %v5316
      %p5334 = scmp.lt.s32.totalorder %s17, 1
      %s5335 = scalar_select %p5334, %s17, 1
      %s5336 = smul.addr %s5335, 16
      %s5337 = smul.addr %s5336, 8
      %s5338 = scalar_lea.vmem %s6, %s5337
      // Predicated region
      $region45: #{multi_dilate_local_attention.1} parent=43 // pred_check
        %p5339 = pneg %p166
      $region46: #{multi_dilate_local_attention.1} parent=43 // pred_check_branch
        %5341 = sbr.rel (%p5339) target = $region48
      $region47: #{multi_dilate_local_attention.1} parent=43 // pred_region
        _
      $region48: #{multi_dilate_local_attention.1} parent=43 // pred_fallthru
        _
    $region44: #{multi_dilate_local_attention.1} parent=5 // pred_fallthru
      _
    %p5342 = scmp.le.s32.totalorder 2, %s12
    // Predicated region
    $region49: #{multi_dilate_local_attention.1} parent=5 // pred_check
      %p5343 = pneg %p5342
    $region50: #{multi_dilate_local_attention.1} parent=5 // pred_check_branch
      %5345 = sbr.rel (%p5343) target = $region52
    $region51: #{multi_dilate_local_attention.1} parent=5 // pred_region
      %s5346 = ssub.s32 %s12, 2
      // Predicated region
      $region53: #{multi_dilate_local_attention.1} parent=51 // pred_check
        %p5347 = pneg %p172
      $region54: #{multi_dilate_local_attention.1} parent=51 // pred_check_branch
        %5349 = sbr.rel (%p5347) target = $region56
      $region55: #{multi_dilate_local_attention.1} parent=51 // pred_region
        %p5350 = scmp.lt.s32.totalorder %s18, 1
        %s5351 = scalar_select %p5350, %s18, 1
        %s5352 = smul.addr %s5351, 16
        %s5353 = smul.addr %s5352, 8
        %s5354 = scalar_lea.vmem %s6, %s5353
      $region56: #{multi_dilate_local_attention.1} parent=51 // pred_fallthru
        _
    $region52: #{multi_dilate_local_attention.1} parent=5 // pred_fallthru
      _
  $region6: #{multi_dilate_local_attention.1} parent=0 // loop_footer
    %s16 = sadd.s32 1, %s12
  $region7: #{multi_dilate_local_attention.1} parent=0 // loop_footer_branch
    %11 = sbr.rel target = $region3
  $region8: #{multi_dilate_local_attention.1} parent=0 // loop_exit
    _

</llo_original>
